<compile_context>
chip_gen: v5e
topology: v5e:2x2
jax: 0.10.0
libtpu: 0.0.40
codegen_flags: <defaults>
</compile_context>

<pallas_src>
import math

import jax
import jax.numpy as jnp
from jax import lax
from jax.experimental import pallas as pl
from jax.experimental.pallas import tpu as pltpu


def bsde_driver(u, R, delta, v_h, v_l, gamma_h, gamma_l):
    """Negated BSDE driver: (1 - delta) * Q(u) * u + R * u."""
    # TODO(synk): model.Black_Scholes.Q_ is not in the provided snippet; this is
    # the standard piecewise-linear default-intensity driver (Han/Jentzen/E).
    slope = (gamma_h - gamma_l) / (v_h - v_l)
    intensity = jnp.where(
        u < v_h, gamma_h,
        jnp.where(u >= v_l, gamma_l, slope * (u - v_h) + gamma_h))
    return (1.0 - delta) * intensity * u + R * u


def _make_deep_bsde_kernel(N, TB, d, H, R, delta, v_h, v_l,
                           gamma_h, gamma_l, mu, sigma, dt):
    """Builds the per-batch-tile kernel body (all N time steps inside)."""

    def kernel(res_ref, x0_ref, resg_ref, dB_ref, w1_ref, w2_ref,
               g_ref, u_ref):
        # ---- initial state (batch on lanes, assets on sublanes) -------------
        u0 = jnp.full((1, TB), res_ref[0, 0], dtype=jnp.float32)
        grad0 = jnp.broadcast_to(resg_ref[...], (d, TB)).astype(jnp.float32)
        x_init = jnp.broadcast_to(x0_ref[...], (d, TB)).astype(jnp.float32)

        # hoisted constant; appended to activations so biases ride in the
        # last column of the augmented weights (no per-step bias broadcasts).
        ones_row = jnp.ones((1, TB), dtype=jnp.bfloat16)

        def step(i, carry):
            u, grad_u, x = carry
            dB = dB_ref[i]                                        # (d, TB) f32
            # u_{n+1} = u_n + Q_(u_n) dt + <grad u_n, dB_n>
            z = jnp.sum(grad_u * dB, axis=0, keepdims=True)       # (1, TB)
            u = u + bsde_driver(u, R, delta, v_h, v_l, gamma_h, gamma_l) * dt + z
            # Euler-Maruyama step of the forward SDE (geometric Brownian motion)
            x = x + mu * x * dt + sigma * x * dB
            # gradient_u = MLP_i(X_{i+1}):  (H,d+1)@(d+1,TB) -> ReLU ->
            #                               (d,H+1)@(H+1,TB), bf16 MXU, f32 acc.
            # NOTE: at d=16/H=32 the MXU is under-utilized (review item 8); kept
            # on the MXU since it is off the dominant cost after de-gridding.
            x_aug = jnp.concatenate([x.astype(jnp.bfloat16), ones_row], axis=0)
            h = jnp.maximum(
                jnp.dot(w1_ref[i], x_aug, preferred_element_type=jnp.float32),
                0.0)                                              # (H, TB) f32
            h_aug = jnp.concatenate([h.astype(jnp.bfloat16), ones_row], axis=0)
            grad_u = jnp.dot(w2_ref[i], h_aug,
                             preferred_element_type=jnp.float32)  # (d, TB)
            return u, grad_u, x

        # Fully unrolled: lets the scheduler overlap step i's MXU drain with
        # step i+1's independent VPU Euler work.
        u, grad_u, x = lax.fori_loop(0, N - 1, step, (u0, grad0, x_init),
                                     unroll=True)

        # ---- final step: last u update + X_N, no MLP ------------------------
        dB = dB_ref[N - 1]
        z = jnp.sum(grad_u * dB, axis=0, keepdims=True)
        u = u + bsde_driver(u, R, delta, v_h, v_l, gamma_h, gamma_l) * dt + z
        x = x + mu * x * dt + sigma * x * dB                      # X_N

        # terminal condition g(X_N); lane-dense (1, TB) row stores.
        # TODO(synk): model.Black_Scholes.g_ unavailable; using the standard
        # min-over-assets payoff of the default-risk example.
        g_ref[...] = jnp.min(x, axis=0, keepdims=True)
        u_ref[...] = u

    return kernel


def _default_batch_tile(B):
    """Full batch on single-TC chips; two lane-aligned tiles on dual-TC chips."""
    try:
        kind = jax.devices()[0].device_kind.lower()
    except Exception:
        kind = ""
    dual_tc = any(tag in kind for tag in ("v7", "7x", "v4", "v5p"))
    if dual_tc and B % 256 == 0:
        return B // 2
    return B


def sample_brownian(key, N, d, B, dt):
    """Brownian increments, step-major / asset-on-sublane / batch-on-lane, f32."""
    return (jax.random.normal(key, (N, d, B), dtype=jnp.float32)
            * jnp.float32(math.sqrt(dt)))


def deep_bsde_forward(t, x0, T, params, hp, dB, batch_tile=None):
    """JAX wrapper reproducing deepBSDE.forward(t, x, T)."""
    N, B, d, H = hp["N"], hp["batch_size"], hp["input_dim"], hp["hidden"]
    assert N >= 2
    dt = float(T - t) / N

    TB = batch_tile if batch_tile is not None else _default_batch_tile(B)
    TB = min(TB, B)
    assert B % TB == 0, "batch_size must be divisible by the batch tile"
    assert TB == B or TB % 128 == 0, "batch tile must be lane-aligned (x128)"
    num_tiles = B // TB

    # Transposed (lane = batch) operands; biases folded into an extra weight
    # column (activations get a bf16 ones row in-kernel).
    x0_col = jnp.transpose(x0).astype(jnp.float32)                        # (d, 1)
    resg_col = jnp.transpose(params["result_grad"]).astype(jnp.float32)   # (d, 1)
    w1_aug = jnp.concatenate(
        [jnp.transpose(params["w1"], (0, 2, 1)),                          # (N-1, H, d)
         jnp.transpose(params["b1"], (0, 2, 1))],                         # (N-1, H, 1)
        axis=2).astype(jnp.bfloat16)                                      # (N-1, H, d+1)
    w2_aug = jnp.concatenate(
        [jnp.transpose(params["w2"], (0, 2, 1)),                          # (N-1, d, H)
         jnp.transpose(params["b2"], (0, 2, 1))],                         # (N-1, d, 1)
        axis=2).astype(jnp.bfloat16)                                      # (N-1, d, H+1)

    kernel = _make_deep_bsde_kernel(
        N, TB, d, H,
        hp["R"], hp["delta"], hp["v_h"], hp["v_l"],
        hp["gamma_h"], hp["gamma_l"], hp["mu"], hp["sigma"], dt)

    vmem = pl.BlockSpec(memory_space=pltpu.MemorySpace.VMEM)   # whole-array resident
    smem = pl.BlockSpec(memory_space=pltpu.MemorySpace.SMEM)

    grid_spec = pltpu.PrefetchScalarGridSpec(
        num_scalar_prefetch=0,
        grid=(num_tiles,),
        in_specs=[
            smem,                                               # result (1,1)
            vmem,                                               # x0_col (d,1)
            vmem,                                               # result_grad (d,1)
            pl.BlockSpec((N, d, TB), lambda bt: (0, 0, bt)),    # dB: all N steps
            vmem,                                               # w1_aug resident
            vmem,                                               # w2_aug resident
        ],
        out_specs=(
            pl.BlockSpec((1, TB), lambda bt: (0, bt)),          # g row
            pl.BlockSpec((1, TB), lambda bt: (0, bt)),          # u row
        ),
    )

    g_row, u_row = pl.pallas_call(
        kernel,
        out_shape=(jax.ShapeDtypeStruct((1, B), jnp.float32),
                   jax.ShapeDtypeStruct((1, B), jnp.float32)),
        grid_spec=grid_spec,
        compiler_params=pltpu.CompilerParams(
            dimension_semantics=("parallel",),
            vmem_limit_bytes=32 * 1024 * 1024),   # safe on v7x's 64 MiB/core
    )(params["result"], x0_col, resg_col, dB, w1_aug, w2_aug)

    return g_row.reshape(B, 1), u_row.reshape(B, 1)


def deep_bsde_reference(x0, params, hp, dB, dt):
    """Pure-JAX reference (f32 dB, bf16 weight matmuls, f32 bias adds)."""
    N, B, d = hp["N"], hp["batch_size"], hp["input_dim"]
    R, delta = hp["R"], hp["delta"]
    v_h, v_l, gamma_h, gamma_l = hp["v_h"], hp["v_l"], hp["gamma_h"], hp["gamma_l"]
    mu, sigma = hp["mu"], hp["sigma"]

    dB = dB.astype(jnp.float32)                                            # (N, d, B)
    u = jnp.broadcast_to(params["result"].astype(jnp.float32), (1, B))
    grad = jnp.broadcast_to(params["result_grad"].T.astype(jnp.float32), (d, B))
    X = jnp.broadcast_to(x0.T.astype(jnp.float32), (d, B))
    w1 = jnp.transpose(params["w1"], (0, 2, 1)).astype(jnp.bfloat16)
    w2 = jnp.transpose(params["w2"], (0, 2, 1)).astype(jnp.bfloat16)
    b1 = jnp.transpose(params["b1"], (0, 2, 1)).astype(jnp.float32)
    b2 = jnp.transpose(params["b2"], (0, 2, 1)).astype(jnp.float32)

    for i in range(N):
        z = jnp.sum(grad * dB[i], axis=0, keepdims=True)
        u = u + bsde_driver(u, R, delta, v_h, v_l, gamma_h, gamma_l) * dt + z
        X = X + mu * X * dt + sigma * X * dB[i]
        if i < N - 1:
            h = jnp.maximum(
                jnp.dot(w1[i], X.astype(jnp.bfloat16),
                        preferred_element_type=jnp.float32) + b1[i], 0.0)
            grad = jnp.dot(w2[i], h.astype(jnp.bfloat16),
                           preferred_element_type=jnp.float32) + b2[i]
    g = jnp.min(X, axis=0)
    return g.reshape(B, 1), u.reshape(B, 1)


def init_params(key, N, d, H):
    """Deterministic parameter init matching the module's __init__ shapes."""
    k_rg, k_w1, k_w2, k_b1, k_b2 = jax.random.split(key, 5)
    return {
        # nn.Parameter(torch.ones([1]) * 45) -> stored as (1,1)
        "result": jnp.full((1, 1), 45.0, dtype=jnp.float32),
        # nn.Parameter(torch.rand([1, input_dim]))
        "result_grad": jax.random.uniform(k_rg, (1, d), dtype=jnp.float32),
        # TODO(synk): common.MLP architecture unavailable; using
        # Linear(d,H) -> ReLU -> Linear(H,d), N-1 independent per-step MLPs.
        "w1": jax.random.normal(k_w1, (N - 1, d, H), dtype=jnp.float32)
              * jnp.float32(1.0 / math.sqrt(d)),
        "b1": jax.random.uniform(k_b1, (N - 1, 1, H), jnp.float32, -0.1, 0.1),
        "w2": jax.random.normal(k_w2, (N - 1, H, d), dtype=jnp.float32)
              * jnp.float32(1.0 / math.sqrt(H)),
        "b2": jax.random.uniform(k_b2, (N - 1, 1, d), jnp.float32, -0.1, 0.1),
    }


if __name__ == "__main__":
    hp = dict(
        input_dim=16, batch_size=512, N=8, hidden=32,
        R=0.02, delta=2.0 / 3.0, v_h=50.0, v_l=70.0,
        gamma_h=0.2, gamma_l=0.02, mu=0.02, sigma=0.2,
    )
    key = jax.random.PRNGKey(0)
    k_param, k_x, k_noise = jax.random.split(key, 3)

    params = init_params(k_param, hp["N"], hp["input_dim"], hp["hidden"])
    # x is a (1, input_dim) row of initial prices (as implied by matmul(ones, x))
    x0 = 100.0 + jax.random.normal(k_x, (1, hp["input_dim"]), dtype=jnp.float32)

    t, T = 0.0, 1.0
    dt = (T - t) / hp["N"]
    dB = sample_brownian(k_noise, hp["N"], hp["input_dim"], hp["batch_size"], dt)

    g, u = deep_bsde_forward(t, x0, T, params, hp, dB)
    jax.block_until_ready((g, u))

    g_ref, u_ref = deep_bsde_reference(x0, params, hp, dB, dt)

    assert g.shape == (hp["batch_size"], 1) and u.shape == (hp["batch_size"], 1)
    assert bool(jnp.all(jnp.isfinite(g))) and bool(jnp.all(jnp.isfinite(u)))
    assert bool(jnp.allclose(g, g_ref, rtol=1e-3, atol=1e-2)), "g mismatch vs reference"
    assert bool(jnp.allclose(u, u_ref, rtol=1e-2, atol=0.5)), "u mismatch vs reference"
    print("KERNEL_OK")
</pallas_src>

<mosaic_0001>
module attributes {stable_mosaic.version = 11 : i64} {
  func.func @kernel(%arg0: i32, %arg1: memref<1x1xf32, #tpu.memory_space<smem>>, %arg2: memref<16x1xf32, #tpu.memory_space<vmem>>, %arg3: memref<16x1xf32, #tpu.memory_space<vmem>>, %arg4: memref<8x16x512xf32, #tpu.memory_space<vmem>>, %arg5: memref<7x32x17xbf16, #tpu.memory_space<vmem>>, %arg6: memref<7x16x33xbf16, #tpu.memory_space<vmem>>, %arg7: memref<1x512xf32, #tpu.memory_space<vmem>>, %arg8: memref<1x512xf32, #tpu.memory_space<vmem>>) attributes {dimension_semantics = [#tpu.dimension_semantics<parallel>], iteration_bounds = array<i64: 1>, scalar_prefetch = 0 : i64, scratch_operands = 0 : i64, tpu.core_type = #tpu.core_type<tc>, window_params = [{transform_indices = @transform_0, window_bounds = array<i64: 1, 1>}, {pipeline_mode = #tpu.pipeline_mode<synchronous>, transform_indices = @transform_1, window_bounds = array<i64: 16, 1>}, {pipeline_mode = #tpu.pipeline_mode<synchronous>, transform_indices = @transform_2, window_bounds = array<i64: 16, 1>}, {transform_indices = @transform_3, window_bounds = array<i64: 8, 16, 512>}, {pipeline_mode = #tpu.pipeline_mode<synchronous>, transform_indices = @transform_4, window_bounds = array<i64: 7, 32, 17>}, {pipeline_mode = #tpu.pipeline_mode<synchronous>, transform_indices = @transform_5, window_bounds = array<i64: 7, 16, 33>}, {transform_indices = @transform_6, window_bounds = array<i64: 1, 512>}, {transform_indices = @transform_7, window_bounds = array<i64: 1, 512>}]} {
    %c0 = arith.constant 0 : index
    %c0_0 = arith.constant 0 : index
    %0 = memref.load %arg1[%c0, %c0_0] : memref<1x1xf32, #tpu.memory_space<smem>>
    %1 = vector.broadcast %0 : f32 to vector<1x512xf32>
    %c0_1 = arith.constant 0 : index
    %c0_2 = arith.constant 0 : index
    %2 = vector.load %arg3[%c0_1, %c0_2] : memref<16x1xf32, #tpu.memory_space<vmem>>, vector<16x1xf32>
    %3 = vector.shape_cast %2 : vector<16x1xf32> to vector<16x1xf32>
    %4 = vector.broadcast %3 : vector<16x1xf32> to vector<16x512xf32>
    %c0_3 = arith.constant 0 : index
    %c0_4 = arith.constant 0 : index
    %5 = vector.load %arg2[%c0_3, %c0_4] : memref<16x1xf32, #tpu.memory_space<vmem>>, vector<16x1xf32>
    %6 = vector.shape_cast %5 : vector<16x1xf32> to vector<16x1xf32>
    %7 = vector.broadcast %6 : vector<16x1xf32> to vector<16x512xf32>
    %cst = arith.constant 1.000000e+00 : bf16
    %8 = vector.broadcast %cst : bf16 to vector<1x512xbf16>
    %c0_i32 = arith.constant 0 : i32
    %9 = arith.index_cast %c0_i32 : i32 to index
    %c0_5 = arith.constant 0 : index
    %c0_6 = arith.constant 0 : index
    %10 = vector.load %arg4[%9, %c0_5, %c0_6] : memref<8x16x512xf32, #tpu.memory_space<vmem>>, vector<1x16x512xf32>
    %11 = vector.shape_cast %10 : vector<1x16x512xf32> to vector<16x512xf32>
    %12 = arith.mulf %4, %11 : vector<16x512xf32>
    %cst_7 = arith.constant dense<0.000000e+00> : vector<512xf32>
    %13 = vector.multi_reduction <add>, %12, %cst_7 [0] : vector<16x512xf32> to vector<512xf32>
    %14 = vector.shape_cast %13 : vector<512xf32> to vector<1x512xf32>
    %cst_8 = arith.constant 5.000000e+01 : f32
    %15 = vector.broadcast %cst_8 : f32 to vector<1x512xf32>
    %16 = arith.cmpf olt, %1, %15 : vector<1x512xf32>
    %cst_9 = arith.constant 7.000000e+01 : f32
    %17 = vector.broadcast %cst_9 : f32 to vector<1x512xf32>
    %18 = arith.cmpf oge, %1, %17 : vector<1x512xf32>
    %cst_10 = arith.constant 5.000000e+01 : f32
    %19 = vector.broadcast %cst_10 : f32 to vector<1x512xf32>
    %20 = arith.subf %1, %19 : vector<1x512xf32>
    %cst_11 = arith.constant -0.00899999961 : f32
    %21 = vector.broadcast %cst_11 : f32 to vector<1x512xf32>
    %22 = arith.mulf %21, %20 : vector<1x512xf32>
    %cst_12 = arith.constant 2.000000e-01 : f32
    %23 = vector.broadcast %cst_12 : f32 to vector<1x512xf32>
    %24 = arith.addf %22, %23 : vector<1x512xf32>
    %cst_13 = arith.constant 2.000000e-02 : f32
    %25 = vector.broadcast %cst_13 : f32 to vector<1x512xf32>
    %26 = arith.select %18, %25, %24 : vector<1x512xi1>, vector<1x512xf32>
    %cst_14 = arith.constant 2.000000e-01 : f32
    %27 = vector.broadcast %cst_14 : f32 to vector<1x512xf32>
    %28 = arith.select %16, %27, %26 : vector<1x512xi1>, vector<1x512xf32>
    %cst_15 = arith.constant 0.333333343 : f32
    %29 = vector.broadcast %cst_15 : f32 to vector<1x512xf32>
    %30 = arith.mulf %29, %28 : vector<1x512xf32>
    %31 = arith.mulf %30, %1 : vector<1x512xf32>
    %cst_16 = arith.constant 2.000000e-02 : f32
    %32 = vector.broadcast %cst_16 : f32 to vector<1x512xf32>
    %33 = arith.mulf %32, %1 : vector<1x512xf32>
    %34 = arith.addf %31, %33 : vector<1x512xf32>
    %cst_17 = arith.constant 1.250000e-01 : f32
    %35 = vector.broadcast %cst_17 : f32 to vector<1x512xf32>
    %36 = arith.mulf %34, %35 : vector<1x512xf32>
    %37 = arith.addf %1, %36 : vector<1x512xf32>
    %38 = arith.addf %37, %14 : vector<1x512xf32>
    %cst_18 = arith.constant 2.000000e-02 : f32
    %39 = vector.broadcast %cst_18 : f32 to vector<16x512xf32>
    %40 = arith.mulf %39, %7 : vector<16x512xf32>
    %cst_19 = arith.constant 1.250000e-01 : f32
    %41 = vector.broadcast %cst_19 : f32 to vector<16x512xf32>
    %42 = arith.mulf %40, %41 : vector<16x512xf32>
    %43 = arith.addf %7, %42 : vector<16x512xf32>
    %cst_20 = arith.constant 2.000000e-01 : f32
    %44 = vector.broadcast %cst_20 : f32 to vector<16x512xf32>
    %45 = arith.mulf %44, %7 : vector<16x512xf32>
    %46 = arith.mulf %45, %11 : vector<16x512xf32>
    %47 = arith.addf %43, %46 : vector<16x512xf32>
    %48 = arith.truncf %47 : vector<16x512xf32> to vector<16x512xbf16>
    %49 = tpu.concatenate %48, %8 in 0 : vector<16x512xbf16>, vector<1x512xbf16> -> vector<17x512xbf16>
    %50 = arith.index_cast %c0_i32 : i32 to index
    %c0_21 = arith.constant 0 : index
    %c0_22 = arith.constant 0 : index
    %51 = vector.load %arg5[%50, %c0_21, %c0_22] : memref<7x32x17xbf16, #tpu.memory_space<vmem>>, vector<1x32x17xbf16>
    %52 = vector.shape_cast %51 : vector<1x32x17xbf16> to vector<32x17xbf16>
    %cst_23 = arith.constant dense<0.000000e+00> : vector<32x512xf32>
    %53 = tpu.matmul %52, %49, %cst_23 {dimension_numbers = #tpu.dot_dimension_numbers<[1], [0], [0], [1], [0, 0, 1, 1], [], []>} : vector<32x17xbf16>, vector<17x512xbf16>, vector<32x512xf32> -> vector<32x512xf32>
    %cst_24 = arith.constant 0.000000e+00 : f32
    %54 = vector.broadcast %cst_24 : f32 to vector<32x512xf32>
    %55 = arith.maximumf %53, %54 : vector<32x512xf32>
    %56 = arith.truncf %55 : vector<32x512xf32> to vector<32x512xbf16>
    %57 = tpu.concatenate %56, %8 in 0 : vector<32x512xbf16>, vector<1x512xbf16> -> vector<33x512xbf16>
    %58 = arith.index_cast %c0_i32 : i32 to index
    %c0_25 = arith.constant 0 : index
    %c0_26 = arith.constant 0 : index
    %59 = vector.load %arg6[%58, %c0_25, %c0_26] : memref<7x16x33xbf16, #tpu.memory_space<vmem>>, vector<1x16x33xbf16>
    %60 = vector.shape_cast %59 : vector<1x16x33xbf16> to vector<16x33xbf16>
    %cst_27 = arith.constant dense<0.000000e+00> : vector<16x512xf32>
    %61 = tpu.matmul %60, %57, %cst_27 {dimension_numbers = #tpu.dot_dimension_numbers<[1], [0], [0], [1], [0, 0, 1, 1], [], []>} : vector<16x33xbf16>, vector<33x512xbf16>, vector<16x512xf32> -> vector<16x512xf32>
    %c1_i32 = arith.constant 1 : i32
    %62 = arith.index_cast %c1_i32 : i32 to index
    %c0_28 = arith.constant 0 : index
    %c0_29 = arith.constant 0 : index
    %63 = vector.load %arg4[%62, %c0_28, %c0_29] : memref<8x16x512xf32, #tpu.memory_space<vmem>>, vector<1x16x512xf32>
    %64 = vector.shape_cast %63 : vector<1x16x512xf32> to vector<16x512xf32>
    %65 = arith.mulf %61, %64 : vector<16x512xf32>
    %cst_30 = arith.constant dense<0.000000e+00> : vector<512xf32>
    %66 = vector.multi_reduction <add>, %65, %cst_30 [0] : vector<16x512xf32> to vector<512xf32>
    %67 = vector.shape_cast %66 : vector<512xf32> to vector<1x512xf32>
    %cst_31 = arith.constant 5.000000e+01 : f32
    %68 = vector.broadcast %cst_31 : f32 to vector<1x512xf32>
    %69 = arith.cmpf olt, %38, %68 : vector<1x512xf32>
    %cst_32 = arith.constant 7.000000e+01 : f32
    %70 = vector.broadcast %cst_32 : f32 to vector<1x512xf32>
    %71 = arith.cmpf oge, %38, %70 : vector<1x512xf32>
    %cst_33 = arith.constant 5.000000e+01 : f32
    %72 = vector.broadcast %cst_33 : f32 to vector<1x512xf32>
    %73 = arith.subf %38, %72 : vector<1x512xf32>
    %cst_34 = arith.constant -0.00899999961 : f32
    %74 = vector.broadcast %cst_34 : f32 to vector<1x512xf32>
    %75 = arith.mulf %74, %73 : vector<1x512xf32>
    %cst_35 = arith.constant 2.000000e-01 : f32
    %76 = vector.broadcast %cst_35 : f32 to vector<1x512xf32>
    %77 = arith.addf %75, %76 : vector<1x512xf32>
    %cst_36 = arith.constant 2.000000e-02 : f32
    %78 = vector.broadcast %cst_36 : f32 to vector<1x512xf32>
    %79 = arith.select %71, %78, %77 : vector<1x512xi1>, vector<1x512xf32>
    %cst_37 = arith.constant 2.000000e-01 : f32
    %80 = vector.broadcast %cst_37 : f32 to vector<1x512xf32>
    %81 = arith.select %69, %80, %79 : vector<1x512xi1>, vector<1x512xf32>
    %cst_38 = arith.constant 0.333333343 : f32
    %82 = vector.broadcast %cst_38 : f32 to vector<1x512xf32>
    %83 = arith.mulf %82, %81 : vector<1x512xf32>
    %84 = arith.mulf %83, %38 : vector<1x512xf32>
    %cst_39 = arith.constant 2.000000e-02 : f32
    %85 = vector.broadcast %cst_39 : f32 to vector<1x512xf32>
    %86 = arith.mulf %85, %38 : vector<1x512xf32>
    %87 = arith.addf %84, %86 : vector<1x512xf32>
    %cst_40 = arith.constant 1.250000e-01 : f32
    %88 = vector.broadcast %cst_40 : f32 to vector<1x512xf32>
    %89 = arith.mulf %87, %88 : vector<1x512xf32>
    %90 = arith.addf %38, %89 : vector<1x512xf32>
    %91 = arith.addf %90, %67 : vector<1x512xf32>
    %cst_41 = arith.constant 2.000000e-02 : f32
    %92 = vector.broadcast %cst_41 : f32 to vector<16x512xf32>
    %93 = arith.mulf %92, %47 : vector<16x512xf32>
    %cst_42 = arith.constant 1.250000e-01 : f32
    %94 = vector.broadcast %cst_42 : f32 to vector<16x512xf32>
    %95 = arith.mulf %93, %94 : vector<16x512xf32>
    %96 = arith.addf %47, %95 : vector<16x512xf32>
    %cst_43 = arith.constant 2.000000e-01 : f32
    %97 = vector.broadcast %cst_43 : f32 to vector<16x512xf32>
    %98 = arith.mulf %97, %47 : vector<16x512xf32>
    %99 = arith.mulf %98, %64 : vector<16x512xf32>
    %100 = arith.addf %96, %99 : vector<16x512xf32>
    %101 = arith.truncf %100 : vector<16x512xf32> to vector<16x512xbf16>
    %102 = tpu.concatenate %101, %8 in 0 : vector<16x512xbf16>, vector<1x512xbf16> -> vector<17x512xbf16>
    %103 = arith.index_cast %c1_i32 : i32 to index
    %c0_44 = arith.constant 0 : index
    %c0_45 = arith.constant 0 : index
    %104 = vector.load %arg5[%103, %c0_44, %c0_45] : memref<7x32x17xbf16, #tpu.memory_space<vmem>>, vector<1x32x17xbf16>
    %105 = vector.shape_cast %104 : vector<1x32x17xbf16> to vector<32x17xbf16>
    %cst_46 = arith.constant dense<0.000000e+00> : vector<32x512xf32>
    %106 = tpu.matmul %105, %102, %cst_46 {dimension_numbers = #tpu.dot_dimension_numbers<[1], [0], [0], [1], [0, 0, 1, 1], [], []>} : vector<32x17xbf16>, vector<17x512xbf16>, vector<32x512xf32> -> vector<32x512xf32>
    %cst_47 = arith.constant 0.000000e+00 : f32
    %107 = vector.broadcast %cst_47 : f32 to vector<32x512xf32>
    %108 = arith.maximumf %106, %107 : vector<32x512xf32>
    %109 = arith.truncf %108 : vector<32x512xf32> to vector<32x512xbf16>
    %110 = tpu.concatenate %109, %8 in 0 : vector<32x512xbf16>, vector<1x512xbf16> -> vector<33x512xbf16>
    %111 = arith.index_cast %c1_i32 : i32 to index
    %c0_48 = arith.constant 0 : index
    %c0_49 = arith.constant 0 : index
    %112 = vector.load %arg6[%111, %c0_48, %c0_49] : memref<7x16x33xbf16, #tpu.memory_space<vmem>>, vector<1x16x33xbf16>
    %113 = vector.shape_cast %112 : vector<1x16x33xbf16> to vector<16x33xbf16>
    %cst_50 = arith.constant dense<0.000000e+00> : vector<16x512xf32>
    %114 = tpu.matmul %113, %110, %cst_50 {dimension_numbers = #tpu.dot_dimension_numbers<[1], [0], [0], [1], [0, 0, 1, 1], [], []>} : vector<16x33xbf16>, vector<33x512xbf16>, vector<16x512xf32> -> vector<16x512xf32>
    %c2_i32 = arith.constant 2 : i32
    %115 = arith.index_cast %c2_i32 : i32 to index
    %c0_51 = arith.constant 0 : index
    %c0_52 = arith.constant 0 : index
    %116 = vector.load %arg4[%115, %c0_51, %c0_52] : memref<8x16x512xf32, #tpu.memory_space<vmem>>, vector<1x16x512xf32>
    %117 = vector.shape_cast %116 : vector<1x16x512xf32> to vector<16x512xf32>
    %118 = arith.mulf %114, %117 : vector<16x512xf32>
    %cst_53 = arith.constant dense<0.000000e+00> : vector<512xf32>
    %119 = vector.multi_reduction <add>, %118, %cst_53 [0] : vector<16x512xf32> to vector<512xf32>
    %120 = vector.shape_cast %119 : vector<512xf32> to vector<1x512xf32>
    %cst_54 = arith.constant 5.000000e+01 : f32
    %121 = vector.broadcast %cst_54 : f32 to vector<1x512xf32>
    %122 = arith.cmpf olt, %91, %121 : vector<1x512xf32>
    %cst_55 = arith.constant 7.000000e+01 : f32
    %123 = vector.broadcast %cst_55 : f32 to vector<1x512xf32>
    %124 = arith.cmpf oge, %91, %123 : vector<1x512xf32>
    %cst_56 = arith.constant 5.000000e+01 : f32
    %125 = vector.broadcast %cst_56 : f32 to vector<1x512xf32>
    %126 = arith.subf %91, %125 : vector<1x512xf32>
    %cst_57 = arith.constant -0.00899999961 : f32
    %127 = vector.broadcast %cst_57 : f32 to vector<1x512xf32>
    %128 = arith.mulf %127, %126 : vector<1x512xf32>
    %cst_58 = arith.constant 2.000000e-01 : f32
    %129 = vector.broadcast %cst_58 : f32 to vector<1x512xf32>
    %130 = arith.addf %128, %129 : vector<1x512xf32>
    %cst_59 = arith.constant 2.000000e-02 : f32
    %131 = vector.broadcast %cst_59 : f32 to vector<1x512xf32>
    %132 = arith.select %124, %131, %130 : vector<1x512xi1>, vector<1x512xf32>
    %cst_60 = arith.constant 2.000000e-01 : f32
    %133 = vector.broadcast %cst_60 : f32 to vector<1x512xf32>
    %134 = arith.select %122, %133, %132 : vector<1x512xi1>, vector<1x512xf32>
    %cst_61 = arith.constant 0.333333343 : f32
    %135 = vector.broadcast %cst_61 : f32 to vector<1x512xf32>
    %136 = arith.mulf %135, %134 : vector<1x512xf32>
    %137 = arith.mulf %136, %91 : vector<1x512xf32>
    %cst_62 = arith.constant 2.000000e-02 : f32
    %138 = vector.broadcast %cst_62 : f32 to vector<1x512xf32>
    %139 = arith.mulf %138, %91 : vector<1x512xf32>
    %140 = arith.addf %137, %139 : vector<1x512xf32>
    %cst_63 = arith.constant 1.250000e-01 : f32
    %141 = vector.broadcast %cst_63 : f32 to vector<1x512xf32>
    %142 = arith.mulf %140, %141 : vector<1x512xf32>
    %143 = arith.addf %91, %142 : vector<1x512xf32>
    %144 = arith.addf %143, %120 : vector<1x512xf32>
    %cst_64 = arith.constant 2.000000e-02 : f32
    %145 = vector.broadcast %cst_64 : f32 to vector<16x512xf32>
    %146 = arith.mulf %145, %100 : vector<16x512xf32>
    %cst_65 = arith.constant 1.250000e-01 : f32
    %147 = vector.broadcast %cst_65 : f32 to vector<16x512xf32>
    %148 = arith.mulf %146, %147 : vector<16x512xf32>
    %149 = arith.addf %100, %148 : vector<16x512xf32>
    %cst_66 = arith.constant 2.000000e-01 : f32
    %150 = vector.broadcast %cst_66 : f32 to vector<16x512xf32>
    %151 = arith.mulf %150, %100 : vector<16x512xf32>
    %152 = arith.mulf %151, %117 : vector<16x512xf32>
    %153 = arith.addf %149, %152 : vector<16x512xf32>
    %154 = arith.truncf %153 : vector<16x512xf32> to vector<16x512xbf16>
    %155 = tpu.concatenate %154, %8 in 0 : vector<16x512xbf16>, vector<1x512xbf16> -> vector<17x512xbf16>
    %156 = arith.index_cast %c2_i32 : i32 to index
    %c0_67 = arith.constant 0 : index
    %c0_68 = arith.constant 0 : index
    %157 = vector.load %arg5[%156, %c0_67, %c0_68] : memref<7x32x17xbf16, #tpu.memory_space<vmem>>, vector<1x32x17xbf16>
    %158 = vector.shape_cast %157 : vector<1x32x17xbf16> to vector<32x17xbf16>
    %cst_69 = arith.constant dense<0.000000e+00> : vector<32x512xf32>
    %159 = tpu.matmul %158, %155, %cst_69 {dimension_numbers = #tpu.dot_dimension_numbers<[1], [0], [0], [1], [0, 0, 1, 1], [], []>} : vector<32x17xbf16>, vector<17x512xbf16>, vector<32x512xf32> -> vector<32x512xf32>
    %cst_70 = arith.constant 0.000000e+00 : f32
    %160 = vector.broadcast %cst_70 : f32 to vector<32x512xf32>
    %161 = arith.maximumf %159, %160 : vector<32x512xf32>
    %162 = arith.truncf %161 : vector<32x512xf32> to vector<32x512xbf16>
    %163 = tpu.concatenate %162, %8 in 0 : vector<32x512xbf16>, vector<1x512xbf16> -> vector<33x512xbf16>
    %164 = arith.index_cast %c2_i32 : i32 to index
    %c0_71 = arith.constant 0 : index
    %c0_72 = arith.constant 0 : index
    %165 = vector.load %arg6[%164, %c0_71, %c0_72] : memref<7x16x33xbf16, #tpu.memory_space<vmem>>, vector<1x16x33xbf16>
    %166 = vector.shape_cast %165 : vector<1x16x33xbf16> to vector<16x33xbf16>
    %cst_73 = arith.constant dense<0.000000e+00> : vector<16x512xf32>
    %167 = tpu.matmul %166, %163, %cst_73 {dimension_numbers = #tpu.dot_dimension_numbers<[1], [0], [0], [1], [0, 0, 1, 1], [], []>} : vector<16x33xbf16>, vector<33x512xbf16>, vector<16x512xf32> -> vector<16x512xf32>
    %c3_i32 = arith.constant 3 : i32
    %168 = arith.index_cast %c3_i32 : i32 to index
    %c0_74 = arith.constant 0 : index
    %c0_75 = arith.constant 0 : index
    %169 = vector.load %arg4[%168, %c0_74, %c0_75] : memref<8x16x512xf32, #tpu.memory_space<vmem>>, vector<1x16x512xf32>
    %170 = vector.shape_cast %169 : vector<1x16x512xf32> to vector<16x512xf32>
    %171 = arith.mulf %167, %170 : vector<16x512xf32>
    %cst_76 = arith.constant dense<0.000000e+00> : vector<512xf32>
    %172 = vector.multi_reduction <add>, %171, %cst_76 [0] : vector<16x512xf32> to vector<512xf32>
    %173 = vector.shape_cast %172 : vector<512xf32> to vector<1x512xf32>
    %cst_77 = arith.constant 5.000000e+01 : f32
    %174 = vector.broadcast %cst_77 : f32 to vector<1x512xf32>
    %175 = arith.cmpf olt, %144, %174 : vector<1x512xf32>
    %cst_78 = arith.constant 7.000000e+01 : f32
    %176 = vector.broadcast %cst_78 : f32 to vector<1x512xf32>
    %177 = arith.cmpf oge, %144, %176 : vector<1x512xf32>
    %cst_79 = arith.constant 5.000000e+01 : f32
    %178 = vector.broadcast %cst_79 : f32 to vector<1x512xf32>
    %179 = arith.subf %144, %178 : vector<1x512xf32>
    %cst_80 = arith.constant -0.00899999961 : f32
    %180 = vector.broadcast %cst_80 : f32 to vector<1x512xf32>
    %181 = arith.mulf %180, %179 : vector<1x512xf32>
    %cst_81 = arith.constant 2.000000e-01 : f32
    %182 = vector.broadcast %cst_81 : f32 to vector<1x512xf32>
    %183 = arith.addf %181, %182 : vector<1x512xf32>
    %cst_82 = arith.constant 2.000000e-02 : f32
    %184 = vector.broadcast %cst_82 : f32 to vector<1x512xf32>
    %185 = arith.select %177, %184, %183 : vector<1x512xi1>, vector<1x512xf32>
    %cst_83 = arith.constant 2.000000e-01 : f32
    %186 = vector.broadcast %cst_83 : f32 to vector<1x512xf32>
    %187 = arith.select %175, %186, %185 : vector<1x512xi1>, vector<1x512xf32>
    %cst_84 = arith.constant 0.333333343 : f32
    %188 = vector.broadcast %cst_84 : f32 to vector<1x512xf32>
    %189 = arith.mulf %188, %187 : vector<1x512xf32>
    %190 = arith.mulf %189, %144 : vector<1x512xf32>
    %cst_85 = arith.constant 2.000000e-02 : f32
    %191 = vector.broadcast %cst_85 : f32 to vector<1x512xf32>
    %192 = arith.mulf %191, %144 : vector<1x512xf32>
    %193 = arith.addf %190, %192 : vector<1x512xf32>
    %cst_86 = arith.constant 1.250000e-01 : f32
    %194 = vector.broadcast %cst_86 : f32 to vector<1x512xf32>
    %195 = arith.mulf %193, %194 : vector<1x512xf32>
    %196 = arith.addf %144, %195 : vector<1x512xf32>
    %197 = arith.addf %196, %173 : vector<1x512xf32>
    %cst_87 = arith.constant 2.000000e-02 : f32
    %198 = vector.broadcast %cst_87 : f32 to vector<16x512xf32>
    %199 = arith.mulf %198, %153 : vector<16x512xf32>
    %cst_88 = arith.constant 1.250000e-01 : f32
    %200 = vector.broadcast %cst_88 : f32 to vector<16x512xf32>
    %201 = arith.mulf %199, %200 : vector<16x512xf32>
    %202 = arith.addf %153, %201 : vector<16x512xf32>
    %cst_89 = arith.constant 2.000000e-01 : f32
    %203 = vector.broadcast %cst_89 : f32 to vector<16x512xf32>
    %204 = arith.mulf %203, %153 : vector<16x512xf32>
    %205 = arith.mulf %204, %170 : vector<16x512xf32>
    %206 = arith.addf %202, %205 : vector<16x512xf32>
    %207 = arith.truncf %206 : vector<16x512xf32> to vector<16x512xbf16>
    %208 = tpu.concatenate %207, %8 in 0 : vector<16x512xbf16>, vector<1x512xbf16> -> vector<17x512xbf16>
    %209 = arith.index_cast %c3_i32 : i32 to index
    %c0_90 = arith.constant 0 : index
    %c0_91 = arith.constant 0 : index
    %210 = vector.load %arg5[%209, %c0_90, %c0_91] : memref<7x32x17xbf16, #tpu.memory_space<vmem>>, vector<1x32x17xbf16>
    %211 = vector.shape_cast %210 : vector<1x32x17xbf16> to vector<32x17xbf16>
    %cst_92 = arith.constant dense<0.000000e+00> : vector<32x512xf32>
    %212 = tpu.matmul %211, %208, %cst_92 {dimension_numbers = #tpu.dot_dimension_numbers<[1], [0], [0], [1], [0, 0, 1, 1], [], []>} : vector<32x17xbf16>, vector<17x512xbf16>, vector<32x512xf32> -> vector<32x512xf32>
    %cst_93 = arith.constant 0.000000e+00 : f32
    %213 = vector.broadcast %cst_93 : f32 to vector<32x512xf32>
    %214 = arith.maximumf %212, %213 : vector<32x512xf32>
    %215 = arith.truncf %214 : vector<32x512xf32> to vector<32x512xbf16>
    %216 = tpu.concatenate %215, %8 in 0 : vector<32x512xbf16>, vector<1x512xbf16> -> vector<33x512xbf16>
    %217 = arith.index_cast %c3_i32 : i32 to index
    %c0_94 = arith.constant 0 : index
    %c0_95 = arith.constant 0 : index
    %218 = vector.load %arg6[%217, %c0_94, %c0_95] : memref<7x16x33xbf16, #tpu.memory_space<vmem>>, vector<1x16x33xbf16>
    %219 = vector.shape_cast %218 : vector<1x16x33xbf16> to vector<16x33xbf16>
    %cst_96 = arith.constant dense<0.000000e+00> : vector<16x512xf32>
    %220 = tpu.matmul %219, %216, %cst_96 {dimension_numbers = #tpu.dot_dimension_numbers<[1], [0], [0], [1], [0, 0, 1, 1], [], []>} : vector<16x33xbf16>, vector<33x512xbf16>, vector<16x512xf32> -> vector<16x512xf32>
    %c4_i32 = arith.constant 4 : i32
    %221 = arith.index_cast %c4_i32 : i32 to index
    %c0_97 = arith.constant 0 : index
    %c0_98 = arith.constant 0 : index
    %222 = vector.load %arg4[%221, %c0_97, %c0_98] : memref<8x16x512xf32, #tpu.memory_space<vmem>>, vector<1x16x512xf32>
    %223 = vector.shape_cast %222 : vector<1x16x512xf32> to vector<16x512xf32>
    %224 = arith.mulf %220, %223 : vector<16x512xf32>
    %cst_99 = arith.constant dense<0.000000e+00> : vector<512xf32>
    %225 = vector.multi_reduction <add>, %224, %cst_99 [0] : vector<16x512xf32> to vector<512xf32>
    %226 = vector.shape_cast %225 : vector<512xf32> to vector<1x512xf32>
    %cst_100 = arith.constant 5.000000e+01 : f32
    %227 = vector.broadcast %cst_100 : f32 to vector<1x512xf32>
    %228 = arith.cmpf olt, %197, %227 : vector<1x512xf32>
    %cst_101 = arith.constant 7.000000e+01 : f32
    %229 = vector.broadcast %cst_101 : f32 to vector<1x512xf32>
    %230 = arith.cmpf oge, %197, %229 : vector<1x512xf32>
    %cst_102 = arith.constant 5.000000e+01 : f32
    %231 = vector.broadcast %cst_102 : f32 to vector<1x512xf32>
    %232 = arith.subf %197, %231 : vector<1x512xf32>
    %cst_103 = arith.constant -0.00899999961 : f32
    %233 = vector.broadcast %cst_103 : f32 to vector<1x512xf32>
    %234 = arith.mulf %233, %232 : vector<1x512xf32>
    %cst_104 = arith.constant 2.000000e-01 : f32
    %235 = vector.broadcast %cst_104 : f32 to vector<1x512xf32>
    %236 = arith.addf %234, %235 : vector<1x512xf32>
    %cst_105 = arith.constant 2.000000e-02 : f32
    %237 = vector.broadcast %cst_105 : f32 to vector<1x512xf32>
    %238 = arith.select %230, %237, %236 : vector<1x512xi1>, vector<1x512xf32>
    %cst_106 = arith.constant 2.000000e-01 : f32
    %239 = vector.broadcast %cst_106 : f32 to vector<1x512xf32>
    %240 = arith.select %228, %239, %238 : vector<1x512xi1>, vector<1x512xf32>
    %cst_107 = arith.constant 0.333333343 : f32
    %241 = vector.broadcast %cst_107 : f32 to vector<1x512xf32>
    %242 = arith.mulf %241, %240 : vector<1x512xf32>
    %243 = arith.mulf %242, %197 : vector<1x512xf32>
    %cst_108 = arith.constant 2.000000e-02 : f32
    %244 = vector.broadcast %cst_108 : f32 to vector<1x512xf32>
    %245 = arith.mulf %244, %197 : vector<1x512xf32>
    %246 = arith.addf %243, %245 : vector<1x512xf32>
    %cst_109 = arith.constant 1.250000e-01 : f32
    %247 = vector.broadcast %cst_109 : f32 to vector<1x512xf32>
    %248 = arith.mulf %246, %247 : vector<1x512xf32>
    %249 = arith.addf %197, %248 : vector<1x512xf32>
    %250 = arith.addf %249, %226 : vector<1x512xf32>
    %cst_110 = arith.constant 2.000000e-02 : f32
    %251 = vector.broadcast %cst_110 : f32 to vector<16x512xf32>
    %252 = arith.mulf %251, %206 : vector<16x512xf32>
    %cst_111 = arith.constant 1.250000e-01 : f32
    %253 = vector.broadcast %cst_111 : f32 to vector<16x512xf32>
    %254 = arith.mulf %252, %253 : vector<16x512xf32>
    %255 = arith.addf %206, %254 : vector<16x512xf32>
    %cst_112 = arith.constant 2.000000e-01 : f32
    %256 = vector.broadcast %cst_112 : f32 to vector<16x512xf32>
    %257 = arith.mulf %256, %206 : vector<16x512xf32>
    %258 = arith.mulf %257, %223 : vector<16x512xf32>
    %259 = arith.addf %255, %258 : vector<16x512xf32>
    %260 = arith.truncf %259 : vector<16x512xf32> to vector<16x512xbf16>
    %261 = tpu.concatenate %260, %8 in 0 : vector<16x512xbf16>, vector<1x512xbf16> -> vector<17x512xbf16>
    %262 = arith.index_cast %c4_i32 : i32 to index
    %c0_113 = arith.constant 0 : index
    %c0_114 = arith.constant 0 : index
    %263 = vector.load %arg5[%262, %c0_113, %c0_114] : memref<7x32x17xbf16, #tpu.memory_space<vmem>>, vector<1x32x17xbf16>
    %264 = vector.shape_cast %263 : vector<1x32x17xbf16> to vector<32x17xbf16>
    %cst_115 = arith.constant dense<0.000000e+00> : vector<32x512xf32>
    %265 = tpu.matmul %264, %261, %cst_115 {dimension_numbers = #tpu.dot_dimension_numbers<[1], [0], [0], [1], [0, 0, 1, 1], [], []>} : vector<32x17xbf16>, vector<17x512xbf16>, vector<32x512xf32> -> vector<32x512xf32>
    %cst_116 = arith.constant 0.000000e+00 : f32
    %266 = vector.broadcast %cst_116 : f32 to vector<32x512xf32>
    %267 = arith.maximumf %265, %266 : vector<32x512xf32>
    %268 = arith.truncf %267 : vector<32x512xf32> to vector<32x512xbf16>
    %269 = tpu.concatenate %268, %8 in 0 : vector<32x512xbf16>, vector<1x512xbf16> -> vector<33x512xbf16>
    %270 = arith.index_cast %c4_i32 : i32 to index
    %c0_117 = arith.constant 0 : index
    %c0_118 = arith.constant 0 : index
    %271 = vector.load %arg6[%270, %c0_117, %c0_118] : memref<7x16x33xbf16, #tpu.memory_space<vmem>>, vector<1x16x33xbf16>
    %272 = vector.shape_cast %271 : vector<1x16x33xbf16> to vector<16x33xbf16>
    %cst_119 = arith.constant dense<0.000000e+00> : vector<16x512xf32>
    %273 = tpu.matmul %272, %269, %cst_119 {dimension_numbers = #tpu.dot_dimension_numbers<[1], [0], [0], [1], [0, 0, 1, 1], [], []>} : vector<16x33xbf16>, vector<33x512xbf16>, vector<16x512xf32> -> vector<16x512xf32>
    %c5_i32 = arith.constant 5 : i32
    %274 = arith.index_cast %c5_i32 : i32 to index
    %c0_120 = arith.constant 0 : index
    %c0_121 = arith.constant 0 : index
    %275 = vector.load %arg4[%274, %c0_120, %c0_121] : memref<8x16x512xf32, #tpu.memory_space<vmem>>, vector<1x16x512xf32>
    %276 = vector.shape_cast %275 : vector<1x16x512xf32> to vector<16x512xf32>
    %277 = arith.mulf %273, %276 : vector<16x512xf32>
    %cst_122 = arith.constant dense<0.000000e+00> : vector<512xf32>
    %278 = vector.multi_reduction <add>, %277, %cst_122 [0] : vector<16x512xf32> to vector<512xf32>
    %279 = vector.shape_cast %278 : vector<512xf32> to vector<1x512xf32>
    %cst_123 = arith.constant 5.000000e+01 : f32
    %280 = vector.broadcast %cst_123 : f32 to vector<1x512xf32>
    %281 = arith.cmpf olt, %250, %280 : vector<1x512xf32>
    %cst_124 = arith.constant 7.000000e+01 : f32
    %282 = vector.broadcast %cst_124 : f32 to vector<1x512xf32>
    %283 = arith.cmpf oge, %250, %282 : vector<1x512xf32>
    %cst_125 = arith.constant 5.000000e+01 : f32
    %284 = vector.broadcast %cst_125 : f32 to vector<1x512xf32>
    %285 = arith.subf %250, %284 : vector<1x512xf32>
    %cst_126 = arith.constant -0.00899999961 : f32
    %286 = vector.broadcast %cst_126 : f32 to vector<1x512xf32>
    %287 = arith.mulf %286, %285 : vector<1x512xf32>
    %cst_127 = arith.constant 2.000000e-01 : f32
    %288 = vector.broadcast %cst_127 : f32 to vector<1x512xf32>
    %289 = arith.addf %287, %288 : vector<1x512xf32>
    %cst_128 = arith.constant 2.000000e-02 : f32
    %290 = vector.broadcast %cst_128 : f32 to vector<1x512xf32>
    %291 = arith.select %283, %290, %289 : vector<1x512xi1>, vector<1x512xf32>
    %cst_129 = arith.constant 2.000000e-01 : f32
    %292 = vector.broadcast %cst_129 : f32 to vector<1x512xf32>
    %293 = arith.select %281, %292, %291 : vector<1x512xi1>, vector<1x512xf32>
    %cst_130 = arith.constant 0.333333343 : f32
    %294 = vector.broadcast %cst_130 : f32 to vector<1x512xf32>
    %295 = arith.mulf %294, %293 : vector<1x512xf32>
    %296 = arith.mulf %295, %250 : vector<1x512xf32>
    %cst_131 = arith.constant 2.000000e-02 : f32
    %297 = vector.broadcast %cst_131 : f32 to vector<1x512xf32>
    %298 = arith.mulf %297, %250 : vector<1x512xf32>
    %299 = arith.addf %296, %298 : vector<1x512xf32>
    %cst_132 = arith.constant 1.250000e-01 : f32
    %300 = vector.broadcast %cst_132 : f32 to vector<1x512xf32>
    %301 = arith.mulf %299, %300 : vector<1x512xf32>
    %302 = arith.addf %250, %301 : vector<1x512xf32>
    %303 = arith.addf %302, %279 : vector<1x512xf32>
    %cst_133 = arith.constant 2.000000e-02 : f32
    %304 = vector.broadcast %cst_133 : f32 to vector<16x512xf32>
    %305 = arith.mulf %304, %259 : vector<16x512xf32>
    %cst_134 = arith.constant 1.250000e-01 : f32
    %306 = vector.broadcast %cst_134 : f32 to vector<16x512xf32>
    %307 = arith.mulf %305, %306 : vector<16x512xf32>
    %308 = arith.addf %259, %307 : vector<16x512xf32>
    %cst_135 = arith.constant 2.000000e-01 : f32
    %309 = vector.broadcast %cst_135 : f32 to vector<16x512xf32>
    %310 = arith.mulf %309, %259 : vector<16x512xf32>
    %311 = arith.mulf %310, %276 : vector<16x512xf32>
    %312 = arith.addf %308, %311 : vector<16x512xf32>
    %313 = arith.truncf %312 : vector<16x512xf32> to vector<16x512xbf16>
    %314 = tpu.concatenate %313, %8 in 0 : vector<16x512xbf16>, vector<1x512xbf16> -> vector<17x512xbf16>
    %315 = arith.index_cast %c5_i32 : i32 to index
    %c0_136 = arith.constant 0 : index
    %c0_137 = arith.constant 0 : index
    %316 = vector.load %arg5[%315, %c0_136, %c0_137] : memref<7x32x17xbf16, #tpu.memory_space<vmem>>, vector<1x32x17xbf16>
    %317 = vector.shape_cast %316 : vector<1x32x17xbf16> to vector<32x17xbf16>
    %cst_138 = arith.constant dense<0.000000e+00> : vector<32x512xf32>
    %318 = tpu.matmul %317, %314, %cst_138 {dimension_numbers = #tpu.dot_dimension_numbers<[1], [0], [0], [1], [0, 0, 1, 1], [], []>} : vector<32x17xbf16>, vector<17x512xbf16>, vector<32x512xf32> -> vector<32x512xf32>
    %cst_139 = arith.constant 0.000000e+00 : f32
    %319 = vector.broadcast %cst_139 : f32 to vector<32x512xf32>
    %320 = arith.maximumf %318, %319 : vector<32x512xf32>
    %321 = arith.truncf %320 : vector<32x512xf32> to vector<32x512xbf16>
    %322 = tpu.concatenate %321, %8 in 0 : vector<32x512xbf16>, vector<1x512xbf16> -> vector<33x512xbf16>
    %323 = arith.index_cast %c5_i32 : i32 to index
    %c0_140 = arith.constant 0 : index
    %c0_141 = arith.constant 0 : index
    %324 = vector.load %arg6[%323, %c0_140, %c0_141] : memref<7x16x33xbf16, #tpu.memory_space<vmem>>, vector<1x16x33xbf16>
    %325 = vector.shape_cast %324 : vector<1x16x33xbf16> to vector<16x33xbf16>
    %cst_142 = arith.constant dense<0.000000e+00> : vector<16x512xf32>
    %326 = tpu.matmul %325, %322, %cst_142 {dimension_numbers = #tpu.dot_dimension_numbers<[1], [0], [0], [1], [0, 0, 1, 1], [], []>} : vector<16x33xbf16>, vector<33x512xbf16>, vector<16x512xf32> -> vector<16x512xf32>
    %c6_i32 = arith.constant 6 : i32
    %327 = arith.index_cast %c6_i32 : i32 to index
    %c0_143 = arith.constant 0 : index
    %c0_144 = arith.constant 0 : index
    %328 = vector.load %arg4[%327, %c0_143, %c0_144] : memref<8x16x512xf32, #tpu.memory_space<vmem>>, vector<1x16x512xf32>
    %329 = vector.shape_cast %328 : vector<1x16x512xf32> to vector<16x512xf32>
    %330 = arith.mulf %326, %329 : vector<16x512xf32>
    %cst_145 = arith.constant dense<0.000000e+00> : vector<512xf32>
    %331 = vector.multi_reduction <add>, %330, %cst_145 [0] : vector<16x512xf32> to vector<512xf32>
    %332 = vector.shape_cast %331 : vector<512xf32> to vector<1x512xf32>
    %cst_146 = arith.constant 5.000000e+01 : f32
    %333 = vector.broadcast %cst_146 : f32 to vector<1x512xf32>
    %334 = arith.cmpf olt, %303, %333 : vector<1x512xf32>
    %cst_147 = arith.constant 7.000000e+01 : f32
    %335 = vector.broadcast %cst_147 : f32 to vector<1x512xf32>
    %336 = arith.cmpf oge, %303, %335 : vector<1x512xf32>
    %cst_148 = arith.constant 5.000000e+01 : f32
    %337 = vector.broadcast %cst_148 : f32 to vector<1x512xf32>
    %338 = arith.subf %303, %337 : vector<1x512xf32>
    %cst_149 = arith.constant -0.00899999961 : f32
    %339 = vector.broadcast %cst_149 : f32 to vector<1x512xf32>
    %340 = arith.mulf %339, %338 : vector<1x512xf32>
    %cst_150 = arith.constant 2.000000e-01 : f32
    %341 = vector.broadcast %cst_150 : f32 to vector<1x512xf32>
    %342 = arith.addf %340, %341 : vector<1x512xf32>
    %cst_151 = arith.constant 2.000000e-02 : f32
    %343 = vector.broadcast %cst_151 : f32 to vector<1x512xf32>
    %344 = arith.select %336, %343, %342 : vector<1x512xi1>, vector<1x512xf32>
    %cst_152 = arith.constant 2.000000e-01 : f32
    %345 = vector.broadcast %cst_152 : f32 to vector<1x512xf32>
    %346 = arith.select %334, %345, %344 : vector<1x512xi1>, vector<1x512xf32>
    %cst_153 = arith.constant 0.333333343 : f32
    %347 = vector.broadcast %cst_153 : f32 to vector<1x512xf32>
    %348 = arith.mulf %347, %346 : vector<1x512xf32>
    %349 = arith.mulf %348, %303 : vector<1x512xf32>
    %cst_154 = arith.constant 2.000000e-02 : f32
    %350 = vector.broadcast %cst_154 : f32 to vector<1x512xf32>
    %351 = arith.mulf %350, %303 : vector<1x512xf32>
    %352 = arith.addf %349, %351 : vector<1x512xf32>
    %cst_155 = arith.constant 1.250000e-01 : f32
    %353 = vector.broadcast %cst_155 : f32 to vector<1x512xf32>
    %354 = arith.mulf %352, %353 : vector<1x512xf32>
    %355 = arith.addf %303, %354 : vector<1x512xf32>
    %356 = arith.addf %355, %332 : vector<1x512xf32>
    %cst_156 = arith.constant 2.000000e-02 : f32
    %357 = vector.broadcast %cst_156 : f32 to vector<16x512xf32>
    %358 = arith.mulf %357, %312 : vector<16x512xf32>
    %cst_157 = arith.constant 1.250000e-01 : f32
    %359 = vector.broadcast %cst_157 : f32 to vector<16x512xf32>
    %360 = arith.mulf %358, %359 : vector<16x512xf32>
    %361 = arith.addf %312, %360 : vector<16x512xf32>
    %cst_158 = arith.constant 2.000000e-01 : f32
    %362 = vector.broadcast %cst_158 : f32 to vector<16x512xf32>
    %363 = arith.mulf %362, %312 : vector<16x512xf32>
    %364 = arith.mulf %363, %329 : vector<16x512xf32>
    %365 = arith.addf %361, %364 : vector<16x512xf32>
    %366 = arith.truncf %365 : vector<16x512xf32> to vector<16x512xbf16>
    %367 = tpu.concatenate %366, %8 in 0 : vector<16x512xbf16>, vector<1x512xbf16> -> vector<17x512xbf16>
    %368 = arith.index_cast %c6_i32 : i32 to index
    %c0_159 = arith.constant 0 : index
    %c0_160 = arith.constant 0 : index
    %369 = vector.load %arg5[%368, %c0_159, %c0_160] : memref<7x32x17xbf16, #tpu.memory_space<vmem>>, vector<1x32x17xbf16>
    %370 = vector.shape_cast %369 : vector<1x32x17xbf16> to vector<32x17xbf16>
    %cst_161 = arith.constant dense<0.000000e+00> : vector<32x512xf32>
    %371 = tpu.matmul %370, %367, %cst_161 {dimension_numbers = #tpu.dot_dimension_numbers<[1], [0], [0], [1], [0, 0, 1, 1], [], []>} : vector<32x17xbf16>, vector<17x512xbf16>, vector<32x512xf32> -> vector<32x512xf32>
    %cst_162 = arith.constant 0.000000e+00 : f32
    %372 = vector.broadcast %cst_162 : f32 to vector<32x512xf32>
    %373 = arith.maximumf %371, %372 : vector<32x512xf32>
    %374 = arith.truncf %373 : vector<32x512xf32> to vector<32x512xbf16>
    %375 = tpu.concatenate %374, %8 in 0 : vector<32x512xbf16>, vector<1x512xbf16> -> vector<33x512xbf16>
    %376 = arith.index_cast %c6_i32 : i32 to index
    %c0_163 = arith.constant 0 : index
    %c0_164 = arith.constant 0 : index
    %377 = vector.load %arg6[%376, %c0_163, %c0_164] : memref<7x16x33xbf16, #tpu.memory_space<vmem>>, vector<1x16x33xbf16>
    %378 = vector.shape_cast %377 : vector<1x16x33xbf16> to vector<16x33xbf16>
    %cst_165 = arith.constant dense<0.000000e+00> : vector<16x512xf32>
    %379 = tpu.matmul %378, %375, %cst_165 {dimension_numbers = #tpu.dot_dimension_numbers<[1], [0], [0], [1], [0, 0, 1, 1], [], []>} : vector<16x33xbf16>, vector<33x512xbf16>, vector<16x512xf32> -> vector<16x512xf32>
    %c7_i32 = arith.constant 7 : i32
    %c7 = arith.constant 7 : index
    %c0_166 = arith.constant 0 : index
    %c0_167 = arith.constant 0 : index
    %380 = vector.load %arg4[%c7, %c0_166, %c0_167] : memref<8x16x512xf32, #tpu.memory_space<vmem>>, vector<1x16x512xf32>
    %381 = vector.shape_cast %380 : vector<1x16x512xf32> to vector<16x512xf32>
    %382 = arith.mulf %379, %381 : vector<16x512xf32>
    %cst_168 = arith.constant dense<0.000000e+00> : vector<512xf32>
    %383 = vector.multi_reduction <add>, %382, %cst_168 [0] : vector<16x512xf32> to vector<512xf32>
    %384 = vector.shape_cast %383 : vector<512xf32> to vector<1x512xf32>
    %cst_169 = arith.constant 5.000000e+01 : f32
    %385 = vector.broadcast %cst_169 : f32 to vector<1x512xf32>
    %386 = arith.cmpf olt, %356, %385 : vector<1x512xf32>
    %cst_170 = arith.constant 7.000000e+01 : f32
    %387 = vector.broadcast %cst_170 : f32 to vector<1x512xf32>
    %388 = arith.cmpf oge, %356, %387 : vector<1x512xf32>
    %cst_171 = arith.constant 5.000000e+01 : f32
    %389 = vector.broadcast %cst_171 : f32 to vector<1x512xf32>
    %390 = arith.subf %356, %389 : vector<1x512xf32>
    %cst_172 = arith.constant -0.00899999961 : f32
    %391 = vector.broadcast %cst_172 : f32 to vector<1x512xf32>
    %392 = arith.mulf %391, %390 : vector<1x512xf32>
    %cst_173 = arith.constant 2.000000e-01 : f32
    %393 = vector.broadcast %cst_173 : f32 to vector<1x512xf32>
    %394 = arith.addf %392, %393 : vector<1x512xf32>
    %cst_174 = arith.constant 2.000000e-02 : f32
    %395 = vector.broadcast %cst_174 : f32 to vector<1x512xf32>
    %396 = arith.select %388, %395, %394 : vector<1x512xi1>, vector<1x512xf32>
    %cst_175 = arith.constant 2.000000e-01 : f32
    %397 = vector.broadcast %cst_175 : f32 to vector<1x512xf32>
    %398 = arith.select %386, %397, %396 : vector<1x512xi1>, vector<1x512xf32>
    %cst_176 = arith.constant 0.333333343 : f32
    %399 = vector.broadcast %cst_176 : f32 to vector<1x512xf32>
    %400 = arith.mulf %399, %398 : vector<1x512xf32>
    %401 = arith.mulf %400, %356 : vector<1x512xf32>
    %cst_177 = arith.constant 2.000000e-02 : f32
    %402 = vector.broadcast %cst_177 : f32 to vector<1x512xf32>
    %403 = arith.mulf %402, %356 : vector<1x512xf32>
    %404 = arith.addf %401, %403 : vector<1x512xf32>
    %cst_178 = arith.constant 1.250000e-01 : f32
    %405 = vector.broadcast %cst_178 : f32 to vector<1x512xf32>
    %406 = arith.mulf %404, %405 : vector<1x512xf32>
    %407 = arith.addf %356, %406 : vector<1x512xf32>
    %408 = arith.addf %407, %384 : vector<1x512xf32>
    %cst_179 = arith.constant 2.000000e-02 : f32
    %409 = vector.broadcast %cst_179 : f32 to vector<16x512xf32>
    %410 = arith.mulf %409, %365 : vector<16x512xf32>
    %cst_180 = arith.constant 1.250000e-01 : f32
    %411 = vector.broadcast %cst_180 : f32 to vector<16x512xf32>
    %412 = arith.mulf %410, %411 : vector<16x512xf32>
    %413 = arith.addf %365, %412 : vector<16x512xf32>
    %cst_181 = arith.constant 2.000000e-01 : f32
    %414 = vector.broadcast %cst_181 : f32 to vector<16x512xf32>
    %415 = arith.mulf %414, %365 : vector<16x512xf32>
    %416 = arith.mulf %415, %381 : vector<16x512xf32>
    %417 = arith.addf %413, %416 : vector<16x512xf32>
    %cst_182 = arith.constant dense<0x7F800000> : vector<512xf32>
    %418 = vector.multi_reduction <minimumf>, %417, %cst_182 [0] : vector<16x512xf32> to vector<512xf32>
    %419 = vector.shape_cast %418 : vector<512xf32> to vector<1x512xf32>
    %c0_183 = arith.constant 0 : index
    %c0_184 = arith.constant 0 : index
    %420 = vector.load %arg7[%c0_183, %c0_184] : memref<1x512xf32, #tpu.memory_space<vmem>>, vector<1x512xf32>
    tpu.vector_store %arg7[%c0_183, %c0_184], %419 {strides = array<i32>} : memref<1x512xf32, #tpu.memory_space<vmem>>, vector<1x512xf32>,
    %c0_185 = arith.constant 0 : index
    %c0_186 = arith.constant 0 : index
    %421 = vector.load %arg8[%c0_185, %c0_186] : memref<1x512xf32, #tpu.memory_space<vmem>>, vector<1x512xf32>
    tpu.vector_store %arg8[%c0_185, %c0_186], %408 {strides = array<i32>} : memref<1x512xf32, #tpu.memory_space<vmem>>, vector<1x512xf32>,
    return
  }
  func.func @transform_0(%arg0: i32) -> (i32, i32) {
    %c0_i32 = arith.constant 0 : i32
    %c0_i32_0 = arith.constant 0 : i32
    %c0_i32_1 = arith.constant 0 : i32
    return %c0_i32, %c0_i32_0 : i32, i32
  }
  func.func @transform_1(%arg0: i32) -> (i32, i32) {
    %c0_i32 = arith.constant 0 : i32
    %c0_i32_0 = arith.constant 0 : i32
    %c0_i32_1 = arith.constant 0 : i32
    return %c0_i32, %c0_i32_0 : i32, i32
  }
  func.func @transform_2(%arg0: i32) -> (i32, i32) {
    %c0_i32 = arith.constant 0 : i32
    %c0_i32_0 = arith.constant 0 : i32
    %c0_i32_1 = arith.constant 0 : i32
    return %c0_i32, %c0_i32_0 : i32, i32
  }
  func.func @transform_3(%arg0: i32) -> (i32, i32, i32) {
    %c0_i32 = arith.constant 0 : i32
    %c0_i32_0 = arith.constant 0 : i32
    %c0_i32_1 = arith.constant 0 : i32
    return %c0_i32, %c0_i32_0, %arg0 : i32, i32, i32
  }
  func.func @transform_4(%arg0: i32) -> (i32, i32, i32) {
    %c0_i32 = arith.constant 0 : i32
    %c0_i32_0 = arith.constant 0 : i32
    %c0_i32_1 = arith.constant 0 : i32
    %c0_i32_2 = arith.constant 0 : i32
    return %c0_i32, %c0_i32_0, %c0_i32_1 : i32, i32, i32
  }
  func.func @transform_5(%arg0: i32) -> (i32, i32, i32) {
    %c0_i32 = arith.constant 0 : i32
    %c0_i32_0 = arith.constant 0 : i32
    %c0_i32_1 = arith.constant 0 : i32
    %c0_i32_2 = arith.constant 0 : i32
    return %c0_i32, %c0_i32_0, %c0_i32_1 : i32, i32, i32
  }
  func.func @transform_6(%arg0: i32) -> (i32, i32) {
    %c0_i32 = arith.constant 0 : i32
    %c0_i32_0 = arith.constant 0 : i32
    return %c0_i32, %arg0 : i32, i32
  }
  func.func @transform_7(%arg0: i32) -> (i32, i32) {
    %c0_i32 = arith.constant 0 : i32
    %c0_i32_0 = arith.constant 0 : i32
    return %c0_i32, %arg0 : i32, i32
  }
}

</mosaic_0001>

<llo_original>
// kernel: tpu_custom_call.1
$region0: #{tpu_custom_call.1}
  #allocation0 [shape = 'u32[]', space=smem, size = 0x4, offset = 0x4, fixed_abs, tag = 'smem constant byte address 0x4 - core index']
  #allocation1 [shape = 'u32[72,128]{1,0:T(1,128)}', space=vmem, size = 0x9000, scoped, tag = 'internal scratch']
  #allocation2 [shape = 'f32[1,1]{1,0:T(1,128)S(6)}', space=smem, size = 0x200, scoped, tag = 'scoped memory for tpu_custom_call.1']
  %s0 = inlined_call_operand.<no memory space> [shape: f32[1,1], index: 0, kind: input, shape index: {}]
  %s1 = inlined_call_operand.vmem [shape: f32[16,1], index: 1, kind: input, shape index: {}]
  %s2 = inlined_call_operand.vmem [shape: f32[16,1], index: 2, kind: input, shape index: {}]
  %s3 = inlined_call_operand.hbm [shape: f32[8,16,512], index: 3, kind: input, shape index: {}]
  %s4 = inlined_call_operand.vmem [shape: bf16[7,32,17], index: 4, kind: input, shape index: {}]
  %s5 = inlined_call_operand.vmem [shape: bf16[7,16,33], index: 5, kind: input, shape index: {}]
  %s6 = inlined_call_operand.hbm [shape: f32[1,512], index: 6, kind: output, shape index: {0}]
  %s7 = inlined_call_operand.hbm [shape: f32[1,512], index: 7, kind: output, shape index: {1}]
  %8 = xla_tuple %s6, %s7
  %s9 = sld [smem:[#allocation0]]
  $region46: #{tpu_custom_call.1} parent=0
    _
  %s11 = ssub.s32 1, %s9
  %s12 = scalar_select 0, %s11, %s9
  %13 = sst [smem:[#allocation2]] %s0
  $region1: #{tpu_custom_call.1} parent=0
    #allocation3 [shape = 'u8[262144]{0}', space=vmem, size = 0x40000, scoped, tag = 'input window, operand 3, single buffered']
    #allocation4 [shape = 's32[1]{0}', space=sflag, size = 0x4, scoped, tag = 'scoped memory for tpu_custom_call.1']
    #allocation5 [shape = 's32[1]{0}', space=sflag, size = 0x4, scoped, tag = 'scoped memory for tpu_custom_call.1']
    #allocation6 [shape = 'u8[2048]{0}', space=vmem, size = 0x800, scoped, tag = 'output window, operand 0, single buffered']
    #allocation7 [shape = 'u8[2048]{0}', space=vmem, size = 0x800, scoped, tag = 'output window, operand 1, single buffered']
    #allocation8 [shape = 's32[1]{0}', space=sflag, size = 0x4, scoped, tag = 'scoped memory for tpu_custom_call.1']
    %14 = vsyncpa [#allocation4], 0
    %15 = vsyncpa [#allocation5], 0
    %16 = vsyncpa [#allocation8], 0
    // Predicated region
    $region2: #{tpu_custom_call.1} parent=1 // pred_check
      _
    $region3: #{tpu_custom_call.1} parent=1 // pred_check_branch
      %18 = sbr.rel (0) target = $region5
    $region4: #{tpu_custom_call.1} parent=1 // pred_region
      _
    $region5: #{tpu_custom_call.1} parent=1 // pred_fallthru
      _
    // Predicated region
    $region6: #{tpu_custom_call.1} parent=1 // pred_check
      _
    $region7: #{tpu_custom_call.1} parent=1 // pred_check_branch
      %20 = sbr.rel (0) target = $region9
    $region8: #{tpu_custom_call.1} parent=1 // pred_region
      _
    $region9: #{tpu_custom_call.1} parent=1 // pred_fallthru
      _
    // Predicated region
    $region10: #{tpu_custom_call.1} parent=1 // pred_check
      _
    $region11: #{tpu_custom_call.1} parent=1 // pred_check_branch
      %22 = sbr.rel (0) target = $region13
    $region12: #{tpu_custom_call.1} parent=1 // pred_region
      _
    $region13: #{tpu_custom_call.1} parent=1 // pred_fallthru
      _
    // Predicated region
    $region14: #{tpu_custom_call.1} parent=1 // pred_check
      _
    $region15: #{tpu_custom_call.1} parent=1 // pred_check_branch
      %24 = sbr.rel (0) target = $region17
    $region16: #{tpu_custom_call.1} parent=1 // pred_region
      %26 = vsyncadd [#allocation4], 0
      %s27 = sshll.u32 %s3, 4
      %s28 = int_to_ptr.hbm [resolvable:$true] %s27
      %s29 = sshll.u32 [#allocation3], 4
      %s30 = int_to_ptr.vmem [resolvable:$true] %s29
      %35 = dma.hbm_to_vmem [thread:$0]  %s28, 8192, %s30, [#allocation4], 512, 512, 32
    $region17: #{tpu_custom_call.1} parent=1 // pred_fallthru
      _
    // Predicated region
    $region18: #{tpu_custom_call.1} parent=1 // pred_check
      _
    $region19: #{tpu_custom_call.1} parent=1 // pred_check_branch
      %37 = sbr.rel (0) target = $region21
    $region20: #{tpu_custom_call.1} parent=1 // pred_region
      _
    $region21: #{tpu_custom_call.1} parent=1 // pred_fallthru
      _
    // Predicated region
    $region22: #{tpu_custom_call.1} parent=1 // pred_check
      _
    $region23: #{tpu_custom_call.1} parent=1 // pred_check_branch
      %39 = sbr.rel (0) target = $region25
    $region24: #{tpu_custom_call.1} parent=1 // pred_region
      _
    $region25: #{tpu_custom_call.1} parent=1 // pred_fallthru
      _
    // Predicated region
    $region26: #{tpu_custom_call.1} parent=1 // pred_check
      _
    $region27: #{tpu_custom_call.1} parent=1 // pred_check_branch
      %41 = sbr.rel (0) target = $region29
    $region28: #{tpu_custom_call.1} parent=1 // pred_region
      %43 = dma.done [#allocation4], 8192
    $region29: #{tpu_custom_call.1} parent=1 // pred_fallthru
      _
    %s46 = sld [smem:[#allocation2]]
    %v47 = vstv %s46
    %v48 = vld [vmem:[%s2] sm:$0xff]
    %v49 = vld [vmem:[%s2 + $0x8] sm:$0xff]
    %51 = vset.pattern.permute.xlu0 0
    %52 = vperm.xlu0 %51, %v48
    %v53 = vpop.permute.xlu0 %52
    %56 = vset.pattern.permute.xlu0 0
    %57 = vperm.xlu0 %56, %v49
    %v58 = vpop.permute.xlu0 %57
    %v60 = vld [vmem:[%s1] sm:$0xff]
    %v61 = vld [vmem:[%s1 + $0x8] sm:$0xff]
    %63 = vset.pattern.permute.xlu0 0
    %64 = vperm.xlu0 %63, %v60
    %v65 = vpop.permute.xlu0 %64
    %68 = vset.pattern.permute.xlu0 0
    %69 = vperm.xlu0 %68, %v61
    %v70 = vpop.permute.xlu0 %69
    %v72 = vld [vmem:[#allocation3] sm:$0xff]
    %v73 = vld [vmem:[#allocation3 + $0x8] sm:$0xff]
    %v74 = vld [vmem:[#allocation3 + $0x10] sm:$0xff]
    %v75 = vld [vmem:[#allocation3 + $0x18] sm:$0xff]
    %v76 = vld [vmem:[#allocation3 + $0x20] sm:$0xff]
    %v77 = vld [vmem:[#allocation3 + $0x28] sm:$0xff]
    %v78 = vld [vmem:[#allocation3 + $0x30] sm:$0xff]
    %v79 = vld [vmem:[#allocation3 + $0x38] sm:$0xff]
    %v80 = vmul.f32 %v53, %v72
    %v81 = vmul.f32 %v53, %v73
    %v82 = vmul.f32 %v53, %v74
    %v83 = vmul.f32 %v53, %v75
    %v84 = vmul.f32 %v58, %v76
    %v85 = vmul.f32 %v58, %v77
    %v86 = vmul.f32 %v58, %v78
    %v87 = vmul.f32 %v58, %v79
    %v88 = vadd.f32 %v80, %v84
    %v89 = vrot.slane %v88, 4
    %v90 = vadd.f32 %v88, %v89
    %v91 = vrot.slane %v90, 2
    %v92 = vadd.f32 %v90, %v91
    %v93 = vrot.slane %v92, 1
    %v94 = vadd.f32 %v92, %v93
    %v95 = vadd.f32 %v81, %v85
    %v96 = vrot.slane %v95, 4
    %v97 = vadd.f32 %v95, %v96
    %v98 = vrot.slane %v97, 2
    %v99 = vadd.f32 %v97, %v98
    %v100 = vrot.slane %v99, 1
    %v101 = vadd.f32 %v99, %v100
    %v102 = vadd.f32 %v82, %v86
    %v103 = vrot.slane %v102, 4
    %v104 = vadd.f32 %v102, %v103
    %v105 = vrot.slane %v104, 2
    %v106 = vadd.f32 %v104, %v105
    %v107 = vrot.slane %v106, 1
    %v108 = vadd.f32 %v106, %v107
    %v109 = vadd.f32 %v83, %v87
    %v110 = vrot.slane %v109, 4
    %v111 = vadd.f32 %v109, %v110
    %v112 = vrot.slane %v111, 2
    %v113 = vadd.f32 %v111, %v112
    %v114 = vrot.slane %v113, 1
    %v115 = vadd.f32 %v113, %v114
    %vm116 = vcmp.lt.f32.partialorder %v47, 50.0
    %vm117 = vcmp.ge.f32.partialorder %v47, 70.0
    %v118 = vsub.f32 %v47, 50.0
    %v119 = vmul.f32 %v118, -0.009
    %v120 = vadd.f32 %v119, 0.2
    %v121 = vsel %vm117, 0.02, %v120
    %v122 = vsel %vm116, 0.2, %v121
    %v123 = vmul.f32 %v122, 0.33333334
    %v124 = vmul.f32 %v123, %v47
    %v125 = vmul.f32 %v47, 0.02
    %v126 = vadd.f32 %v124, %v125
    %v127 = vmul.f32 %v126, 0.125
    %v128 = vadd.f32 %v47, %v127
    %v129 = vadd.f32 %v128, %v94
    %v130 = vadd.f32 %v128, %v101
    %v131 = vadd.f32 %v128, %v108
    %v132 = vadd.f32 %v128, %v115
    %v133 = vmul.f32 %v65, 0.02
    %v134 = vmul.f32 %v70, 0.02
    %v135 = vmul.f32 %v133, 0.125
    %v136 = vmul.f32 %v134, 0.125
    %v137 = vadd.f32 %v65, %v135
    %v138 = vadd.f32 %v70, %v136
    %v139 = vmul.f32 %v65, 0.2
    %v140 = vmul.f32 %v70, 0.2
    %v141 = vmul.f32 %v139, %v72
    %v142 = vmul.f32 %v139, %v73
    %v143 = vmul.f32 %v139, %v74
    %v144 = vmul.f32 %v139, %v75
    %v145 = vmul.f32 %v140, %v76
    %v146 = vmul.f32 %v140, %v77
    %v147 = vmul.f32 %v140, %v78
    %v148 = vmul.f32 %v140, %v79
    %v149 = vadd.f32 %v137, %v141
    %v150 = vadd.f32 %v137, %v142
    %v151 = vadd.f32 %v137, %v143
    %v152 = vadd.f32 %v137, %v144
    %v153 = vadd.f32 %v138, %v145
    %v154 = vadd.f32 %v138, %v146
    %v155 = vadd.f32 %v138, %v147
    %v156 = vadd.f32 %v138, %v148
    %v157 = vpack.c.bf16 %v150, %v149
    %v158 = vpack.c.bf16 %v152, %v151
    %v159 = vpack.c.bf16 %v154, %v153
    %v160 = vpack.c.bf16 %v156, %v155
    %v165 = vunpack.c.l.b16 %v157
    %v166 = vunpack.c.h.b16 %v157
    %v167 = vunpack.c.l.b16 %v158
    %v168 = vunpack.c.h.b16 %v158
    %v169 = vunpack.c.l.b16 %v159
    %v170 = vunpack.c.h.b16 %v159
    %v171 = vunpack.c.l.b16 %v160
    %v172 = vunpack.c.h.b16 %v160
    %v173 = vpack.c.b16 %v169, %v165
    %v174 = vpack.c.b16 %v170, %v166
    %v175 = vpack.c.b16 %v171, %v167
    %v176 = vpack.c.b16 %v172, %v168
    %v181 = vld [vmem:[%s4] sm:$0xf]
    %v182 = vld [vmem:[%s4 + $0x4] sm:$0xf]
    %v183 = vld [vmem:[%s4 + $0x8] sm:$0xf]
    %v184 = vld [vmem:[%s4 + $0xc] sm:$0xf]
    %v189 = vunpack.c.l.b16 %v181
    %v190 = vunpack.c.l.b16 %v182
    %v191 = vunpack.c.l.b16 %v183
    %v192 = vunpack.c.l.b16 %v184
    %v193 = vpack.c.b16 %v190, %v189
    %v194 = vpack.c.b16 %v192, %v191
    %vm195 = vcmask 138240
    %v197 = vsel %vm195, %v193, 0
    %v200 = vsel %vm195, %v194, 0
    %vm202 = vcmask 1040384
    %v203 = vsel 0, 4294967295, 65535
    %v204 = vsel %vm202, %v203, 0
    %v206 = vand.u32 1065369472, %v204
    %208 = vmatpush.bf16.msra.mxu0 0
    %209 = vmatpush.bf16.msra.mxu0 0
    %210 = vmatpush.bf16.msra.mxu0 0
    %211 = vmatpush.bf16.msra.mxu0 0
    %212 = vmatpush.bf16.msra.mxu0 0
    %213 = vmatpush.bf16.msra.mxu0 0
    %214 = vmatpush.bf16.msra.mxu0 %v206
    %215 = vmatpush.bf16.msra.mxu0 %v173
    %216 = vmatmul.bf16.gmra.mxu0 %v197
    %v217 = vpop.f32.mrf.mxu0
    %v218 = vadd.f32 0.0, %v217
    %v219 = vpop.f32.mrf.mxu0
    %v220 = vadd.f32 0.0, %v219
    %221 = vmatmul.bf16.gmra.mxu0 %v200
    %v222 = vpop.f32.mrf.mxu0
    %v223 = vadd.f32 0.0, %v222
    %v224 = vpop.f32.mrf.mxu0
    %v225 = vadd.f32 0.0, %v224
    %226 = vdwg.mxu0
    %227 = vmatpush.bf16.msra.mxu0 0
    %228 = vmatpush.bf16.msra.mxu0 0
    %229 = vmatpush.bf16.msra.mxu0 0
    %230 = vmatpush.bf16.msra.mxu0 0
    %231 = vmatpush.bf16.msra.mxu0 0
    %232 = vmatpush.bf16.msra.mxu0 0
    %233 = vmatpush.bf16.msra.mxu0 %v206
    %234 = vmatpush.bf16.msra.mxu0 %v174
    %235 = vmatmul.bf16.gmra.mxu0 %v197
    %v236 = vpop.f32.mrf.mxu0
    %v237 = vadd.f32 0.0, %v236
    %v238 = vpop.f32.mrf.mxu0
    %v239 = vadd.f32 0.0, %v238
    %240 = vmatmul.bf16.gmra.mxu0 %v200
    %v241 = vpop.f32.mrf.mxu0
    %v242 = vadd.f32 0.0, %v241
    %v243 = vpop.f32.mrf.mxu0
    %v244 = vadd.f32 0.0, %v243
    %245 = vdwg.mxu0
    %246 = vmatpush.bf16.msra.mxu0 0
    %247 = vmatpush.bf16.msra.mxu0 0
    %248 = vmatpush.bf16.msra.mxu0 0
    %249 = vmatpush.bf16.msra.mxu0 0
    %250 = vmatpush.bf16.msra.mxu0 0
    %251 = vmatpush.bf16.msra.mxu0 0
    %252 = vmatpush.bf16.msra.mxu0 %v206
    %253 = vmatpush.bf16.msra.mxu0 %v175
    %254 = vmatmul.bf16.gmra.mxu0 %v197
    %v255 = vpop.f32.mrf.mxu0
    %v256 = vadd.f32 0.0, %v255
    %v257 = vpop.f32.mrf.mxu0
    %v258 = vadd.f32 0.0, %v257
    %259 = vmatmul.bf16.gmra.mxu0 %v200
    %v260 = vpop.f32.mrf.mxu0
    %v261 = vadd.f32 0.0, %v260
    %v262 = vpop.f32.mrf.mxu0
    %v263 = vadd.f32 0.0, %v262
    %264 = vdwg.mxu0
    %265 = vmatpush.bf16.msra.mxu0 0
    %266 = vmatpush.bf16.msra.mxu0 0
    %267 = vmatpush.bf16.msra.mxu0 0
    %268 = vmatpush.bf16.msra.mxu0 0
    %269 = vmatpush.bf16.msra.mxu0 0
    %270 = vmatpush.bf16.msra.mxu0 0
    %271 = vmatpush.bf16.msra.mxu0 %v206
    %272 = vmatpush.bf16.msra.mxu0 %v176
    %273 = vmatmul.bf16.gmra.mxu0 %v197
    %v274 = vpop.f32.mrf.mxu0
    %v275 = vadd.f32 0.0, %v274
    %v276 = vpop.f32.mrf.mxu0
    %v277 = vadd.f32 0.0, %v276
    %278 = vmatmul.bf16.gmra.mxu0 %v200
    %v279 = vpop.f32.mrf.mxu0
    %v280 = vadd.f32 0.0, %v279
    %v281 = vpop.f32.mrf.mxu0
    %v282 = vadd.f32 0.0, %v281
    %283 = vdwg.mxu0
    %v284 = vmax.f32 %v218, 0.0
    %v285 = vmax.f32 %v237, 0.0
    %v286 = vmax.f32 %v256, 0.0
    %v287 = vmax.f32 %v275, 0.0
    %v288 = vmax.f32 %v220, 0.0
    %v289 = vmax.f32 %v239, 0.0
    %v290 = vmax.f32 %v258, 0.0
    %v291 = vmax.f32 %v277, 0.0
    %v292 = vmax.f32 %v223, 0.0
    %v293 = vmax.f32 %v242, 0.0
    %v294 = vmax.f32 %v261, 0.0
    %v295 = vmax.f32 %v280, 0.0
    %v296 = vmax.f32 %v225, 0.0
    %v297 = vmax.f32 %v244, 0.0
    %v298 = vmax.f32 %v263, 0.0
    %v299 = vmax.f32 %v282, 0.0
    %v300 = vpack.c.bf16 %v285, %v284
    %v301 = vpack.c.bf16 %v287, %v286
    %v302 = vpack.c.bf16 %v289, %v288
    %v303 = vpack.c.bf16 %v291, %v290
    %v304 = vpack.c.bf16 %v293, %v292
    %v305 = vpack.c.bf16 %v295, %v294
    %v306 = vpack.c.bf16 %v297, %v296
    %v307 = vpack.c.bf16 %v299, %v298
    %v316 = vunpack.c.l.b16 %v300
    %v317 = vunpack.c.h.b16 %v300
    %v318 = vunpack.c.l.b16 %v301
    %v319 = vunpack.c.h.b16 %v301
    %v320 = vunpack.c.l.b16 %v302
    %v321 = vunpack.c.h.b16 %v302
    %v322 = vunpack.c.l.b16 %v303
    %v323 = vunpack.c.h.b16 %v303
    %v324 = vunpack.c.l.b16 %v304
    %v325 = vunpack.c.h.b16 %v304
    %v326 = vunpack.c.l.b16 %v305
    %v327 = vunpack.c.h.b16 %v305
    %v328 = vunpack.c.l.b16 %v306
    %v329 = vunpack.c.h.b16 %v306
    %v330 = vunpack.c.l.b16 %v307
    %v331 = vunpack.c.h.b16 %v307
    %v332 = vpack.c.b16 %v320, %v316
    %v333 = vpack.c.b16 %v321, %v317
    %v334 = vpack.c.b16 %v322, %v318
    %v335 = vpack.c.b16 %v323, %v319
    %v336 = vpack.c.b16 %v328, %v324
    %v337 = vpack.c.b16 %v329, %v325
    %v338 = vpack.c.b16 %v330, %v326
    %v339 = vpack.c.b16 %v331, %v327
    %v348 = vld [vmem:[%s5] sm:$0xf]
    %v349 = vld [vmem:[%s5 + $0x4] sm:$0xf]
    %v352 = vunpack.c.l.b16 %v348
    %v353 = vunpack.c.l.b16 %v349
    %v354 = vpack.c.b16 %v353, %v352
    %vm355 = vcmask 269312
    %v357 = vsel %vm355, %v354, 0
    %359 = vmatpush.bf16.msra.mxu0 0
    %360 = vmatpush.bf16.msra.mxu0 0
    %361 = vmatpush.bf16.msra.mxu0 0
    %362 = vmatpush.bf16.msra.mxu0 0
    %363 = vmatpush.bf16.msra.mxu0 0
    %364 = vmatpush.bf16.msra.mxu0 %v206
    %365 = vmatpush.bf16.msra.mxu0 %v336
    %366 = vmatpush.bf16.msra.mxu0 %v332
    %367 = vmatmul.bf16.gmra.mxu0 %v357
    %v368 = vpop.f32.mrf.mxu0
    %v369 = vadd.f32 0.0, %v368
    %v370 = vpop.f32.mrf.mxu0
    %v371 = vadd.f32 0.0, %v370
    %372 = vdwg.mxu0
    %373 = vmatpush.bf16.msra.mxu0 0
    %374 = vmatpush.bf16.msra.mxu0 0
    %375 = vmatpush.bf16.msra.mxu0 0
    %376 = vmatpush.bf16.msra.mxu0 0
    %377 = vmatpush.bf16.msra.mxu0 0
    %378 = vmatpush.bf16.msra.mxu0 %v206
    %379 = vmatpush.bf16.msra.mxu0 %v337
    %380 = vmatpush.bf16.msra.mxu0 %v333
    %381 = vmatmul.bf16.gmra.mxu0 %v357
    %v382 = vpop.f32.mrf.mxu0
    %v383 = vadd.f32 0.0, %v382
    %v384 = vpop.f32.mrf.mxu0
    %v385 = vadd.f32 0.0, %v384
    %386 = vdwg.mxu0
    %387 = vmatpush.bf16.msra.mxu0 0
    %388 = vmatpush.bf16.msra.mxu0 0
    %389 = vmatpush.bf16.msra.mxu0 0
    %390 = vmatpush.bf16.msra.mxu0 0
    %391 = vmatpush.bf16.msra.mxu0 0
    %392 = vmatpush.bf16.msra.mxu0 %v206
    %393 = vmatpush.bf16.msra.mxu0 %v338
    %394 = vmatpush.bf16.msra.mxu0 %v334
    %395 = vmatmul.bf16.gmra.mxu0 %v357
    %v396 = vpop.f32.mrf.mxu0
    %v397 = vadd.f32 0.0, %v396
    %v398 = vpop.f32.mrf.mxu0
    %v399 = vadd.f32 0.0, %v398
    %400 = vdwg.mxu0
    %401 = vmatpush.bf16.msra.mxu0 0
    %402 = vmatpush.bf16.msra.mxu0 0
    %403 = vmatpush.bf16.msra.mxu0 0
    %404 = vmatpush.bf16.msra.mxu0 0
    %405 = vmatpush.bf16.msra.mxu0 0
    %406 = vmatpush.bf16.msra.mxu0 %v206
    %407 = vmatpush.bf16.msra.mxu0 %v339
    %408 = vmatpush.bf16.msra.mxu0 %v335
    %409 = vmatmul.bf16.gmra.mxu0 %v357
    %v410 = vpop.f32.mrf.mxu0
    %v411 = vadd.f32 0.0, %v410
    %v412 = vpop.f32.mrf.mxu0
    %v413 = vadd.f32 0.0, %v412
    %414 = vdwg.mxu0
    %s415 = scalar_lea.vmem [#allocation3], 64
    %v416 = vld [vmem:[%s415] sm:$0xff]
    %v417 = vld [vmem:[%s415 + $0x8] sm:$0xff]
    %v418 = vld [vmem:[%s415 + $0x10] sm:$0xff]
    %v419 = vld [vmem:[%s415 + $0x18] sm:$0xff]
    %v420 = vld [vmem:[%s415 + $0x20] sm:$0xff]
    %v421 = vld [vmem:[%s415 + $0x28] sm:$0xff]
    %v422 = vld [vmem:[%s415 + $0x30] sm:$0xff]
    %v423 = vld [vmem:[%s415 + $0x38] sm:$0xff]
    %v424 = vmul.f32 %v369, %v416
    %v425 = vmul.f32 %v383, %v417
    %v426 = vmul.f32 %v397, %v418
    %v427 = vmul.f32 %v411, %v419
    %v428 = vmul.f32 %v371, %v420
    %v429 = vmul.f32 %v385, %v421
    %v430 = vmul.f32 %v399, %v422
    %v431 = vmul.f32 %v413, %v423
    %v432 = vadd.f32 %v424, %v428
    %v433 = vrot.slane %v432, 4
    %v434 = vadd.f32 %v432, %v433
    %v435 = vrot.slane %v434, 2
    %v436 = vadd.f32 %v434, %v435
    %v437 = vrot.slane %v436, 1
    %v438 = vadd.f32 %v436, %v437
    %v439 = vadd.f32 %v425, %v429
    %v440 = vrot.slane %v439, 4
    %v441 = vadd.f32 %v439, %v440
    %v442 = vrot.slane %v441, 2
    %v443 = vadd.f32 %v441, %v442
    %v444 = vrot.slane %v443, 1
    %v445 = vadd.f32 %v443, %v444
    %v446 = vadd.f32 %v426, %v430
    %v447 = vrot.slane %v446, 4
    %v448 = vadd.f32 %v446, %v447
    %v449 = vrot.slane %v448, 2
    %v450 = vadd.f32 %v448, %v449
    %v451 = vrot.slane %v450, 1
    %v452 = vadd.f32 %v450, %v451
    %v453 = vadd.f32 %v427, %v431
    %v454 = vrot.slane %v453, 4
    %v455 = vadd.f32 %v453, %v454
    %v456 = vrot.slane %v455, 2
    %v457 = vadd.f32 %v455, %v456
    %v458 = vrot.slane %v457, 1
    %v459 = vadd.f32 %v457, %v458
    %vm460 = vcmp.lt.f32.partialorder %v129, 50.0
    %vm461 = vcmp.lt.f32.partialorder %v130, 50.0
    %vm462 = vcmp.lt.f32.partialorder %v131, 50.0
    %vm463 = vcmp.lt.f32.partialorder %v132, 50.0
    %vm464 = vcmp.ge.f32.partialorder %v129, 70.0
    %vm465 = vcmp.ge.f32.partialorder %v130, 70.0
    %vm466 = vcmp.ge.f32.partialorder %v131, 70.0
    %vm467 = vcmp.ge.f32.partialorder %v132, 70.0
    %v468 = vsub.f32 %v129, 50.0
    %v469 = vsub.f32 %v130, 50.0
    %v470 = vsub.f32 %v131, 50.0
    %v471 = vsub.f32 %v132, 50.0
    %v472 = vmul.f32 %v468, -0.009
    %v473 = vmul.f32 %v469, -0.009
    %v474 = vmul.f32 %v470, -0.009
    %v475 = vmul.f32 %v471, -0.009
    %v476 = vadd.f32 %v472, 0.2
    %v477 = vadd.f32 %v473, 0.2
    %v478 = vadd.f32 %v474, 0.2
    %v479 = vadd.f32 %v475, 0.2
    %v480 = vsel %vm464, 0.02, %v476
    %v481 = vsel %vm465, 0.02, %v477
    %v482 = vsel %vm466, 0.02, %v478
    %v483 = vsel %vm467, 0.02, %v479
    %v484 = vsel %vm460, 0.2, %v480
    %v485 = vsel %vm461, 0.2, %v481
    %v486 = vsel %vm462, 0.2, %v482
    %v487 = vsel %vm463, 0.2, %v483
    %v488 = vmul.f32 %v484, 0.33333334
    %v489 = vmul.f32 %v485, 0.33333334
    %v490 = vmul.f32 %v486, 0.33333334
    %v491 = vmul.f32 %v487, 0.33333334
    %v492 = vmul.f32 %v488, %v129
    %v493 = vmul.f32 %v489, %v130
    %v494 = vmul.f32 %v490, %v131
    %v495 = vmul.f32 %v491, %v132
    %v496 = vmul.f32 %v129, 0.02
    %v497 = vmul.f32 %v130, 0.02
    %v498 = vmul.f32 %v131, 0.02
    %v499 = vmul.f32 %v132, 0.02
    %v500 = vadd.f32 %v492, %v496
    %v501 = vadd.f32 %v493, %v497
    %v502 = vadd.f32 %v494, %v498
    %v503 = vadd.f32 %v495, %v499
    %v504 = vmul.f32 %v500, 0.125
    %v505 = vmul.f32 %v501, 0.125
    %v506 = vmul.f32 %v502, 0.125
    %v507 = vmul.f32 %v503, 0.125
    %v508 = vadd.f32 %v129, %v504
    %v509 = vadd.f32 %v130, %v505
    %v510 = vadd.f32 %v131, %v506
    %v511 = vadd.f32 %v132, %v507
    %v512 = vadd.f32 %v508, %v438
    %v513 = vadd.f32 %v509, %v445
    %v514 = vadd.f32 %v510, %v452
    %v515 = vadd.f32 %v511, %v459
    %v516 = vmul.f32 %v149, 0.02
    %v517 = vmul.f32 %v150, 0.02
    %v518 = vmul.f32 %v151, 0.02
    %v519 = vmul.f32 %v152, 0.02
    %v520 = vmul.f32 %v153, 0.02
    %v521 = vmul.f32 %v154, 0.02
    %v522 = vmul.f32 %v155, 0.02
    %v523 = vmul.f32 %v156, 0.02
    %v524 = vmul.f32 %v516, 0.125
    %v525 = vmul.f32 %v517, 0.125
    %v526 = vmul.f32 %v518, 0.125
    %v527 = vmul.f32 %v519, 0.125
    %v528 = vmul.f32 %v520, 0.125
    %v529 = vmul.f32 %v521, 0.125
    %v530 = vmul.f32 %v522, 0.125
    %v531 = vmul.f32 %v523, 0.125
    %v532 = vadd.f32 %v149, %v524
    %v533 = vadd.f32 %v150, %v525
    %v534 = vadd.f32 %v151, %v526
    %v535 = vadd.f32 %v152, %v527
    %v536 = vadd.f32 %v153, %v528
    %v537 = vadd.f32 %v154, %v529
    %v538 = vadd.f32 %v155, %v530
    %v539 = vadd.f32 %v156, %v531
    %v540 = vmul.f32 %v149, 0.2
    %v541 = vmul.f32 %v150, 0.2
    %v542 = vmul.f32 %v151, 0.2
    %v543 = vmul.f32 %v152, 0.2
    %v544 = vmul.f32 %v153, 0.2
    %v545 = vmul.f32 %v154, 0.2
    %v546 = vmul.f32 %v155, 0.2
    %v547 = vmul.f32 %v156, 0.2
    %v548 = vmul.f32 %v540, %v416
    %v549 = vmul.f32 %v541, %v417
    %v550 = vmul.f32 %v542, %v418
    %v551 = vmul.f32 %v543, %v419
    %v552 = vmul.f32 %v544, %v420
    %v553 = vmul.f32 %v545, %v421
    %v554 = vmul.f32 %v546, %v422
    %v555 = vmul.f32 %v547, %v423
    %v556 = vadd.f32 %v532, %v548
    %v557 = vadd.f32 %v533, %v549
    %v558 = vadd.f32 %v534, %v550
    %v559 = vadd.f32 %v535, %v551
    %v560 = vadd.f32 %v536, %v552
    %v561 = vadd.f32 %v537, %v553
    %v562 = vadd.f32 %v538, %v554
    %v563 = vadd.f32 %v539, %v555
    %v564 = vpack.c.bf16 %v557, %v556
    %v565 = vpack.c.bf16 %v559, %v558
    %v566 = vpack.c.bf16 %v561, %v560
    %v567 = vpack.c.bf16 %v563, %v562
    %v572 = vunpack.c.l.b16 %v564
    %v573 = vunpack.c.h.b16 %v564
    %v574 = vunpack.c.l.b16 %v565
    %v575 = vunpack.c.h.b16 %v565
    %v576 = vunpack.c.l.b16 %v566
    %v577 = vunpack.c.h.b16 %v566
    %v578 = vunpack.c.l.b16 %v567
    %v579 = vunpack.c.h.b16 %v567
    %v580 = vpack.c.b16 %v576, %v572
    %v581 = vpack.c.b16 %v577, %v573
    %v582 = vpack.c.b16 %v578, %v574
    %v583 = vpack.c.b16 %v579, %v575
    %s588 = scalar_lea.vmem %s4, 16
    %v589 = vld [vmem:[%s588] sm:$0xf]
    %v590 = vld [vmem:[%s588 + $0x4] sm:$0xf]
    %v591 = vld [vmem:[%s588 + $0x8] sm:$0xf]
    %v592 = vld [vmem:[%s588 + $0xc] sm:$0xf]
    %v597 = vunpack.c.l.b16 %v589
    %v598 = vunpack.c.l.b16 %v590
    %v599 = vunpack.c.l.b16 %v591
    %v600 = vunpack.c.l.b16 %v592
    %v601 = vpack.c.b16 %v598, %v597
    %v602 = vpack.c.b16 %v600, %v599
    %v604 = vsel %vm195, %v601, 0
    %v607 = vsel %vm195, %v602, 0
    %609 = vmatpush.bf16.msra.mxu0 0
    %610 = vmatpush.bf16.msra.mxu0 0
    %611 = vmatpush.bf16.msra.mxu0 0
    %612 = vmatpush.bf16.msra.mxu0 0
    %613 = vmatpush.bf16.msra.mxu0 0
    %614 = vmatpush.bf16.msra.mxu0 0
    %615 = vmatpush.bf16.msra.mxu0 %v206
    %616 = vmatpush.bf16.msra.mxu0 %v580
    %617 = vmatmul.bf16.gmra.mxu0 %v604
    %v618 = vpop.f32.mrf.mxu0
    %v619 = vadd.f32 0.0, %v618
    %v620 = vpop.f32.mrf.mxu0
    %v621 = vadd.f32 0.0, %v620
    %622 = vmatmul.bf16.gmra.mxu0 %v607
    %v623 = vpop.f32.mrf.mxu0
    %v624 = vadd.f32 0.0, %v623
    %v625 = vpop.f32.mrf.mxu0
    %v626 = vadd.f32 0.0, %v625
    %627 = vdwg.mxu0
    %628 = vmatpush.bf16.msra.mxu0 0
    %629 = vmatpush.bf16.msra.mxu0 0
    %630 = vmatpush.bf16.msra.mxu0 0
    %631 = vmatpush.bf16.msra.mxu0 0
    %632 = vmatpush.bf16.msra.mxu0 0
    %633 = vmatpush.bf16.msra.mxu0 0
    %634 = vmatpush.bf16.msra.mxu0 %v206
    %635 = vmatpush.bf16.msra.mxu0 %v581
    %636 = vmatmul.bf16.gmra.mxu0 %v604
    %v637 = vpop.f32.mrf.mxu0
    %v638 = vadd.f32 0.0, %v637
    %v639 = vpop.f32.mrf.mxu0
    %v640 = vadd.f32 0.0, %v639
    %641 = vmatmul.bf16.gmra.mxu0 %v607
    %v642 = vpop.f32.mrf.mxu0
    %v643 = vadd.f32 0.0, %v642
    %v644 = vpop.f32.mrf.mxu0
    %v645 = vadd.f32 0.0, %v644
    %646 = vdwg.mxu0
    %647 = vmatpush.bf16.msra.mxu0 0
    %648 = vmatpush.bf16.msra.mxu0 0
    %649 = vmatpush.bf16.msra.mxu0 0
    %650 = vmatpush.bf16.msra.mxu0 0
    %651 = vmatpush.bf16.msra.mxu0 0
    %652 = vmatpush.bf16.msra.mxu0 0
    %653 = vmatpush.bf16.msra.mxu0 %v206
    %654 = vmatpush.bf16.msra.mxu0 %v582
    %655 = vmatmul.bf16.gmra.mxu0 %v604
    %v656 = vpop.f32.mrf.mxu0
    %v657 = vadd.f32 0.0, %v656
    %v658 = vpop.f32.mrf.mxu0
    %v659 = vadd.f32 0.0, %v658
    %660 = vmatmul.bf16.gmra.mxu0 %v607
    %v661 = vpop.f32.mrf.mxu0
    %v662 = vadd.f32 0.0, %v661
    %v663 = vpop.f32.mrf.mxu0
    %v664 = vadd.f32 0.0, %v663
    %665 = vdwg.mxu0
    %666 = vmatpush.bf16.msra.mxu0 0
    %667 = vmatpush.bf16.msra.mxu0 0
    %668 = vmatpush.bf16.msra.mxu0 0
    %669 = vmatpush.bf16.msra.mxu0 0
    %670 = vmatpush.bf16.msra.mxu0 0
    %671 = vmatpush.bf16.msra.mxu0 0
    %672 = vmatpush.bf16.msra.mxu0 %v206
    %673 = vmatpush.bf16.msra.mxu0 %v583
    %674 = vmatmul.bf16.gmra.mxu0 %v604
    %v675 = vpop.f32.mrf.mxu0
    %v676 = vadd.f32 0.0, %v675
    %v677 = vpop.f32.mrf.mxu0
    %v678 = vadd.f32 0.0, %v677
    %679 = vmatmul.bf16.gmra.mxu0 %v607
    %v680 = vpop.f32.mrf.mxu0
    %v681 = vadd.f32 0.0, %v680
    %v682 = vpop.f32.mrf.mxu0
    %v683 = vadd.f32 0.0, %v682
    %684 = vdwg.mxu0
    %v685 = vmax.f32 %v619, 0.0
    %v686 = vmax.f32 %v638, 0.0
    %v687 = vmax.f32 %v657, 0.0
    %v688 = vmax.f32 %v676, 0.0
    %v689 = vmax.f32 %v621, 0.0
    %v690 = vmax.f32 %v640, 0.0
    %v691 = vmax.f32 %v659, 0.0
    %v692 = vmax.f32 %v678, 0.0
    %v693 = vmax.f32 %v624, 0.0
    %v694 = vmax.f32 %v643, 0.0
    %v695 = vmax.f32 %v662, 0.0
    %v696 = vmax.f32 %v681, 0.0
    %v697 = vmax.f32 %v626, 0.0
    %v698 = vmax.f32 %v645, 0.0
    %v699 = vmax.f32 %v664, 0.0
    %v700 = vmax.f32 %v683, 0.0
    %v701 = vpack.c.bf16 %v686, %v685
    %v702 = vpack.c.bf16 %v688, %v687
    %v703 = vpack.c.bf16 %v690, %v689
    %v704 = vpack.c.bf16 %v692, %v691
    %v705 = vpack.c.bf16 %v694, %v693
    %v706 = vpack.c.bf16 %v696, %v695
    %v707 = vpack.c.bf16 %v698, %v697
    %v708 = vpack.c.bf16 %v700, %v699
    %v717 = vunpack.c.l.b16 %v701
    %v718 = vunpack.c.h.b16 %v701
    %v719 = vunpack.c.l.b16 %v702
    %v720 = vunpack.c.h.b16 %v702
    %v721 = vunpack.c.l.b16 %v703
    %v722 = vunpack.c.h.b16 %v703
    %v723 = vunpack.c.l.b16 %v704
    %v724 = vunpack.c.h.b16 %v704
    %v725 = vunpack.c.l.b16 %v705
    %v726 = vunpack.c.h.b16 %v705
    %v727 = vunpack.c.l.b16 %v706
    %v728 = vunpack.c.h.b16 %v706
    %v729 = vunpack.c.l.b16 %v707
    %v730 = vunpack.c.h.b16 %v707
    %v731 = vunpack.c.l.b16 %v708
    %v732 = vunpack.c.h.b16 %v708
    %v733 = vpack.c.b16 %v721, %v717
    %v734 = vpack.c.b16 %v722, %v718
    %v735 = vpack.c.b16 %v723, %v719
    %v736 = vpack.c.b16 %v724, %v720
    %v737 = vpack.c.b16 %v729, %v725
    %v738 = vpack.c.b16 %v730, %v726
    %v739 = vpack.c.b16 %v731, %v727
    %v740 = vpack.c.b16 %v732, %v728
    %s749 = scalar_lea.vmem %s5, 8
    %v750 = vld [vmem:[%s749] sm:$0xf]
    %v751 = vld [vmem:[%s749 + $0x4] sm:$0xf]
    %v754 = vunpack.c.l.b16 %v750
    %v755 = vunpack.c.l.b16 %v751
    %v756 = vpack.c.b16 %v755, %v754
    %v758 = vsel %vm355, %v756, 0
    %760 = vmatpush.bf16.msra.mxu0 0
    %761 = vmatpush.bf16.msra.mxu0 0
    %762 = vmatpush.bf16.msra.mxu0 0
    %763 = vmatpush.bf16.msra.mxu0 0
    %764 = vmatpush.bf16.msra.mxu0 0
    %765 = vmatpush.bf16.msra.mxu0 %v206
    %766 = vmatpush.bf16.msra.mxu0 %v737
    %767 = vmatpush.bf16.msra.mxu0 %v733
    %768 = vmatmul.bf16.gmra.mxu0 %v758
    %v769 = vpop.f32.mrf.mxu0
    %v770 = vadd.f32 0.0, %v769
    %v771 = vpop.f32.mrf.mxu0
    %v772 = vadd.f32 0.0, %v771
    %773 = vdwg.mxu0
    %774 = vmatpush.bf16.msra.mxu0 0
    %775 = vmatpush.bf16.msra.mxu0 0
    %776 = vmatpush.bf16.msra.mxu0 0
    %777 = vmatpush.bf16.msra.mxu0 0
    %778 = vmatpush.bf16.msra.mxu0 0
    %779 = vmatpush.bf16.msra.mxu0 %v206
    %780 = vmatpush.bf16.msra.mxu0 %v738
    %781 = vmatpush.bf16.msra.mxu0 %v734
    %782 = vmatmul.bf16.gmra.mxu0 %v758
    %v783 = vpop.f32.mrf.mxu0
    %v784 = vadd.f32 0.0, %v783
    %v785 = vpop.f32.mrf.mxu0
    %v786 = vadd.f32 0.0, %v785
    %787 = vdwg.mxu0
    %788 = vmatpush.bf16.msra.mxu0 0
    %789 = vmatpush.bf16.msra.mxu0 0
    %790 = vmatpush.bf16.msra.mxu0 0
    %791 = vmatpush.bf16.msra.mxu0 0
    %792 = vmatpush.bf16.msra.mxu0 0
    %793 = vmatpush.bf16.msra.mxu0 %v206
    %794 = vmatpush.bf16.msra.mxu0 %v739
    %795 = vmatpush.bf16.msra.mxu0 %v735
    %796 = vmatmul.bf16.gmra.mxu0 %v758
    %v797 = vpop.f32.mrf.mxu0
    %v798 = vadd.f32 0.0, %v797
    %v799 = vpop.f32.mrf.mxu0
    %v800 = vadd.f32 0.0, %v799
    %801 = vdwg.mxu0
    %802 = vmatpush.bf16.msra.mxu0 0
    %803 = vmatpush.bf16.msra.mxu0 0
    %804 = vmatpush.bf16.msra.mxu0 0
    %805 = vmatpush.bf16.msra.mxu0 0
    %806 = vmatpush.bf16.msra.mxu0 0
    %807 = vmatpush.bf16.msra.mxu0 %v206
    %808 = vmatpush.bf16.msra.mxu0 %v740
    %809 = vmatpush.bf16.msra.mxu0 %v736
    %810 = vmatmul.bf16.gmra.mxu0 %v758
    %v811 = vpop.f32.mrf.mxu0
    %v812 = vadd.f32 0.0, %v811
    %v813 = vpop.f32.mrf.mxu0
    %v814 = vadd.f32 0.0, %v813
    %815 = vdwg.mxu0
    %s816 = scalar_lea.vmem [#allocation3], 128
    %v817 = vld [vmem:[%s816] sm:$0xff]
    %v818 = vld [vmem:[%s816 + $0x8] sm:$0xff]
    %v819 = vld [vmem:[%s816 + $0x10] sm:$0xff]
    %v820 = vld [vmem:[%s816 + $0x18] sm:$0xff]
    %v821 = vld [vmem:[%s816 + $0x20] sm:$0xff]
    %v822 = vld [vmem:[%s816 + $0x28] sm:$0xff]
    %v823 = vld [vmem:[%s816 + $0x30] sm:$0xff]
    %v824 = vld [vmem:[%s816 + $0x38] sm:$0xff]
    %v825 = vmul.f32 %v770, %v817
    %v826 = vmul.f32 %v784, %v818
    %v827 = vmul.f32 %v798, %v819
    %v828 = vmul.f32 %v812, %v820
    %v829 = vmul.f32 %v772, %v821
    %v830 = vmul.f32 %v786, %v822
    %v831 = vmul.f32 %v800, %v823
    %v832 = vmul.f32 %v814, %v824
    %v833 = vadd.f32 %v825, %v829
    %v834 = vrot.slane %v833, 4
    %v835 = vadd.f32 %v833, %v834
    %v836 = vrot.slane %v835, 2
    %v837 = vadd.f32 %v835, %v836
    %v838 = vrot.slane %v837, 1
    %v839 = vadd.f32 %v837, %v838
    %v840 = vadd.f32 %v826, %v830
    %v841 = vrot.slane %v840, 4
    %v842 = vadd.f32 %v840, %v841
    %v843 = vrot.slane %v842, 2
    %v844 = vadd.f32 %v842, %v843
    %v845 = vrot.slane %v844, 1
    %v846 = vadd.f32 %v844, %v845
    %v847 = vadd.f32 %v827, %v831
    %v848 = vrot.slane %v847, 4
    %v849 = vadd.f32 %v847, %v848
    %v850 = vrot.slane %v849, 2
    %v851 = vadd.f32 %v849, %v850
    %v852 = vrot.slane %v851, 1
    %v853 = vadd.f32 %v851, %v852
    %v854 = vadd.f32 %v828, %v832
    %v855 = vrot.slane %v854, 4
    %v856 = vadd.f32 %v854, %v855
    %v857 = vrot.slane %v856, 2
    %v858 = vadd.f32 %v856, %v857
    %v859 = vrot.slane %v858, 1
    %v860 = vadd.f32 %v858, %v859
    %vm861 = vcmp.lt.f32.partialorder %v512, 50.0
    %vm862 = vcmp.lt.f32.partialorder %v513, 50.0
    %vm863 = vcmp.lt.f32.partialorder %v514, 50.0
    %vm864 = vcmp.lt.f32.partialorder %v515, 50.0
    %vm865 = vcmp.ge.f32.partialorder %v512, 70.0
    %vm866 = vcmp.ge.f32.partialorder %v513, 70.0
    %vm867 = vcmp.ge.f32.partialorder %v514, 70.0
    %vm868 = vcmp.ge.f32.partialorder %v515, 70.0
    %v869 = vsub.f32 %v512, 50.0
    %v870 = vsub.f32 %v513, 50.0
    %v871 = vsub.f32 %v514, 50.0
    %v872 = vsub.f32 %v515, 50.0
    %v873 = vmul.f32 %v869, -0.009
    %v874 = vmul.f32 %v870, -0.009
    %v875 = vmul.f32 %v871, -0.009
    %v876 = vmul.f32 %v872, -0.009
    %v877 = vadd.f32 %v873, 0.2
    %v878 = vadd.f32 %v874, 0.2
    %v879 = vadd.f32 %v875, 0.2
    %v880 = vadd.f32 %v876, 0.2
    %v881 = vsel %vm865, 0.02, %v877
    %v882 = vsel %vm866, 0.02, %v878
    %v883 = vsel %vm867, 0.02, %v879
    %v884 = vsel %vm868, 0.02, %v880
    %v885 = vsel %vm861, 0.2, %v881
    %v886 = vsel %vm862, 0.2, %v882
    %v887 = vsel %vm863, 0.2, %v883
    %v888 = vsel %vm864, 0.2, %v884
    %v889 = vmul.f32 %v885, 0.33333334
    %v890 = vmul.f32 %v886, 0.33333334
    %v891 = vmul.f32 %v887, 0.33333334
    %v892 = vmul.f32 %v888, 0.33333334
    %v893 = vmul.f32 %v889, %v512
    %v894 = vmul.f32 %v890, %v513
    %v895 = vmul.f32 %v891, %v514
    %v896 = vmul.f32 %v892, %v515
    %v897 = vmul.f32 %v512, 0.02
    %v898 = vmul.f32 %v513, 0.02
    %v899 = vmul.f32 %v514, 0.02
    %v900 = vmul.f32 %v515, 0.02
    %v901 = vadd.f32 %v893, %v897
    %v902 = vadd.f32 %v894, %v898
    %v903 = vadd.f32 %v895, %v899
    %v904 = vadd.f32 %v896, %v900
    %v905 = vmul.f32 %v901, 0.125
    %v906 = vmul.f32 %v902, 0.125
    %v907 = vmul.f32 %v903, 0.125
    %v908 = vmul.f32 %v904, 0.125
    %v909 = vadd.f32 %v512, %v905
    %v910 = vadd.f32 %v513, %v906
    %v911 = vadd.f32 %v514, %v907
    %v912 = vadd.f32 %v515, %v908
    %v913 = vadd.f32 %v909, %v839
    %v914 = vadd.f32 %v910, %v846
    %v915 = vadd.f32 %v911, %v853
    %v916 = vadd.f32 %v912, %v860
    %v917 = vmul.f32 %v556, 0.02
    %v918 = vmul.f32 %v557, 0.02
    %v919 = vmul.f32 %v558, 0.02
    %v920 = vmul.f32 %v559, 0.02
    %v921 = vmul.f32 %v560, 0.02
    %v922 = vmul.f32 %v561, 0.02
    %v923 = vmul.f32 %v562, 0.02
    %v924 = vmul.f32 %v563, 0.02
    %v925 = vmul.f32 %v917, 0.125
    %v926 = vmul.f32 %v918, 0.125
    %v927 = vmul.f32 %v919, 0.125
    %v928 = vmul.f32 %v920, 0.125
    %v929 = vmul.f32 %v921, 0.125
    %v930 = vmul.f32 %v922, 0.125
    %v931 = vmul.f32 %v923, 0.125
    %v932 = vmul.f32 %v924, 0.125
    %v933 = vadd.f32 %v556, %v925
    %v934 = vadd.f32 %v557, %v926
    %v935 = vadd.f32 %v558, %v927
    %v936 = vadd.f32 %v559, %v928
    %v937 = vadd.f32 %v560, %v929
    %v938 = vadd.f32 %v561, %v930
    %v939 = vadd.f32 %v562, %v931
    %v940 = vadd.f32 %v563, %v932
    %v941 = vmul.f32 %v556, 0.2
    %v942 = vmul.f32 %v557, 0.2
    %v943 = vmul.f32 %v558, 0.2
    %v944 = vmul.f32 %v559, 0.2
    %v945 = vmul.f32 %v560, 0.2
    %v946 = vmul.f32 %v561, 0.2
    %v947 = vmul.f32 %v562, 0.2
    %v948 = vmul.f32 %v563, 0.2
    %v949 = vmul.f32 %v941, %v817
    %v950 = vmul.f32 %v942, %v818
    %v951 = vmul.f32 %v943, %v819
    %v952 = vmul.f32 %v944, %v820
    %v953 = vmul.f32 %v945, %v821
    %v954 = vmul.f32 %v946, %v822
    %v955 = vmul.f32 %v947, %v823
    %v956 = vmul.f32 %v948, %v824
    %v957 = vadd.f32 %v933, %v949
    %v958 = vadd.f32 %v934, %v950
    %v959 = vadd.f32 %v935, %v951
    %v960 = vadd.f32 %v936, %v952
    %v961 = vadd.f32 %v937, %v953
    %v962 = vadd.f32 %v938, %v954
    %v963 = vadd.f32 %v939, %v955
    %v964 = vadd.f32 %v940, %v956
    %v965 = vpack.c.bf16 %v958, %v957
    %v966 = vpack.c.bf16 %v960, %v959
    %v967 = vpack.c.bf16 %v962, %v961
    %v968 = vpack.c.bf16 %v964, %v963
    %v973 = vunpack.c.l.b16 %v965
    %v974 = vunpack.c.h.b16 %v965
    %v975 = vunpack.c.l.b16 %v966
    %v976 = vunpack.c.h.b16 %v966
    %v977 = vunpack.c.l.b16 %v967
    %v978 = vunpack.c.h.b16 %v967
    %v979 = vunpack.c.l.b16 %v968
    %v980 = vunpack.c.h.b16 %v968
    %v981 = vpack.c.b16 %v977, %v973
    %v982 = vpack.c.b16 %v978, %v974
    %v983 = vpack.c.b16 %v979, %v975
    %v984 = vpack.c.b16 %v980, %v976
    %s989 = scalar_lea.vmem %s4, 32
    %v990 = vld [vmem:[%s989] sm:$0xf]
    %v991 = vld [vmem:[%s989 + $0x4] sm:$0xf]
    %v992 = vld [vmem:[%s989 + $0x8] sm:$0xf]
    %v993 = vld [vmem:[%s989 + $0xc] sm:$0xf]
    %v998 = vunpack.c.l.b16 %v990
    %v999 = vunpack.c.l.b16 %v991
    %v1000 = vunpack.c.l.b16 %v992
    %v1001 = vunpack.c.l.b16 %v993
    %v1002 = vpack.c.b16 %v999, %v998
    %v1003 = vpack.c.b16 %v1001, %v1000
    %v1005 = vsel %vm195, %v1002, 0
    %v1008 = vsel %vm195, %v1003, 0
    %1010 = vmatpush.bf16.msra.mxu0 0
    %1011 = vmatpush.bf16.msra.mxu0 0
    %1012 = vmatpush.bf16.msra.mxu0 0
    %1013 = vmatpush.bf16.msra.mxu0 0
    %1014 = vmatpush.bf16.msra.mxu0 0
    %1015 = vmatpush.bf16.msra.mxu0 0
    %1016 = vmatpush.bf16.msra.mxu0 %v206
    %1017 = vmatpush.bf16.msra.mxu0 %v981
    %1018 = vmatmul.bf16.gmra.mxu0 %v1005
    %v1019 = vpop.f32.mrf.mxu0
    %v1020 = vadd.f32 0.0, %v1019
    %v1021 = vpop.f32.mrf.mxu0
    %v1022 = vadd.f32 0.0, %v1021
    %1023 = vmatmul.bf16.gmra.mxu0 %v1008
    %v1024 = vpop.f32.mrf.mxu0
    %v1025 = vadd.f32 0.0, %v1024
    %v1026 = vpop.f32.mrf.mxu0
    %v1027 = vadd.f32 0.0, %v1026
    %1028 = vdwg.mxu0
    %1029 = vmatpush.bf16.msra.mxu0 0
    %1030 = vmatpush.bf16.msra.mxu0 0
    %1031 = vmatpush.bf16.msra.mxu0 0
    %1032 = vmatpush.bf16.msra.mxu0 0
    %1033 = vmatpush.bf16.msra.mxu0 0
    %1034 = vmatpush.bf16.msra.mxu0 0
    %1035 = vmatpush.bf16.msra.mxu0 %v206
    %1036 = vmatpush.bf16.msra.mxu0 %v982
    %1037 = vmatmul.bf16.gmra.mxu0 %v1005
    %v1038 = vpop.f32.mrf.mxu0
    %v1039 = vadd.f32 0.0, %v1038
    %v1040 = vpop.f32.mrf.mxu0
    %v1041 = vadd.f32 0.0, %v1040
    %1042 = vmatmul.bf16.gmra.mxu0 %v1008
    %v1043 = vpop.f32.mrf.mxu0
    %v1044 = vadd.f32 0.0, %v1043
    %v1045 = vpop.f32.mrf.mxu0
    %v1046 = vadd.f32 0.0, %v1045
    %1047 = vdwg.mxu0
    %1048 = vmatpush.bf16.msra.mxu0 0
    %1049 = vmatpush.bf16.msra.mxu0 0
    %1050 = vmatpush.bf16.msra.mxu0 0
    %1051 = vmatpush.bf16.msra.mxu0 0
    %1052 = vmatpush.bf16.msra.mxu0 0
    %1053 = vmatpush.bf16.msra.mxu0 0
    %1054 = vmatpush.bf16.msra.mxu0 %v206
    %1055 = vmatpush.bf16.msra.mxu0 %v983
    %1056 = vmatmul.bf16.gmra.mxu0 %v1005
    %v1057 = vpop.f32.mrf.mxu0
    %v1058 = vadd.f32 0.0, %v1057
    %v1059 = vpop.f32.mrf.mxu0
    %v1060 = vadd.f32 0.0, %v1059
    %1061 = vmatmul.bf16.gmra.mxu0 %v1008
    %v1062 = vpop.f32.mrf.mxu0
    %v1063 = vadd.f32 0.0, %v1062
    %v1064 = vpop.f32.mrf.mxu0
    %v1065 = vadd.f32 0.0, %v1064
    %1066 = vdwg.mxu0
    %1067 = vmatpush.bf16.msra.mxu0 0
    %1068 = vmatpush.bf16.msra.mxu0 0
    %1069 = vmatpush.bf16.msra.mxu0 0
    %1070 = vmatpush.bf16.msra.mxu0 0
    %1071 = vmatpush.bf16.msra.mxu0 0
    %1072 = vmatpush.bf16.msra.mxu0 0
    %1073 = vmatpush.bf16.msra.mxu0 %v206
    %1074 = vmatpush.bf16.msra.mxu0 %v984
    %1075 = vmatmul.bf16.gmra.mxu0 %v1005
    %v1076 = vpop.f32.mrf.mxu0
    %v1077 = vadd.f32 0.0, %v1076
    %v1078 = vpop.f32.mrf.mxu0
    %v1079 = vadd.f32 0.0, %v1078
    %1080 = vmatmul.bf16.gmra.mxu0 %v1008
    %v1081 = vpop.f32.mrf.mxu0
    %v1082 = vadd.f32 0.0, %v1081
    %v1083 = vpop.f32.mrf.mxu0
    %v1084 = vadd.f32 0.0, %v1083
    %1085 = vdwg.mxu0
    %v1086 = vmax.f32 %v1020, 0.0
    %v1087 = vmax.f32 %v1039, 0.0
    %v1088 = vmax.f32 %v1058, 0.0
    %v1089 = vmax.f32 %v1077, 0.0
    %v1090 = vmax.f32 %v1022, 0.0
    %v1091 = vmax.f32 %v1041, 0.0
    %v1092 = vmax.f32 %v1060, 0.0
    %v1093 = vmax.f32 %v1079, 0.0
    %v1094 = vmax.f32 %v1025, 0.0
    %v1095 = vmax.f32 %v1044, 0.0
    %v1096 = vmax.f32 %v1063, 0.0
    %v1097 = vmax.f32 %v1082, 0.0
    %v1098 = vmax.f32 %v1027, 0.0
    %v1099 = vmax.f32 %v1046, 0.0
    %v1100 = vmax.f32 %v1065, 0.0
    %v1101 = vmax.f32 %v1084, 0.0
    %v1102 = vpack.c.bf16 %v1087, %v1086
    %v1103 = vpack.c.bf16 %v1089, %v1088
    %v1104 = vpack.c.bf16 %v1091, %v1090
    %v1105 = vpack.c.bf16 %v1093, %v1092
    %v1106 = vpack.c.bf16 %v1095, %v1094
    %v1107 = vpack.c.bf16 %v1097, %v1096
    %v1108 = vpack.c.bf16 %v1099, %v1098
    %v1109 = vpack.c.bf16 %v1101, %v1100
    %v1118 = vunpack.c.l.b16 %v1102
    %v1119 = vunpack.c.h.b16 %v1102
    %v1120 = vunpack.c.l.b16 %v1103
    %v1121 = vunpack.c.h.b16 %v1103
    %v1122 = vunpack.c.l.b16 %v1104
    %v1123 = vunpack.c.h.b16 %v1104
    %v1124 = vunpack.c.l.b16 %v1105
    %v1125 = vunpack.c.h.b16 %v1105
    %v1126 = vunpack.c.l.b16 %v1106
    %v1127 = vunpack.c.h.b16 %v1106
    %v1128 = vunpack.c.l.b16 %v1107
    %v1129 = vunpack.c.h.b16 %v1107
    %v1130 = vunpack.c.l.b16 %v1108
    %v1131 = vunpack.c.h.b16 %v1108
    %v1132 = vunpack.c.l.b16 %v1109
    %v1133 = vunpack.c.h.b16 %v1109
    %v1134 = vpack.c.b16 %v1122, %v1118
    %v1135 = vpack.c.b16 %v1123, %v1119
    %v1136 = vpack.c.b16 %v1124, %v1120
    %v1137 = vpack.c.b16 %v1125, %v1121
    %v1138 = vpack.c.b16 %v1130, %v1126
    %v1139 = vpack.c.b16 %v1131, %v1127
    %v1140 = vpack.c.b16 %v1132, %v1128
    %v1141 = vpack.c.b16 %v1133, %v1129
    %s1150 = scalar_lea.vmem %s5, 16
    %v1151 = vld [vmem:[%s1150] sm:$0xf]
    %v1152 = vld [vmem:[%s1150 + $0x4] sm:$0xf]
    %v1155 = vunpack.c.l.b16 %v1151
    %v1156 = vunpack.c.l.b16 %v1152
    %v1157 = vpack.c.b16 %v1156, %v1155
    %v1159 = vsel %vm355, %v1157, 0
    %1161 = vmatpush.bf16.msra.mxu0 0
    %1162 = vmatpush.bf16.msra.mxu0 0
    %1163 = vmatpush.bf16.msra.mxu0 0
    %1164 = vmatpush.bf16.msra.mxu0 0
    %1165 = vmatpush.bf16.msra.mxu0 0
    %1166 = vmatpush.bf16.msra.mxu0 %v206
    %1167 = vmatpush.bf16.msra.mxu0 %v1138
    %1168 = vmatpush.bf16.msra.mxu0 %v1134
    %1169 = vmatmul.bf16.gmra.mxu0 %v1159
    %v1170 = vpop.f32.mrf.mxu0
    %v1171 = vadd.f32 0.0, %v1170
    %v1172 = vpop.f32.mrf.mxu0
    %v1173 = vadd.f32 0.0, %v1172
    %1174 = vdwg.mxu0
    %1175 = vmatpush.bf16.msra.mxu0 0
    %1176 = vmatpush.bf16.msra.mxu0 0
    %1177 = vmatpush.bf16.msra.mxu0 0
    %1178 = vmatpush.bf16.msra.mxu0 0
    %1179 = vmatpush.bf16.msra.mxu0 0
    %1180 = vmatpush.bf16.msra.mxu0 %v206
    %1181 = vmatpush.bf16.msra.mxu0 %v1139
    %1182 = vmatpush.bf16.msra.mxu0 %v1135
    %1183 = vmatmul.bf16.gmra.mxu0 %v1159
    %v1184 = vpop.f32.mrf.mxu0
    %v1185 = vadd.f32 0.0, %v1184
    %v1186 = vpop.f32.mrf.mxu0
    %v1187 = vadd.f32 0.0, %v1186
    %1188 = vdwg.mxu0
    %1189 = vmatpush.bf16.msra.mxu0 0
    %1190 = vmatpush.bf16.msra.mxu0 0
    %1191 = vmatpush.bf16.msra.mxu0 0
    %1192 = vmatpush.bf16.msra.mxu0 0
    %1193 = vmatpush.bf16.msra.mxu0 0
    %1194 = vmatpush.bf16.msra.mxu0 %v206
    %1195 = vmatpush.bf16.msra.mxu0 %v1140
    %1196 = vmatpush.bf16.msra.mxu0 %v1136
    %1197 = vmatmul.bf16.gmra.mxu0 %v1159
    %v1198 = vpop.f32.mrf.mxu0
    %v1199 = vadd.f32 0.0, %v1198
    %v1200 = vpop.f32.mrf.mxu0
    %v1201 = vadd.f32 0.0, %v1200
    %1202 = vdwg.mxu0
    %1203 = vmatpush.bf16.msra.mxu0 0
    %1204 = vmatpush.bf16.msra.mxu0 0
    %1205 = vmatpush.bf16.msra.mxu0 0
    %1206 = vmatpush.bf16.msra.mxu0 0
    %1207 = vmatpush.bf16.msra.mxu0 0
    %1208 = vmatpush.bf16.msra.mxu0 %v206
    %1209 = vmatpush.bf16.msra.mxu0 %v1141
    %1210 = vmatpush.bf16.msra.mxu0 %v1137
    %1211 = vmatmul.bf16.gmra.mxu0 %v1159
    %v1212 = vpop.f32.mrf.mxu0
    %v1213 = vadd.f32 0.0, %v1212
    %v1214 = vpop.f32.mrf.mxu0
    %v1215 = vadd.f32 0.0, %v1214
    %1216 = vdwg.mxu0
    %s1217 = scalar_lea.vmem [#allocation3], 192
    %v1218 = vld [vmem:[%s1217] sm:$0xff]
    %v1219 = vld [vmem:[%s1217 + $0x8] sm:$0xff]
    %v1220 = vld [vmem:[%s1217 + $0x10] sm:$0xff]
    %v1221 = vld [vmem:[%s1217 + $0x18] sm:$0xff]
    %v1222 = vld [vmem:[%s1217 + $0x20] sm:$0xff]
    %v1223 = vld [vmem:[%s1217 + $0x28] sm:$0xff]
    %v1224 = vld [vmem:[%s1217 + $0x30] sm:$0xff]
    %v1225 = vld [vmem:[%s1217 + $0x38] sm:$0xff]
    %v1226 = vmul.f32 %v1171, %v1218
    %v1227 = vmul.f32 %v1185, %v1219
    %v1228 = vmul.f32 %v1199, %v1220
    %v1229 = vmul.f32 %v1213, %v1221
    %v1230 = vmul.f32 %v1173, %v1222
    %v1231 = vmul.f32 %v1187, %v1223
    %v1232 = vmul.f32 %v1201, %v1224
    %v1233 = vmul.f32 %v1215, %v1225
    %v1234 = vadd.f32 %v1226, %v1230
    %v1235 = vrot.slane %v1234, 4
    %v1236 = vadd.f32 %v1234, %v1235
    %v1237 = vrot.slane %v1236, 2
    %v1238 = vadd.f32 %v1236, %v1237
    %v1239 = vrot.slane %v1238, 1
    %v1240 = vadd.f32 %v1238, %v1239
    %v1241 = vadd.f32 %v1227, %v1231
    %v1242 = vrot.slane %v1241, 4
    %v1243 = vadd.f32 %v1241, %v1242
    %v1244 = vrot.slane %v1243, 2
    %v1245 = vadd.f32 %v1243, %v1244
    %v1246 = vrot.slane %v1245, 1
    %v1247 = vadd.f32 %v1245, %v1246
    %v1248 = vadd.f32 %v1228, %v1232
    %v1249 = vrot.slane %v1248, 4
    %v1250 = vadd.f32 %v1248, %v1249
    %v1251 = vrot.slane %v1250, 2
    %v1252 = vadd.f32 %v1250, %v1251
    %v1253 = vrot.slane %v1252, 1
    %v1254 = vadd.f32 %v1252, %v1253
    %v1255 = vadd.f32 %v1229, %v1233
    %v1256 = vrot.slane %v1255, 4
    %v1257 = vadd.f32 %v1255, %v1256
    %v1258 = vrot.slane %v1257, 2
    %v1259 = vadd.f32 %v1257, %v1258
    %v1260 = vrot.slane %v1259, 1
    %v1261 = vadd.f32 %v1259, %v1260
    %vm1262 = vcmp.lt.f32.partialorder %v913, 50.0
    %vm1263 = vcmp.lt.f32.partialorder %v914, 50.0
    %vm1264 = vcmp.lt.f32.partialorder %v915, 50.0
    %vm1265 = vcmp.lt.f32.partialorder %v916, 50.0
    %vm1266 = vcmp.ge.f32.partialorder %v913, 70.0
    %vm1267 = vcmp.ge.f32.partialorder %v914, 70.0
    %vm1268 = vcmp.ge.f32.partialorder %v915, 70.0
    %vm1269 = vcmp.ge.f32.partialorder %v916, 70.0
    %v1270 = vsub.f32 %v913, 50.0
    %v1271 = vsub.f32 %v914, 50.0
    %v1272 = vsub.f32 %v915, 50.0
    %v1273 = vsub.f32 %v916, 50.0
    %v1274 = vmul.f32 %v1270, -0.009
    %v1275 = vmul.f32 %v1271, -0.009
    %v1276 = vmul.f32 %v1272, -0.009
    %v1277 = vmul.f32 %v1273, -0.009
    %v1278 = vadd.f32 %v1274, 0.2
    %v1279 = vadd.f32 %v1275, 0.2
    %v1280 = vadd.f32 %v1276, 0.2
    %v1281 = vadd.f32 %v1277, 0.2
    %v1282 = vsel %vm1266, 0.02, %v1278
    %v1283 = vsel %vm1267, 0.02, %v1279
    %v1284 = vsel %vm1268, 0.02, %v1280
    %v1285 = vsel %vm1269, 0.02, %v1281
    %v1286 = vsel %vm1262, 0.2, %v1282
    %v1287 = vsel %vm1263, 0.2, %v1283
    %v1288 = vsel %vm1264, 0.2, %v1284
    %v1289 = vsel %vm1265, 0.2, %v1285
    %v1290 = vmul.f32 %v1286, 0.33333334
    %v1291 = vmul.f32 %v1287, 0.33333334
    %v1292 = vmul.f32 %v1288, 0.33333334
    %v1293 = vmul.f32 %v1289, 0.33333334
    %v1294 = vmul.f32 %v1290, %v913
    %v1295 = vmul.f32 %v1291, %v914
    %v1296 = vmul.f32 %v1292, %v915
    %v1297 = vmul.f32 %v1293, %v916
    %v1298 = vmul.f32 %v913, 0.02
    %v1299 = vmul.f32 %v914, 0.02
    %v1300 = vmul.f32 %v915, 0.02
    %v1301 = vmul.f32 %v916, 0.02
    %v1302 = vadd.f32 %v1294, %v1298
    %v1303 = vadd.f32 %v1295, %v1299
    %v1304 = vadd.f32 %v1296, %v1300
    %v1305 = vadd.f32 %v1297, %v1301
    %v1306 = vmul.f32 %v1302, 0.125
    %v1307 = vmul.f32 %v1303, 0.125
    %v1308 = vmul.f32 %v1304, 0.125
    %v1309 = vmul.f32 %v1305, 0.125
    %v1310 = vadd.f32 %v913, %v1306
    %v1311 = vadd.f32 %v914, %v1307
    %v1312 = vadd.f32 %v915, %v1308
    %v1313 = vadd.f32 %v916, %v1309
    %v1314 = vadd.f32 %v1310, %v1240
    %v1315 = vadd.f32 %v1311, %v1247
    %v1316 = vadd.f32 %v1312, %v1254
    %v1317 = vadd.f32 %v1313, %v1261
    %v1318 = vmul.f32 %v957, 0.02
    %v1319 = vmul.f32 %v958, 0.02
    %v1320 = vmul.f32 %v959, 0.02
    %v1321 = vmul.f32 %v960, 0.02
    %v1322 = vmul.f32 %v961, 0.02
    %v1323 = vmul.f32 %v962, 0.02
    %v1324 = vmul.f32 %v963, 0.02
    %v1325 = vmul.f32 %v964, 0.02
    %v1326 = vmul.f32 %v1318, 0.125
    %v1327 = vmul.f32 %v1319, 0.125
    %v1328 = vmul.f32 %v1320, 0.125
    %v1329 = vmul.f32 %v1321, 0.125
    %v1330 = vmul.f32 %v1322, 0.125
    %v1331 = vmul.f32 %v1323, 0.125
    %v1332 = vmul.f32 %v1324, 0.125
    %v1333 = vmul.f32 %v1325, 0.125
    %v1334 = vadd.f32 %v957, %v1326
    %v1335 = vadd.f32 %v958, %v1327
    %v1336 = vadd.f32 %v959, %v1328
    %v1337 = vadd.f32 %v960, %v1329
    %v1338 = vadd.f32 %v961, %v1330
    %v1339 = vadd.f32 %v962, %v1331
    %v1340 = vadd.f32 %v963, %v1332
    %v1341 = vadd.f32 %v964, %v1333
    %v1342 = vmul.f32 %v957, 0.2
    %v1343 = vmul.f32 %v958, 0.2
    %v1344 = vmul.f32 %v959, 0.2
    %v1345 = vmul.f32 %v960, 0.2
    %v1346 = vmul.f32 %v961, 0.2
    %v1347 = vmul.f32 %v962, 0.2
    %v1348 = vmul.f32 %v963, 0.2
    %v1349 = vmul.f32 %v964, 0.2
    %v1350 = vmul.f32 %v1342, %v1218
    %v1351 = vmul.f32 %v1343, %v1219
    %v1352 = vmul.f32 %v1344, %v1220
    %v1353 = vmul.f32 %v1345, %v1221
    %v1354 = vmul.f32 %v1346, %v1222
    %v1355 = vmul.f32 %v1347, %v1223
    %v1356 = vmul.f32 %v1348, %v1224
    %v1357 = vmul.f32 %v1349, %v1225
    %v1358 = vadd.f32 %v1334, %v1350
    %v1359 = vadd.f32 %v1335, %v1351
    %v1360 = vadd.f32 %v1336, %v1352
    %v1361 = vadd.f32 %v1337, %v1353
    %v1362 = vadd.f32 %v1338, %v1354
    %v1363 = vadd.f32 %v1339, %v1355
    %v1364 = vadd.f32 %v1340, %v1356
    %v1365 = vadd.f32 %v1341, %v1357
    %v1366 = vpack.c.bf16 %v1359, %v1358
    %v1367 = vpack.c.bf16 %v1361, %v1360
    %v1368 = vpack.c.bf16 %v1363, %v1362
    %v1369 = vpack.c.bf16 %v1365, %v1364
    %v1374 = vunpack.c.l.b16 %v1366
    %v1375 = vunpack.c.h.b16 %v1366
    %v1376 = vunpack.c.l.b16 %v1367
    %v1377 = vunpack.c.h.b16 %v1367
    %v1378 = vunpack.c.l.b16 %v1368
    %v1379 = vunpack.c.h.b16 %v1368
    %v1380 = vunpack.c.l.b16 %v1369
    %v1381 = vunpack.c.h.b16 %v1369
    %v1382 = vpack.c.b16 %v1378, %v1374
    %v1383 = vpack.c.b16 %v1379, %v1375
    %v1384 = vpack.c.b16 %v1380, %v1376
    %v1385 = vpack.c.b16 %v1381, %v1377
    %s1390 = scalar_lea.vmem %s4, 48
    %v1391 = vld [vmem:[%s1390] sm:$0xf]
    %v1392 = vld [vmem:[%s1390 + $0x4] sm:$0xf]
    %v1393 = vld [vmem:[%s1390 + $0x8] sm:$0xf]
    %v1394 = vld [vmem:[%s1390 + $0xc] sm:$0xf]
    %v1399 = vunpack.c.l.b16 %v1391
    %v1400 = vunpack.c.l.b16 %v1392
    %v1401 = vunpack.c.l.b16 %v1393
    %v1402 = vunpack.c.l.b16 %v1394
    %v1403 = vpack.c.b16 %v1400, %v1399
    %v1404 = vpack.c.b16 %v1402, %v1401
    %v1406 = vsel %vm195, %v1403, 0
    %v1409 = vsel %vm195, %v1404, 0
    %1411 = vmatpush.bf16.msra.mxu0 0
    %1412 = vmatpush.bf16.msra.mxu0 0
    %1413 = vmatpush.bf16.msra.mxu0 0
    %1414 = vmatpush.bf16.msra.mxu0 0
    %1415 = vmatpush.bf16.msra.mxu0 0
    %1416 = vmatpush.bf16.msra.mxu0 0
    %1417 = vmatpush.bf16.msra.mxu0 %v206
    %1418 = vmatpush.bf16.msra.mxu0 %v1382
    %1419 = vmatmul.bf16.gmra.mxu0 %v1406
    %v1420 = vpop.f32.mrf.mxu0
    %v1421 = vadd.f32 0.0, %v1420
    %v1422 = vpop.f32.mrf.mxu0
    %v1423 = vadd.f32 0.0, %v1422
    %1424 = vmatmul.bf16.gmra.mxu0 %v1409
    %v1425 = vpop.f32.mrf.mxu0
    %v1426 = vadd.f32 0.0, %v1425
    %v1427 = vpop.f32.mrf.mxu0
    %v1428 = vadd.f32 0.0, %v1427
    %1429 = vdwg.mxu0
    %1430 = vmatpush.bf16.msra.mxu0 0
    %1431 = vmatpush.bf16.msra.mxu0 0
    %1432 = vmatpush.bf16.msra.mxu0 0
    %1433 = vmatpush.bf16.msra.mxu0 0
    %1434 = vmatpush.bf16.msra.mxu0 0
    %1435 = vmatpush.bf16.msra.mxu0 0
    %1436 = vmatpush.bf16.msra.mxu0 %v206
    %1437 = vmatpush.bf16.msra.mxu0 %v1383
    %1438 = vmatmul.bf16.gmra.mxu0 %v1406
    %v1439 = vpop.f32.mrf.mxu0
    %v1440 = vadd.f32 0.0, %v1439
    %v1441 = vpop.f32.mrf.mxu0
    %v1442 = vadd.f32 0.0, %v1441
    %1443 = vmatmul.bf16.gmra.mxu0 %v1409
    %v1444 = vpop.f32.mrf.mxu0
    %v1445 = vadd.f32 0.0, %v1444
    %v1446 = vpop.f32.mrf.mxu0
    %v1447 = vadd.f32 0.0, %v1446
    %1448 = vdwg.mxu0
    %1449 = vmatpush.bf16.msra.mxu0 0
    %1450 = vmatpush.bf16.msra.mxu0 0
    %1451 = vmatpush.bf16.msra.mxu0 0
    %1452 = vmatpush.bf16.msra.mxu0 0
    %1453 = vmatpush.bf16.msra.mxu0 0
    %1454 = vmatpush.bf16.msra.mxu0 0
    %1455 = vmatpush.bf16.msra.mxu0 %v206
    %1456 = vmatpush.bf16.msra.mxu0 %v1384
    %1457 = vmatmul.bf16.gmra.mxu0 %v1406
    %v1458 = vpop.f32.mrf.mxu0
    %v1459 = vadd.f32 0.0, %v1458
    %v1460 = vpop.f32.mrf.mxu0
    %v1461 = vadd.f32 0.0, %v1460
    %1462 = vmatmul.bf16.gmra.mxu0 %v1409
    %v1463 = vpop.f32.mrf.mxu0
    %v1464 = vadd.f32 0.0, %v1463
    %v1465 = vpop.f32.mrf.mxu0
    %v1466 = vadd.f32 0.0, %v1465
    %1467 = vdwg.mxu0
    %1468 = vmatpush.bf16.msra.mxu0 0
    %1469 = vmatpush.bf16.msra.mxu0 0
    %1470 = vmatpush.bf16.msra.mxu0 0
    %1471 = vmatpush.bf16.msra.mxu0 0
    %1472 = vmatpush.bf16.msra.mxu0 0
    %1473 = vmatpush.bf16.msra.mxu0 0
    %1474 = vmatpush.bf16.msra.mxu0 %v206
    %1475 = vmatpush.bf16.msra.mxu0 %v1385
    %1476 = vmatmul.bf16.gmra.mxu0 %v1406
    %v1477 = vpop.f32.mrf.mxu0
    %v1478 = vadd.f32 0.0, %v1477
    %v1479 = vpop.f32.mrf.mxu0
    %v1480 = vadd.f32 0.0, %v1479
    %1481 = vmatmul.bf16.gmra.mxu0 %v1409
    %v1482 = vpop.f32.mrf.mxu0
    %v1483 = vadd.f32 0.0, %v1482
    %v1484 = vpop.f32.mrf.mxu0
    %v1485 = vadd.f32 0.0, %v1484
    %1486 = vdwg.mxu0
    %v1487 = vmax.f32 %v1421, 0.0
    %v1488 = vmax.f32 %v1440, 0.0
    %v1489 = vmax.f32 %v1459, 0.0
    %v1490 = vmax.f32 %v1478, 0.0
    %v1491 = vmax.f32 %v1423, 0.0
    %v1492 = vmax.f32 %v1442, 0.0
    %v1493 = vmax.f32 %v1461, 0.0
    %v1494 = vmax.f32 %v1480, 0.0
    %v1495 = vmax.f32 %v1426, 0.0
    %v1496 = vmax.f32 %v1445, 0.0
    %v1497 = vmax.f32 %v1464, 0.0
    %v1498 = vmax.f32 %v1483, 0.0
    %v1499 = vmax.f32 %v1428, 0.0
    %v1500 = vmax.f32 %v1447, 0.0
    %v1501 = vmax.f32 %v1466, 0.0
    %v1502 = vmax.f32 %v1485, 0.0
    %v1503 = vpack.c.bf16 %v1488, %v1487
    %v1504 = vpack.c.bf16 %v1490, %v1489
    %v1505 = vpack.c.bf16 %v1492, %v1491
    %v1506 = vpack.c.bf16 %v1494, %v1493
    %v1507 = vpack.c.bf16 %v1496, %v1495
    %v1508 = vpack.c.bf16 %v1498, %v1497
    %v1509 = vpack.c.bf16 %v1500, %v1499
    %v1510 = vpack.c.bf16 %v1502, %v1501
    %v1519 = vunpack.c.l.b16 %v1503
    %v1520 = vunpack.c.h.b16 %v1503
    %v1521 = vunpack.c.l.b16 %v1504
    %v1522 = vunpack.c.h.b16 %v1504
    %v1523 = vunpack.c.l.b16 %v1505
    %v1524 = vunpack.c.h.b16 %v1505
    %v1525 = vunpack.c.l.b16 %v1506
    %v1526 = vunpack.c.h.b16 %v1506
    %v1527 = vunpack.c.l.b16 %v1507
    %v1528 = vunpack.c.h.b16 %v1507
    %v1529 = vunpack.c.l.b16 %v1508
    %v1530 = vunpack.c.h.b16 %v1508
    %v1531 = vunpack.c.l.b16 %v1509
    %v1532 = vunpack.c.h.b16 %v1509
    %v1533 = vunpack.c.l.b16 %v1510
    %v1534 = vunpack.c.h.b16 %v1510
    %v1535 = vpack.c.b16 %v1523, %v1519
    %v1536 = vpack.c.b16 %v1524, %v1520
    %v1537 = vpack.c.b16 %v1525, %v1521
    %v1538 = vpack.c.b16 %v1526, %v1522
    %v1539 = vpack.c.b16 %v1531, %v1527
    %v1540 = vpack.c.b16 %v1532, %v1528
    %v1541 = vpack.c.b16 %v1533, %v1529
    %v1542 = vpack.c.b16 %v1534, %v1530
    %s1551 = scalar_lea.vmem %s5, 24
    %v1552 = vld [vmem:[%s1551] sm:$0xf]
    %v1553 = vld [vmem:[%s1551 + $0x4] sm:$0xf]
    %v1556 = vunpack.c.l.b16 %v1552
    %v1557 = vunpack.c.l.b16 %v1553
    %v1558 = vpack.c.b16 %v1557, %v1556
    %v1560 = vsel %vm355, %v1558, 0
    %1562 = vmatpush.bf16.msra.mxu0 0
    %1563 = vmatpush.bf16.msra.mxu0 0
    %1564 = vmatpush.bf16.msra.mxu0 0
    %1565 = vmatpush.bf16.msra.mxu0 0
    %1566 = vmatpush.bf16.msra.mxu0 0
    %1567 = vmatpush.bf16.msra.mxu0 %v206
    %1568 = vmatpush.bf16.msra.mxu0 %v1539
    %1569 = vmatpush.bf16.msra.mxu0 %v1535
    %1570 = vmatmul.bf16.gmra.mxu0 %v1560
    %v1571 = vpop.f32.mrf.mxu0
    %v1572 = vadd.f32 0.0, %v1571
    %v1573 = vpop.f32.mrf.mxu0
    %v1574 = vadd.f32 0.0, %v1573
    %1575 = vdwg.mxu0
    %1576 = vmatpush.bf16.msra.mxu0 0
    %1577 = vmatpush.bf16.msra.mxu0 0
    %1578 = vmatpush.bf16.msra.mxu0 0
    %1579 = vmatpush.bf16.msra.mxu0 0
    %1580 = vmatpush.bf16.msra.mxu0 0
    %1581 = vmatpush.bf16.msra.mxu0 %v206
    %1582 = vmatpush.bf16.msra.mxu0 %v1540
    %1583 = vmatpush.bf16.msra.mxu0 %v1536
    %1584 = vmatmul.bf16.gmra.mxu0 %v1560
    %v1585 = vpop.f32.mrf.mxu0
    %v1586 = vadd.f32 0.0, %v1585
    %v1587 = vpop.f32.mrf.mxu0
    %v1588 = vadd.f32 0.0, %v1587
    %1589 = vdwg.mxu0
    %1590 = vmatpush.bf16.msra.mxu0 0
    %1591 = vmatpush.bf16.msra.mxu0 0
    %1592 = vmatpush.bf16.msra.mxu0 0
    %1593 = vmatpush.bf16.msra.mxu0 0
    %1594 = vmatpush.bf16.msra.mxu0 0
    %1595 = vmatpush.bf16.msra.mxu0 %v206
    %1596 = vmatpush.bf16.msra.mxu0 %v1541
    %1597 = vmatpush.bf16.msra.mxu0 %v1537
    %1598 = vmatmul.bf16.gmra.mxu0 %v1560
    %v1599 = vpop.f32.mrf.mxu0
    %v1600 = vadd.f32 0.0, %v1599
    %v1601 = vpop.f32.mrf.mxu0
    %v1602 = vadd.f32 0.0, %v1601
    %1603 = vdwg.mxu0
    %1604 = vmatpush.bf16.msra.mxu0 0
    %1605 = vmatpush.bf16.msra.mxu0 0
    %1606 = vmatpush.bf16.msra.mxu0 0
    %1607 = vmatpush.bf16.msra.mxu0 0
    %1608 = vmatpush.bf16.msra.mxu0 0
    %1609 = vmatpush.bf16.msra.mxu0 %v206
    %1610 = vmatpush.bf16.msra.mxu0 %v1542
    %1611 = vmatpush.bf16.msra.mxu0 %v1538
    %1612 = vmatmul.bf16.gmra.mxu0 %v1560
    %v1613 = vpop.f32.mrf.mxu0
    %v1614 = vadd.f32 0.0, %v1613
    %v1615 = vpop.f32.mrf.mxu0
    %v1616 = vadd.f32 0.0, %v1615
    %1617 = vdwg.mxu0
    %s1618 = scalar_lea.vmem [#allocation3], 256
    %v1619 = vld [vmem:[%s1618] sm:$0xff]
    %v1620 = vld [vmem:[%s1618 + $0x8] sm:$0xff]
    %v1621 = vld [vmem:[%s1618 + $0x10] sm:$0xff]
    %v1622 = vld [vmem:[%s1618 + $0x18] sm:$0xff]
    %v1623 = vld [vmem:[%s1618 + $0x20] sm:$0xff]
    %v1624 = vld [vmem:[%s1618 + $0x28] sm:$0xff]
    %v1625 = vld [vmem:[%s1618 + $0x30] sm:$0xff]
    %v1626 = vld [vmem:[%s1618 + $0x38] sm:$0xff]
    %v1627 = vmul.f32 %v1572, %v1619
    %v1628 = vmul.f32 %v1586, %v1620
    %v1629 = vmul.f32 %v1600, %v1621
    %v1630 = vmul.f32 %v1614, %v1622
    %v1631 = vmul.f32 %v1574, %v1623
    %v1632 = vmul.f32 %v1588, %v1624
    %v1633 = vmul.f32 %v1602, %v1625
    %v1634 = vmul.f32 %v1616, %v1626
    %v1635 = vadd.f32 %v1627, %v1631
    %v1636 = vrot.slane %v1635, 4
    %v1637 = vadd.f32 %v1635, %v1636
    %v1638 = vrot.slane %v1637, 2
    %v1639 = vadd.f32 %v1637, %v1638
    %v1640 = vrot.slane %v1639, 1
    %v1641 = vadd.f32 %v1639, %v1640
    %v1642 = vadd.f32 %v1628, %v1632
    %v1643 = vrot.slane %v1642, 4
    %v1644 = vadd.f32 %v1642, %v1643
    %v1645 = vrot.slane %v1644, 2
    %v1646 = vadd.f32 %v1644, %v1645
    %v1647 = vrot.slane %v1646, 1
    %v1648 = vadd.f32 %v1646, %v1647
    %v1649 = vadd.f32 %v1629, %v1633
    %v1650 = vrot.slane %v1649, 4
    %v1651 = vadd.f32 %v1649, %v1650
    %v1652 = vrot.slane %v1651, 2
    %v1653 = vadd.f32 %v1651, %v1652
    %v1654 = vrot.slane %v1653, 1
    %v1655 = vadd.f32 %v1653, %v1654
    %v1656 = vadd.f32 %v1630, %v1634
    %v1657 = vrot.slane %v1656, 4
    %v1658 = vadd.f32 %v1656, %v1657
    %v1659 = vrot.slane %v1658, 2
    %v1660 = vadd.f32 %v1658, %v1659
    %v1661 = vrot.slane %v1660, 1
    %v1662 = vadd.f32 %v1660, %v1661
    %vm1663 = vcmp.lt.f32.partialorder %v1314, 50.0
    %vm1664 = vcmp.lt.f32.partialorder %v1315, 50.0
    %vm1665 = vcmp.lt.f32.partialorder %v1316, 50.0
    %vm1666 = vcmp.lt.f32.partialorder %v1317, 50.0
    %vm1667 = vcmp.ge.f32.partialorder %v1314, 70.0
    %vm1668 = vcmp.ge.f32.partialorder %v1315, 70.0
    %vm1669 = vcmp.ge.f32.partialorder %v1316, 70.0
    %vm1670 = vcmp.ge.f32.partialorder %v1317, 70.0
    %v1671 = vsub.f32 %v1314, 50.0
    %v1672 = vsub.f32 %v1315, 50.0
    %v1673 = vsub.f32 %v1316, 50.0
    %v1674 = vsub.f32 %v1317, 50.0
    %v1675 = vmul.f32 %v1671, -0.009
    %v1676 = vmul.f32 %v1672, -0.009
    %v1677 = vmul.f32 %v1673, -0.009
    %v1678 = vmul.f32 %v1674, -0.009
    %v1679 = vadd.f32 %v1675, 0.2
    %v1680 = vadd.f32 %v1676, 0.2
    %v1681 = vadd.f32 %v1677, 0.2
    %v1682 = vadd.f32 %v1678, 0.2
    %v1683 = vsel %vm1667, 0.02, %v1679
    %v1684 = vsel %vm1668, 0.02, %v1680
    %v1685 = vsel %vm1669, 0.02, %v1681
    %v1686 = vsel %vm1670, 0.02, %v1682
    %v1687 = vsel %vm1663, 0.2, %v1683
    %v1688 = vsel %vm1664, 0.2, %v1684
    %v1689 = vsel %vm1665, 0.2, %v1685
    %v1690 = vsel %vm1666, 0.2, %v1686
    %v1691 = vmul.f32 %v1687, 0.33333334
    %v1692 = vmul.f32 %v1688, 0.33333334
    %v1693 = vmul.f32 %v1689, 0.33333334
    %v1694 = vmul.f32 %v1690, 0.33333334
    %v1695 = vmul.f32 %v1691, %v1314
    %v1696 = vmul.f32 %v1692, %v1315
    %v1697 = vmul.f32 %v1693, %v1316
    %v1698 = vmul.f32 %v1694, %v1317
    %v1699 = vmul.f32 %v1314, 0.02
    %v1700 = vmul.f32 %v1315, 0.02
    %v1701 = vmul.f32 %v1316, 0.02
    %v1702 = vmul.f32 %v1317, 0.02
    %v1703 = vadd.f32 %v1695, %v1699
    %v1704 = vadd.f32 %v1696, %v1700
    %v1705 = vadd.f32 %v1697, %v1701
    %v1706 = vadd.f32 %v1698, %v1702
    %v1707 = vmul.f32 %v1703, 0.125
    %v1708 = vmul.f32 %v1704, 0.125
    %v1709 = vmul.f32 %v1705, 0.125
    %v1710 = vmul.f32 %v1706, 0.125
    %v1711 = vadd.f32 %v1314, %v1707
    %v1712 = vadd.f32 %v1315, %v1708
    %v1713 = vadd.f32 %v1316, %v1709
    %v1714 = vadd.f32 %v1317, %v1710
    %v1715 = vadd.f32 %v1711, %v1641
    %v1716 = vadd.f32 %v1712, %v1648
    %v1717 = vadd.f32 %v1713, %v1655
    %v1718 = vadd.f32 %v1714, %v1662
    %v1719 = vmul.f32 %v1358, 0.02
    %v1720 = vmul.f32 %v1359, 0.02
    %v1721 = vmul.f32 %v1360, 0.02
    %v1722 = vmul.f32 %v1361, 0.02
    %v1723 = vmul.f32 %v1362, 0.02
    %v1724 = vmul.f32 %v1363, 0.02
    %v1725 = vmul.f32 %v1364, 0.02
    %v1726 = vmul.f32 %v1365, 0.02
    %v1727 = vmul.f32 %v1719, 0.125
    %v1728 = vmul.f32 %v1720, 0.125
    %v1729 = vmul.f32 %v1721, 0.125
    %v1730 = vmul.f32 %v1722, 0.125
    %v1731 = vmul.f32 %v1723, 0.125
    %v1732 = vmul.f32 %v1724, 0.125
    %v1733 = vmul.f32 %v1725, 0.125
    %v1734 = vmul.f32 %v1726, 0.125
    %v1735 = vadd.f32 %v1358, %v1727
    %v1736 = vadd.f32 %v1359, %v1728
    %v1737 = vadd.f32 %v1360, %v1729
    %v1738 = vadd.f32 %v1361, %v1730
    %v1739 = vadd.f32 %v1362, %v1731
    %v1740 = vadd.f32 %v1363, %v1732
    %v1741 = vadd.f32 %v1364, %v1733
    %v1742 = vadd.f32 %v1365, %v1734
    %v1743 = vmul.f32 %v1358, 0.2
    %v1744 = vmul.f32 %v1359, 0.2
    %v1745 = vmul.f32 %v1360, 0.2
    %v1746 = vmul.f32 %v1361, 0.2
    %v1747 = vmul.f32 %v1362, 0.2
    %v1748 = vmul.f32 %v1363, 0.2
    %v1749 = vmul.f32 %v1364, 0.2
    %v1750 = vmul.f32 %v1365, 0.2
    %v1751 = vmul.f32 %v1743, %v1619
    %v1752 = vmul.f32 %v1744, %v1620
    %v1753 = vmul.f32 %v1745, %v1621
    %v1754 = vmul.f32 %v1746, %v1622
    %v1755 = vmul.f32 %v1747, %v1623
    %v1756 = vmul.f32 %v1748, %v1624
    %v1757 = vmul.f32 %v1749, %v1625
    %v1758 = vmul.f32 %v1750, %v1626
    %v1759 = vadd.f32 %v1735, %v1751
    %v1760 = vadd.f32 %v1736, %v1752
    %v1761 = vadd.f32 %v1737, %v1753
    %v1762 = vadd.f32 %v1738, %v1754
    %v1763 = vadd.f32 %v1739, %v1755
    %v1764 = vadd.f32 %v1740, %v1756
    %v1765 = vadd.f32 %v1741, %v1757
    %v1766 = vadd.f32 %v1742, %v1758
    %v1767 = vpack.c.bf16 %v1760, %v1759
    %v1768 = vpack.c.bf16 %v1762, %v1761
    %v1769 = vpack.c.bf16 %v1764, %v1763
    %v1770 = vpack.c.bf16 %v1766, %v1765
    %v1775 = vunpack.c.l.b16 %v1767
    %v1776 = vunpack.c.h.b16 %v1767
    %v1777 = vunpack.c.l.b16 %v1768
    %v1778 = vunpack.c.h.b16 %v1768
    %v1779 = vunpack.c.l.b16 %v1769
    %v1780 = vunpack.c.h.b16 %v1769
    %v1781 = vunpack.c.l.b16 %v1770
    %v1782 = vunpack.c.h.b16 %v1770
    %v1783 = vpack.c.b16 %v1779, %v1775
    %v1784 = vpack.c.b16 %v1780, %v1776
    %v1785 = vpack.c.b16 %v1781, %v1777
    %v1786 = vpack.c.b16 %v1782, %v1778
    %s1791 = scalar_lea.vmem %s4, 64
    %v1792 = vld [vmem:[%s1791] sm:$0xf]
    %v1793 = vld [vmem:[%s1791 + $0x4] sm:$0xf]
    %v1794 = vld [vmem:[%s1791 + $0x8] sm:$0xf]
    %v1795 = vld [vmem:[%s1791 + $0xc] sm:$0xf]
    %v1800 = vunpack.c.l.b16 %v1792
    %v1801 = vunpack.c.l.b16 %v1793
    %v1802 = vunpack.c.l.b16 %v1794
    %v1803 = vunpack.c.l.b16 %v1795
    %v1804 = vpack.c.b16 %v1801, %v1800
    %v1805 = vpack.c.b16 %v1803, %v1802
    %v1807 = vsel %vm195, %v1804, 0
    %v1810 = vsel %vm195, %v1805, 0
    %1812 = vmatpush.bf16.msra.mxu0 0
    %1813 = vmatpush.bf16.msra.mxu0 0
    %1814 = vmatpush.bf16.msra.mxu0 0
    %1815 = vmatpush.bf16.msra.mxu0 0
    %1816 = vmatpush.bf16.msra.mxu0 0
    %1817 = vmatpush.bf16.msra.mxu0 0
    %1818 = vmatpush.bf16.msra.mxu0 %v206
    %1819 = vmatpush.bf16.msra.mxu0 %v1783
    %1820 = vmatmul.bf16.gmra.mxu0 %v1807
    %v1821 = vpop.f32.mrf.mxu0
    %v1822 = vadd.f32 0.0, %v1821
    %v1823 = vpop.f32.mrf.mxu0
    %v1824 = vadd.f32 0.0, %v1823
    %1825 = vmatmul.bf16.gmra.mxu0 %v1810
    %v1826 = vpop.f32.mrf.mxu0
    %v1827 = vadd.f32 0.0, %v1826
    %v1828 = vpop.f32.mrf.mxu0
    %v1829 = vadd.f32 0.0, %v1828
    %1830 = vdwg.mxu0
    %1831 = vmatpush.bf16.msra.mxu0 0
    %1832 = vmatpush.bf16.msra.mxu0 0
    %1833 = vmatpush.bf16.msra.mxu0 0
    %1834 = vmatpush.bf16.msra.mxu0 0
    %1835 = vmatpush.bf16.msra.mxu0 0
    %1836 = vmatpush.bf16.msra.mxu0 0
    %1837 = vmatpush.bf16.msra.mxu0 %v206
    %1838 = vmatpush.bf16.msra.mxu0 %v1784
    %1839 = vmatmul.bf16.gmra.mxu0 %v1807
    %v1840 = vpop.f32.mrf.mxu0
    %v1841 = vadd.f32 0.0, %v1840
    %v1842 = vpop.f32.mrf.mxu0
    %v1843 = vadd.f32 0.0, %v1842
    %1844 = vmatmul.bf16.gmra.mxu0 %v1810
    %v1845 = vpop.f32.mrf.mxu0
    %v1846 = vadd.f32 0.0, %v1845
    %v1847 = vpop.f32.mrf.mxu0
    %v1848 = vadd.f32 0.0, %v1847
    %1849 = vdwg.mxu0
    %1850 = vmatpush.bf16.msra.mxu0 0
    %1851 = vmatpush.bf16.msra.mxu0 0
    %1852 = vmatpush.bf16.msra.mxu0 0
    %1853 = vmatpush.bf16.msra.mxu0 0
    %1854 = vmatpush.bf16.msra.mxu0 0
    %1855 = vmatpush.bf16.msra.mxu0 0
    %1856 = vmatpush.bf16.msra.mxu0 %v206
    %1857 = vmatpush.bf16.msra.mxu0 %v1785
    %1858 = vmatmul.bf16.gmra.mxu0 %v1807
    %v1859 = vpop.f32.mrf.mxu0
    %v1860 = vadd.f32 0.0, %v1859
    %v1861 = vpop.f32.mrf.mxu0
    %v1862 = vadd.f32 0.0, %v1861
    %1863 = vmatmul.bf16.gmra.mxu0 %v1810
    %v1864 = vpop.f32.mrf.mxu0
    %v1865 = vadd.f32 0.0, %v1864
    %v1866 = vpop.f32.mrf.mxu0
    %v1867 = vadd.f32 0.0, %v1866
    %1868 = vdwg.mxu0
    %1869 = vmatpush.bf16.msra.mxu0 0
    %1870 = vmatpush.bf16.msra.mxu0 0
    %1871 = vmatpush.bf16.msra.mxu0 0
    %1872 = vmatpush.bf16.msra.mxu0 0
    %1873 = vmatpush.bf16.msra.mxu0 0
    %1874 = vmatpush.bf16.msra.mxu0 0
    %1875 = vmatpush.bf16.msra.mxu0 %v206
    %1876 = vmatpush.bf16.msra.mxu0 %v1786
    %1877 = vmatmul.bf16.gmra.mxu0 %v1807
    %v1878 = vpop.f32.mrf.mxu0
    %v1879 = vadd.f32 0.0, %v1878
    %v1880 = vpop.f32.mrf.mxu0
    %v1881 = vadd.f32 0.0, %v1880
    %1882 = vmatmul.bf16.gmra.mxu0 %v1810
    %v1883 = vpop.f32.mrf.mxu0
    %v1884 = vadd.f32 0.0, %v1883
    %v1885 = vpop.f32.mrf.mxu0
    %v1886 = vadd.f32 0.0, %v1885
    %1887 = vdwg.mxu0
    %v1888 = vmax.f32 %v1822, 0.0
    %v1889 = vmax.f32 %v1841, 0.0
    %v1890 = vmax.f32 %v1860, 0.0
    %v1891 = vmax.f32 %v1879, 0.0
    %v1892 = vmax.f32 %v1824, 0.0
    %v1893 = vmax.f32 %v1843, 0.0
    %v1894 = vmax.f32 %v1862, 0.0
    %v1895 = vmax.f32 %v1881, 0.0
    %v1896 = vmax.f32 %v1827, 0.0
    %v1897 = vmax.f32 %v1846, 0.0
    %v1898 = vmax.f32 %v1865, 0.0
    %v1899 = vmax.f32 %v1884, 0.0
    %v1900 = vmax.f32 %v1829, 0.0
    %v1901 = vmax.f32 %v1848, 0.0
    %v1902 = vmax.f32 %v1867, 0.0
    %v1903 = vmax.f32 %v1886, 0.0
    %v1904 = vpack.c.bf16 %v1889, %v1888
    %v1905 = vpack.c.bf16 %v1891, %v1890
    %v1906 = vpack.c.bf16 %v1893, %v1892
    %v1907 = vpack.c.bf16 %v1895, %v1894
    %v1908 = vpack.c.bf16 %v1897, %v1896
    %v1909 = vpack.c.bf16 %v1899, %v1898
    %v1910 = vpack.c.bf16 %v1901, %v1900
    %v1911 = vpack.c.bf16 %v1903, %v1902
    %v1920 = vunpack.c.l.b16 %v1904
    %v1921 = vunpack.c.h.b16 %v1904
    %v1922 = vunpack.c.l.b16 %v1905
    %v1923 = vunpack.c.h.b16 %v1905
    %v1924 = vunpack.c.l.b16 %v1906
    %v1925 = vunpack.c.h.b16 %v1906
    %v1926 = vunpack.c.l.b16 %v1907
    %v1927 = vunpack.c.h.b16 %v1907
    %v1928 = vunpack.c.l.b16 %v1908
    %v1929 = vunpack.c.h.b16 %v1908
    %v1930 = vunpack.c.l.b16 %v1909
    %v1931 = vunpack.c.h.b16 %v1909
    %v1932 = vunpack.c.l.b16 %v1910
    %v1933 = vunpack.c.h.b16 %v1910
    %v1934 = vunpack.c.l.b16 %v1911
    %v1935 = vunpack.c.h.b16 %v1911
    %v1936 = vpack.c.b16 %v1924, %v1920
    %v1937 = vpack.c.b16 %v1925, %v1921
    %v1938 = vpack.c.b16 %v1926, %v1922
    %v1939 = vpack.c.b16 %v1927, %v1923
    %v1940 = vpack.c.b16 %v1932, %v1928
    %v1941 = vpack.c.b16 %v1933, %v1929
    %v1942 = vpack.c.b16 %v1934, %v1930
    %v1943 = vpack.c.b16 %v1935, %v1931
    %s1952 = scalar_lea.vmem %s5, 32
    %v1953 = vld [vmem:[%s1952] sm:$0xf]
    %v1954 = vld [vmem:[%s1952 + $0x4] sm:$0xf]
    %v1957 = vunpack.c.l.b16 %v1953
    %v1958 = vunpack.c.l.b16 %v1954
    %v1959 = vpack.c.b16 %v1958, %v1957
    %v1961 = vsel %vm355, %v1959, 0
    %1963 = vmatpush.bf16.msra.mxu0 0
    %1964 = vmatpush.bf16.msra.mxu0 0
    %1965 = vmatpush.bf16.msra.mxu0 0
    %1966 = vmatpush.bf16.msra.mxu0 0
    %1967 = vmatpush.bf16.msra.mxu0 0
    %1968 = vmatpush.bf16.msra.mxu0 %v206
    %1969 = vmatpush.bf16.msra.mxu0 %v1940
    %1970 = vmatpush.bf16.msra.mxu0 %v1936
    %1971 = vmatmul.bf16.gmra.mxu0 %v1961
    %v1972 = vpop.f32.mrf.mxu0
    %v1973 = vadd.f32 0.0, %v1972
    %v1974 = vpop.f32.mrf.mxu0
    %v1975 = vadd.f32 0.0, %v1974
    %1976 = vdwg.mxu0
    %1977 = vmatpush.bf16.msra.mxu0 0
    %1978 = vmatpush.bf16.msra.mxu0 0
    %1979 = vmatpush.bf16.msra.mxu0 0
    %1980 = vmatpush.bf16.msra.mxu0 0
    %1981 = vmatpush.bf16.msra.mxu0 0
    %1982 = vmatpush.bf16.msra.mxu0 %v206
    %1983 = vmatpush.bf16.msra.mxu0 %v1941
    %1984 = vmatpush.bf16.msra.mxu0 %v1937
    %1985 = vmatmul.bf16.gmra.mxu0 %v1961
    %v1986 = vpop.f32.mrf.mxu0
    %v1987 = vadd.f32 0.0, %v1986
    %v1988 = vpop.f32.mrf.mxu0
    %v1989 = vadd.f32 0.0, %v1988
    %1990 = vdwg.mxu0
    %1991 = vmatpush.bf16.msra.mxu0 0
    %1992 = vmatpush.bf16.msra.mxu0 0
    %1993 = vmatpush.bf16.msra.mxu0 0
    %1994 = vmatpush.bf16.msra.mxu0 0
    %1995 = vmatpush.bf16.msra.mxu0 0
    %1996 = vmatpush.bf16.msra.mxu0 %v206
    %1997 = vmatpush.bf16.msra.mxu0 %v1942
    %1998 = vmatpush.bf16.msra.mxu0 %v1938
    %1999 = vmatmul.bf16.gmra.mxu0 %v1961
    %v2000 = vpop.f32.mrf.mxu0
    %v2001 = vadd.f32 0.0, %v2000
    %v2002 = vpop.f32.mrf.mxu0
    %v2003 = vadd.f32 0.0, %v2002
    %2004 = vdwg.mxu0
    %2005 = vmatpush.bf16.msra.mxu0 0
    %2006 = vmatpush.bf16.msra.mxu0 0
    %2007 = vmatpush.bf16.msra.mxu0 0
    %2008 = vmatpush.bf16.msra.mxu0 0
    %2009 = vmatpush.bf16.msra.mxu0 0
    %2010 = vmatpush.bf16.msra.mxu0 %v206
    %2011 = vmatpush.bf16.msra.mxu0 %v1943
    %2012 = vmatpush.bf16.msra.mxu0 %v1939
    %2013 = vmatmul.bf16.gmra.mxu0 %v1961
    %v2014 = vpop.f32.mrf.mxu0
    %v2015 = vadd.f32 0.0, %v2014
    %v2016 = vpop.f32.mrf.mxu0
    %v2017 = vadd.f32 0.0, %v2016
    %2018 = vdwg.mxu0
    %s2019 = scalar_lea.vmem [#allocation3], 320
    %v2020 = vld [vmem:[%s2019] sm:$0xff]
    %v2021 = vld [vmem:[%s2019 + $0x8] sm:$0xff]
    %v2022 = vld [vmem:[%s2019 + $0x10] sm:$0xff]
    %v2023 = vld [vmem:[%s2019 + $0x18] sm:$0xff]
    %v2024 = vld [vmem:[%s2019 + $0x20] sm:$0xff]
    %v2025 = vld [vmem:[%s2019 + $0x28] sm:$0xff]
    %v2026 = vld [vmem:[%s2019 + $0x30] sm:$0xff]
    %v2027 = vld [vmem:[%s2019 + $0x38] sm:$0xff]
    %v2028 = vmul.f32 %v1973, %v2020
    %v2029 = vmul.f32 %v1987, %v2021
    %v2030 = vmul.f32 %v2001, %v2022
    %v2031 = vmul.f32 %v2015, %v2023
    %v2032 = vmul.f32 %v1975, %v2024
    %v2033 = vmul.f32 %v1989, %v2025
    %v2034 = vmul.f32 %v2003, %v2026
    %v2035 = vmul.f32 %v2017, %v2027
    %v2036 = vadd.f32 %v2028, %v2032
    %v2037 = vrot.slane %v2036, 4
    %v2038 = vadd.f32 %v2036, %v2037
    %v2039 = vrot.slane %v2038, 2
    %v2040 = vadd.f32 %v2038, %v2039
    %v2041 = vrot.slane %v2040, 1
    %v2042 = vadd.f32 %v2040, %v2041
    %v2043 = vadd.f32 %v2029, %v2033
    %v2044 = vrot.slane %v2043, 4
    %v2045 = vadd.f32 %v2043, %v2044
    %v2046 = vrot.slane %v2045, 2
    %v2047 = vadd.f32 %v2045, %v2046
    %v2048 = vrot.slane %v2047, 1
    %v2049 = vadd.f32 %v2047, %v2048
    %v2050 = vadd.f32 %v2030, %v2034
    %v2051 = vrot.slane %v2050, 4
    %v2052 = vadd.f32 %v2050, %v2051
    %v2053 = vrot.slane %v2052, 2
    %v2054 = vadd.f32 %v2052, %v2053
    %v2055 = vrot.slane %v2054, 1
    %v2056 = vadd.f32 %v2054, %v2055
    %v2057 = vadd.f32 %v2031, %v2035
    %v2058 = vrot.slane %v2057, 4
    %v2059 = vadd.f32 %v2057, %v2058
    %v2060 = vrot.slane %v2059, 2
    %v2061 = vadd.f32 %v2059, %v2060
    %v2062 = vrot.slane %v2061, 1
    %v2063 = vadd.f32 %v2061, %v2062
    %vm2064 = vcmp.lt.f32.partialorder %v1715, 50.0
    %vm2065 = vcmp.lt.f32.partialorder %v1716, 50.0
    %vm2066 = vcmp.lt.f32.partialorder %v1717, 50.0
    %vm2067 = vcmp.lt.f32.partialorder %v1718, 50.0
    %vm2068 = vcmp.ge.f32.partialorder %v1715, 70.0
    %vm2069 = vcmp.ge.f32.partialorder %v1716, 70.0
    %vm2070 = vcmp.ge.f32.partialorder %v1717, 70.0
    %vm2071 = vcmp.ge.f32.partialorder %v1718, 70.0
    %v2072 = vsub.f32 %v1715, 50.0
    %v2073 = vsub.f32 %v1716, 50.0
    %v2074 = vsub.f32 %v1717, 50.0
    %v2075 = vsub.f32 %v1718, 50.0
    %v2076 = vmul.f32 %v2072, -0.009
    %v2077 = vmul.f32 %v2073, -0.009
    %v2078 = vmul.f32 %v2074, -0.009
    %v2079 = vmul.f32 %v2075, -0.009
    %v2080 = vadd.f32 %v2076, 0.2
    %v2081 = vadd.f32 %v2077, 0.2
    %v2082 = vadd.f32 %v2078, 0.2
    %v2083 = vadd.f32 %v2079, 0.2
    %v2084 = vsel %vm2068, 0.02, %v2080
    %v2085 = vsel %vm2069, 0.02, %v2081
    %v2086 = vsel %vm2070, 0.02, %v2082
    %v2087 = vsel %vm2071, 0.02, %v2083
    %v2088 = vsel %vm2064, 0.2, %v2084
    %v2089 = vsel %vm2065, 0.2, %v2085
    %v2090 = vsel %vm2066, 0.2, %v2086
    %v2091 = vsel %vm2067, 0.2, %v2087
    %v2092 = vmul.f32 %v2088, 0.33333334
    %v2093 = vmul.f32 %v2089, 0.33333334
    %v2094 = vmul.f32 %v2090, 0.33333334
    %v2095 = vmul.f32 %v2091, 0.33333334
    %v2096 = vmul.f32 %v2092, %v1715
    %v2097 = vmul.f32 %v2093, %v1716
    %v2098 = vmul.f32 %v2094, %v1717
    %v2099 = vmul.f32 %v2095, %v1718
    %v2100 = vmul.f32 %v1715, 0.02
    %v2101 = vmul.f32 %v1716, 0.02
    %v2102 = vmul.f32 %v1717, 0.02
    %v2103 = vmul.f32 %v1718, 0.02
    %v2104 = vadd.f32 %v2096, %v2100
    %v2105 = vadd.f32 %v2097, %v2101
    %v2106 = vadd.f32 %v2098, %v2102
    %v2107 = vadd.f32 %v2099, %v2103
    %v2108 = vmul.f32 %v2104, 0.125
    %v2109 = vmul.f32 %v2105, 0.125
    %v2110 = vmul.f32 %v2106, 0.125
    %v2111 = vmul.f32 %v2107, 0.125
    %v2112 = vadd.f32 %v1715, %v2108
    %v2113 = vadd.f32 %v1716, %v2109
    %v2114 = vadd.f32 %v1717, %v2110
    %v2115 = vadd.f32 %v1718, %v2111
    %v2116 = vadd.f32 %v2112, %v2042
    %v2117 = vadd.f32 %v2113, %v2049
    %v2118 = vadd.f32 %v2114, %v2056
    %v2119 = vadd.f32 %v2115, %v2063
    %v2120 = vmul.f32 %v1759, 0.02
    %v2121 = vmul.f32 %v1760, 0.02
    %v2122 = vmul.f32 %v1761, 0.02
    %v2123 = vmul.f32 %v1762, 0.02
    %v2124 = vmul.f32 %v1763, 0.02
    %v2125 = vmul.f32 %v1764, 0.02
    %v2126 = vmul.f32 %v1765, 0.02
    %v2127 = vmul.f32 %v1766, 0.02
    %v2128 = vmul.f32 %v2120, 0.125
    %v2129 = vmul.f32 %v2121, 0.125
    %v2130 = vmul.f32 %v2122, 0.125
    %v2131 = vmul.f32 %v2123, 0.125
    %v2132 = vmul.f32 %v2124, 0.125
    %v2133 = vmul.f32 %v2125, 0.125
    %v2134 = vmul.f32 %v2126, 0.125
    %v2135 = vmul.f32 %v2127, 0.125
    %v2136 = vadd.f32 %v1759, %v2128
    %v2137 = vadd.f32 %v1760, %v2129
    %v2138 = vadd.f32 %v1761, %v2130
    %v2139 = vadd.f32 %v1762, %v2131
    %v2140 = vadd.f32 %v1763, %v2132
    %v2141 = vadd.f32 %v1764, %v2133
    %v2142 = vadd.f32 %v1765, %v2134
    %v2143 = vadd.f32 %v1766, %v2135
    %v2144 = vmul.f32 %v1759, 0.2
    %v2145 = vmul.f32 %v1760, 0.2
    %v2146 = vmul.f32 %v1761, 0.2
    %v2147 = vmul.f32 %v1762, 0.2
    %v2148 = vmul.f32 %v1763, 0.2
    %v2149 = vmul.f32 %v1764, 0.2
    %v2150 = vmul.f32 %v1765, 0.2
    %v2151 = vmul.f32 %v1766, 0.2
    %v2152 = vmul.f32 %v2144, %v2020
    %v2153 = vmul.f32 %v2145, %v2021
    %v2154 = vmul.f32 %v2146, %v2022
    %v2155 = vmul.f32 %v2147, %v2023
    %v2156 = vmul.f32 %v2148, %v2024
    %v2157 = vmul.f32 %v2149, %v2025
    %v2158 = vmul.f32 %v2150, %v2026
    %v2159 = vmul.f32 %v2151, %v2027
    %v2160 = vadd.f32 %v2136, %v2152
    %v2161 = vadd.f32 %v2137, %v2153
    %v2162 = vadd.f32 %v2138, %v2154
    %v2163 = vadd.f32 %v2139, %v2155
    %v2164 = vadd.f32 %v2140, %v2156
    %v2165 = vadd.f32 %v2141, %v2157
    %v2166 = vadd.f32 %v2142, %v2158
    %v2167 = vadd.f32 %v2143, %v2159
    %v2168 = vpack.c.bf16 %v2161, %v2160
    %v2169 = vpack.c.bf16 %v2163, %v2162
    %v2170 = vpack.c.bf16 %v2165, %v2164
    %v2171 = vpack.c.bf16 %v2167, %v2166
    %v2176 = vunpack.c.l.b16 %v2168
    %v2177 = vunpack.c.h.b16 %v2168
    %v2178 = vunpack.c.l.b16 %v2169
    %v2179 = vunpack.c.h.b16 %v2169
    %v2180 = vunpack.c.l.b16 %v2170
    %v2181 = vunpack.c.h.b16 %v2170
    %v2182 = vunpack.c.l.b16 %v2171
    %v2183 = vunpack.c.h.b16 %v2171
    %v2184 = vpack.c.b16 %v2180, %v2176
    %v2185 = vpack.c.b16 %v2181, %v2177
    %v2186 = vpack.c.b16 %v2182, %v2178
    %v2187 = vpack.c.b16 %v2183, %v2179
    %s2192 = scalar_lea.vmem %s4, 80
    %v2193 = vld [vmem:[%s2192] sm:$0xf]
    %v2194 = vld [vmem:[%s2192 + $0x4] sm:$0xf]
    %v2195 = vld [vmem:[%s2192 + $0x8] sm:$0xf]
    %v2196 = vld [vmem:[%s2192 + $0xc] sm:$0xf]
    %v2201 = vunpack.c.l.b16 %v2193
    %v2202 = vunpack.c.l.b16 %v2194
    %v2203 = vunpack.c.l.b16 %v2195
    %v2204 = vunpack.c.l.b16 %v2196
    %v2205 = vpack.c.b16 %v2202, %v2201
    %v2206 = vpack.c.b16 %v2204, %v2203
    %v2208 = vsel %vm195, %v2205, 0
    %v2211 = vsel %vm195, %v2206, 0
    %2213 = vmatpush.bf16.msra.mxu0 0
    %2214 = vmatpush.bf16.msra.mxu0 0
    %2215 = vmatpush.bf16.msra.mxu0 0
    %2216 = vmatpush.bf16.msra.mxu0 0
    %2217 = vmatpush.bf16.msra.mxu0 0
    %2218 = vmatpush.bf16.msra.mxu0 0
    %2219 = vmatpush.bf16.msra.mxu0 %v206
    %2220 = vmatpush.bf16.msra.mxu0 %v2184
    %2221 = vmatmul.bf16.gmra.mxu0 %v2208
    %v2222 = vpop.f32.mrf.mxu0
    %v2223 = vadd.f32 0.0, %v2222
    %v2224 = vpop.f32.mrf.mxu0
    %v2225 = vadd.f32 0.0, %v2224
    %2226 = vmatmul.bf16.gmra.mxu0 %v2211
    %v2227 = vpop.f32.mrf.mxu0
    %v2228 = vadd.f32 0.0, %v2227
    %v2229 = vpop.f32.mrf.mxu0
    %v2230 = vadd.f32 0.0, %v2229
    %2231 = vdwg.mxu0
    %2232 = vmatpush.bf16.msra.mxu0 0
    %2233 = vmatpush.bf16.msra.mxu0 0
    %2234 = vmatpush.bf16.msra.mxu0 0
    %2235 = vmatpush.bf16.msra.mxu0 0
    %2236 = vmatpush.bf16.msra.mxu0 0
    %2237 = vmatpush.bf16.msra.mxu0 0
    %2238 = vmatpush.bf16.msra.mxu0 %v206
    %2239 = vmatpush.bf16.msra.mxu0 %v2185
    %2240 = vmatmul.bf16.gmra.mxu0 %v2208
    %v2241 = vpop.f32.mrf.mxu0
    %v2242 = vadd.f32 0.0, %v2241
    %v2243 = vpop.f32.mrf.mxu0
    %v2244 = vadd.f32 0.0, %v2243
    %2245 = vmatmul.bf16.gmra.mxu0 %v2211
    %v2246 = vpop.f32.mrf.mxu0
    %v2247 = vadd.f32 0.0, %v2246
    %v2248 = vpop.f32.mrf.mxu0
    %v2249 = vadd.f32 0.0, %v2248
    %2250 = vdwg.mxu0
    %2251 = vmatpush.bf16.msra.mxu0 0
    %2252 = vmatpush.bf16.msra.mxu0 0
    %2253 = vmatpush.bf16.msra.mxu0 0
    %2254 = vmatpush.bf16.msra.mxu0 0
    %2255 = vmatpush.bf16.msra.mxu0 0
    %2256 = vmatpush.bf16.msra.mxu0 0
    %2257 = vmatpush.bf16.msra.mxu0 %v206
    %2258 = vmatpush.bf16.msra.mxu0 %v2186
    %2259 = vmatmul.bf16.gmra.mxu0 %v2208
    %v2260 = vpop.f32.mrf.mxu0
    %v2261 = vadd.f32 0.0, %v2260
    %v2262 = vpop.f32.mrf.mxu0
    %v2263 = vadd.f32 0.0, %v2262
    %2264 = vmatmul.bf16.gmra.mxu0 %v2211
    %v2265 = vpop.f32.mrf.mxu0
    %v2266 = vadd.f32 0.0, %v2265
    %v2267 = vpop.f32.mrf.mxu0
    %v2268 = vadd.f32 0.0, %v2267
    %2269 = vdwg.mxu0
    %2270 = vmatpush.bf16.msra.mxu0 0
    %2271 = vmatpush.bf16.msra.mxu0 0
    %2272 = vmatpush.bf16.msra.mxu0 0
    %2273 = vmatpush.bf16.msra.mxu0 0
    %2274 = vmatpush.bf16.msra.mxu0 0
    %2275 = vmatpush.bf16.msra.mxu0 0
    %2276 = vmatpush.bf16.msra.mxu0 %v206
    %2277 = vmatpush.bf16.msra.mxu0 %v2187
    %2278 = vmatmul.bf16.gmra.mxu0 %v2208
    %v2279 = vpop.f32.mrf.mxu0
    %v2280 = vadd.f32 0.0, %v2279
    %v2281 = vpop.f32.mrf.mxu0
    %v2282 = vadd.f32 0.0, %v2281
    %2283 = vmatmul.bf16.gmra.mxu0 %v2211
    %v2284 = vpop.f32.mrf.mxu0
    %v2285 = vadd.f32 0.0, %v2284
    %v2286 = vpop.f32.mrf.mxu0
    %v2287 = vadd.f32 0.0, %v2286
    %2288 = vdwg.mxu0
    %v2289 = vmax.f32 %v2223, 0.0
    %v2290 = vmax.f32 %v2242, 0.0
    %v2291 = vmax.f32 %v2261, 0.0
    %v2292 = vmax.f32 %v2280, 0.0
    %v2293 = vmax.f32 %v2225, 0.0
    %v2294 = vmax.f32 %v2244, 0.0
    %v2295 = vmax.f32 %v2263, 0.0
    %v2296 = vmax.f32 %v2282, 0.0
    %v2297 = vmax.f32 %v2228, 0.0
    %v2298 = vmax.f32 %v2247, 0.0
    %v2299 = vmax.f32 %v2266, 0.0
    %v2300 = vmax.f32 %v2285, 0.0
    %v2301 = vmax.f32 %v2230, 0.0
    %v2302 = vmax.f32 %v2249, 0.0
    %v2303 = vmax.f32 %v2268, 0.0
    %v2304 = vmax.f32 %v2287, 0.0
    %v2305 = vpack.c.bf16 %v2290, %v2289
    %v2306 = vpack.c.bf16 %v2292, %v2291
    %v2307 = vpack.c.bf16 %v2294, %v2293
    %v2308 = vpack.c.bf16 %v2296, %v2295
    %v2309 = vpack.c.bf16 %v2298, %v2297
    %v2310 = vpack.c.bf16 %v2300, %v2299
    %v2311 = vpack.c.bf16 %v2302, %v2301
    %v2312 = vpack.c.bf16 %v2304, %v2303
    %v2321 = vunpack.c.l.b16 %v2305
    %v2322 = vunpack.c.h.b16 %v2305
    %v2323 = vunpack.c.l.b16 %v2306
    %v2324 = vunpack.c.h.b16 %v2306
    %v2325 = vunpack.c.l.b16 %v2307
    %v2326 = vunpack.c.h.b16 %v2307
    %v2327 = vunpack.c.l.b16 %v2308
    %v2328 = vunpack.c.h.b16 %v2308
    %v2329 = vunpack.c.l.b16 %v2309
    %v2330 = vunpack.c.h.b16 %v2309
    %v2331 = vunpack.c.l.b16 %v2310
    %v2332 = vunpack.c.h.b16 %v2310
    %v2333 = vunpack.c.l.b16 %v2311
    %v2334 = vunpack.c.h.b16 %v2311
    %v2335 = vunpack.c.l.b16 %v2312
    %v2336 = vunpack.c.h.b16 %v2312
    %v2337 = vpack.c.b16 %v2325, %v2321
    %v2338 = vpack.c.b16 %v2326, %v2322
    %v2339 = vpack.c.b16 %v2327, %v2323
    %v2340 = vpack.c.b16 %v2328, %v2324
    %v2341 = vpack.c.b16 %v2333, %v2329
    %v2342 = vpack.c.b16 %v2334, %v2330
    %v2343 = vpack.c.b16 %v2335, %v2331
    %v2344 = vpack.c.b16 %v2336, %v2332
    %s2353 = scalar_lea.vmem %s5, 40
    %v2354 = vld [vmem:[%s2353] sm:$0xf]
    %v2355 = vld [vmem:[%s2353 + $0x4] sm:$0xf]
    %v2358 = vunpack.c.l.b16 %v2354
    %v2359 = vunpack.c.l.b16 %v2355
    %v2360 = vpack.c.b16 %v2359, %v2358
    %v2362 = vsel %vm355, %v2360, 0
    %2364 = vmatpush.bf16.msra.mxu0 0
    %2365 = vmatpush.bf16.msra.mxu0 0
    %2366 = vmatpush.bf16.msra.mxu0 0
    %2367 = vmatpush.bf16.msra.mxu0 0
    %2368 = vmatpush.bf16.msra.mxu0 0
    %2369 = vmatpush.bf16.msra.mxu0 %v206
    %2370 = vmatpush.bf16.msra.mxu0 %v2341
    %2371 = vmatpush.bf16.msra.mxu0 %v2337
    %2372 = vmatmul.bf16.gmra.mxu0 %v2362
    %v2373 = vpop.f32.mrf.mxu0
    %v2374 = vadd.f32 0.0, %v2373
    %v2375 = vpop.f32.mrf.mxu0
    %v2376 = vadd.f32 0.0, %v2375
    %2377 = vdwg.mxu0
    %2378 = vmatpush.bf16.msra.mxu0 0
    %2379 = vmatpush.bf16.msra.mxu0 0
    %2380 = vmatpush.bf16.msra.mxu0 0
    %2381 = vmatpush.bf16.msra.mxu0 0
    %2382 = vmatpush.bf16.msra.mxu0 0
    %2383 = vmatpush.bf16.msra.mxu0 %v206
    %2384 = vmatpush.bf16.msra.mxu0 %v2342
    %2385 = vmatpush.bf16.msra.mxu0 %v2338
    %2386 = vmatmul.bf16.gmra.mxu0 %v2362
    %v2387 = vpop.f32.mrf.mxu0
    %v2388 = vadd.f32 0.0, %v2387
    %v2389 = vpop.f32.mrf.mxu0
    %v2390 = vadd.f32 0.0, %v2389
    %2391 = vdwg.mxu0
    %2392 = vmatpush.bf16.msra.mxu0 0
    %2393 = vmatpush.bf16.msra.mxu0 0
    %2394 = vmatpush.bf16.msra.mxu0 0
    %2395 = vmatpush.bf16.msra.mxu0 0
    %2396 = vmatpush.bf16.msra.mxu0 0
    %2397 = vmatpush.bf16.msra.mxu0 %v206
    %2398 = vmatpush.bf16.msra.mxu0 %v2343
    %2399 = vmatpush.bf16.msra.mxu0 %v2339
    %2400 = vmatmul.bf16.gmra.mxu0 %v2362
    %v2401 = vpop.f32.mrf.mxu0
    %v2402 = vadd.f32 0.0, %v2401
    %v2403 = vpop.f32.mrf.mxu0
    %v2404 = vadd.f32 0.0, %v2403
    %2405 = vdwg.mxu0
    %2406 = vmatpush.bf16.msra.mxu0 0
    %2407 = vmatpush.bf16.msra.mxu0 0
    %2408 = vmatpush.bf16.msra.mxu0 0
    %2409 = vmatpush.bf16.msra.mxu0 0
    %2410 = vmatpush.bf16.msra.mxu0 0
    %2411 = vmatpush.bf16.msra.mxu0 %v206
    %2412 = vmatpush.bf16.msra.mxu0 %v2344
    %2413 = vmatpush.bf16.msra.mxu0 %v2340
    %2414 = vmatmul.bf16.gmra.mxu0 %v2362
    %v2415 = vpop.f32.mrf.mxu0
    %v2416 = vadd.f32 0.0, %v2415
    %v2417 = vpop.f32.mrf.mxu0
    %v2418 = vadd.f32 0.0, %v2417
    %2419 = vdwg.mxu0
    %s2420 = scalar_lea.vmem [#allocation3], 384
    %v2421 = vld [vmem:[%s2420] sm:$0xff]
    %v2422 = vld [vmem:[%s2420 + $0x8] sm:$0xff]
    %v2423 = vld [vmem:[%s2420 + $0x10] sm:$0xff]
    %v2424 = vld [vmem:[%s2420 + $0x18] sm:$0xff]
    %v2425 = vld [vmem:[%s2420 + $0x20] sm:$0xff]
    %v2426 = vld [vmem:[%s2420 + $0x28] sm:$0xff]
    %v2427 = vld [vmem:[%s2420 + $0x30] sm:$0xff]
    %v2428 = vld [vmem:[%s2420 + $0x38] sm:$0xff]
    %v2429 = vmul.f32 %v2374, %v2421
    %v2430 = vmul.f32 %v2388, %v2422
    %v2431 = vmul.f32 %v2402, %v2423
    %v2432 = vmul.f32 %v2416, %v2424
    %v2433 = vmul.f32 %v2376, %v2425
    %v2434 = vmul.f32 %v2390, %v2426
    %v2435 = vmul.f32 %v2404, %v2427
    %v2436 = vmul.f32 %v2418, %v2428
    %v2437 = vadd.f32 %v2429, %v2433
    %v2438 = vrot.slane %v2437, 4
    %v2439 = vadd.f32 %v2437, %v2438
    %v2440 = vrot.slane %v2439, 2
    %v2441 = vadd.f32 %v2439, %v2440
    %v2442 = vrot.slane %v2441, 1
    %v2443 = vadd.f32 %v2441, %v2442
    %v2444 = vadd.f32 %v2430, %v2434
    %v2445 = vrot.slane %v2444, 4
    %v2446 = vadd.f32 %v2444, %v2445
    %v2447 = vrot.slane %v2446, 2
    %v2448 = vadd.f32 %v2446, %v2447
    %v2449 = vrot.slane %v2448, 1
    %v2450 = vadd.f32 %v2448, %v2449
    %v2451 = vadd.f32 %v2431, %v2435
    %v2452 = vrot.slane %v2451, 4
    %v2453 = vadd.f32 %v2451, %v2452
    %v2454 = vrot.slane %v2453, 2
    %v2455 = vadd.f32 %v2453, %v2454
    %v2456 = vrot.slane %v2455, 1
    %v2457 = vadd.f32 %v2455, %v2456
    %v2458 = vadd.f32 %v2432, %v2436
    %v2459 = vrot.slane %v2458, 4
    %v2460 = vadd.f32 %v2458, %v2459
    %v2461 = vrot.slane %v2460, 2
    %v2462 = vadd.f32 %v2460, %v2461
    %v2463 = vrot.slane %v2462, 1
    %v2464 = vadd.f32 %v2462, %v2463
    %vm2465 = vcmp.lt.f32.partialorder %v2116, 50.0
    %vm2466 = vcmp.lt.f32.partialorder %v2117, 50.0
    %vm2467 = vcmp.lt.f32.partialorder %v2118, 50.0
    %vm2468 = vcmp.lt.f32.partialorder %v2119, 50.0
    %vm2469 = vcmp.ge.f32.partialorder %v2116, 70.0
    %vm2470 = vcmp.ge.f32.partialorder %v2117, 70.0
    %vm2471 = vcmp.ge.f32.partialorder %v2118, 70.0
    %vm2472 = vcmp.ge.f32.partialorder %v2119, 70.0
    %v2473 = vsub.f32 %v2116, 50.0
    %v2474 = vsub.f32 %v2117, 50.0
    %v2475 = vsub.f32 %v2118, 50.0
    %v2476 = vsub.f32 %v2119, 50.0
    %v2477 = vmul.f32 %v2473, -0.009
    %v2478 = vmul.f32 %v2474, -0.009
    %v2479 = vmul.f32 %v2475, -0.009
    %v2480 = vmul.f32 %v2476, -0.009
    %v2481 = vadd.f32 %v2477, 0.2
    %v2482 = vadd.f32 %v2478, 0.2
    %v2483 = vadd.f32 %v2479, 0.2
    %v2484 = vadd.f32 %v2480, 0.2
    %v2485 = vsel %vm2469, 0.02, %v2481
    %v2486 = vsel %vm2470, 0.02, %v2482
    %v2487 = vsel %vm2471, 0.02, %v2483
    %v2488 = vsel %vm2472, 0.02, %v2484
    %v2489 = vsel %vm2465, 0.2, %v2485
    %v2490 = vsel %vm2466, 0.2, %v2486
    %v2491 = vsel %vm2467, 0.2, %v2487
    %v2492 = vsel %vm2468, 0.2, %v2488
    %v2493 = vmul.f32 %v2489, 0.33333334
    %v2494 = vmul.f32 %v2490, 0.33333334
    %v2495 = vmul.f32 %v2491, 0.33333334
    %v2496 = vmul.f32 %v2492, 0.33333334
    %v2497 = vmul.f32 %v2493, %v2116
    %v2498 = vmul.f32 %v2494, %v2117
    %v2499 = vmul.f32 %v2495, %v2118
    %v2500 = vmul.f32 %v2496, %v2119
    %v2501 = vmul.f32 %v2116, 0.02
    %v2502 = vmul.f32 %v2117, 0.02
    %v2503 = vmul.f32 %v2118, 0.02
    %v2504 = vmul.f32 %v2119, 0.02
    %v2505 = vadd.f32 %v2497, %v2501
    %v2506 = vadd.f32 %v2498, %v2502
    %v2507 = vadd.f32 %v2499, %v2503
    %v2508 = vadd.f32 %v2500, %v2504
    %v2509 = vmul.f32 %v2505, 0.125
    %v2510 = vmul.f32 %v2506, 0.125
    %v2511 = vmul.f32 %v2507, 0.125
    %v2512 = vmul.f32 %v2508, 0.125
    %v2513 = vadd.f32 %v2116, %v2509
    %v2514 = vadd.f32 %v2117, %v2510
    %v2515 = vadd.f32 %v2118, %v2511
    %v2516 = vadd.f32 %v2119, %v2512
    %v2517 = vadd.f32 %v2513, %v2443
    %v2518 = vadd.f32 %v2514, %v2450
    %v2519 = vadd.f32 %v2515, %v2457
    %v2520 = vadd.f32 %v2516, %v2464
    %v2521 = vmul.f32 %v2160, 0.02
    %v2522 = vmul.f32 %v2161, 0.02
    %v2523 = vmul.f32 %v2162, 0.02
    %v2524 = vmul.f32 %v2163, 0.02
    %v2525 = vmul.f32 %v2164, 0.02
    %v2526 = vmul.f32 %v2165, 0.02
    %v2527 = vmul.f32 %v2166, 0.02
    %v2528 = vmul.f32 %v2167, 0.02
    %v2529 = vmul.f32 %v2521, 0.125
    %v2530 = vmul.f32 %v2522, 0.125
    %v2531 = vmul.f32 %v2523, 0.125
    %v2532 = vmul.f32 %v2524, 0.125
    %v2533 = vmul.f32 %v2525, 0.125
    %v2534 = vmul.f32 %v2526, 0.125
    %v2535 = vmul.f32 %v2527, 0.125
    %v2536 = vmul.f32 %v2528, 0.125
    %v2537 = vadd.f32 %v2160, %v2529
    %v2538 = vadd.f32 %v2161, %v2530
    %v2539 = vadd.f32 %v2162, %v2531
    %v2540 = vadd.f32 %v2163, %v2532
    %v2541 = vadd.f32 %v2164, %v2533
    %v2542 = vadd.f32 %v2165, %v2534
    %v2543 = vadd.f32 %v2166, %v2535
    %v2544 = vadd.f32 %v2167, %v2536
    %v2545 = vmul.f32 %v2160, 0.2
    %v2546 = vmul.f32 %v2161, 0.2
    %v2547 = vmul.f32 %v2162, 0.2
    %v2548 = vmul.f32 %v2163, 0.2
    %v2549 = vmul.f32 %v2164, 0.2
    %v2550 = vmul.f32 %v2165, 0.2
    %v2551 = vmul.f32 %v2166, 0.2
    %v2552 = vmul.f32 %v2167, 0.2
    %v2553 = vmul.f32 %v2545, %v2421
    %v2554 = vmul.f32 %v2546, %v2422
    %v2555 = vmul.f32 %v2547, %v2423
    %v2556 = vmul.f32 %v2548, %v2424
    %v2557 = vmul.f32 %v2549, %v2425
    %v2558 = vmul.f32 %v2550, %v2426
    %v2559 = vmul.f32 %v2551, %v2427
    %v2560 = vmul.f32 %v2552, %v2428
    %v2561 = vadd.f32 %v2537, %v2553
    %v2562 = vadd.f32 %v2538, %v2554
    %v2563 = vadd.f32 %v2539, %v2555
    %v2564 = vadd.f32 %v2540, %v2556
    %v2565 = vadd.f32 %v2541, %v2557
    %v2566 = vadd.f32 %v2542, %v2558
    %v2567 = vadd.f32 %v2543, %v2559
    %v2568 = vadd.f32 %v2544, %v2560
    %v2569 = vpack.c.bf16 %v2562, %v2561
    %v2570 = vpack.c.bf16 %v2564, %v2563
    %v2571 = vpack.c.bf16 %v2566, %v2565
    %v2572 = vpack.c.bf16 %v2568, %v2567
    %v2577 = vunpack.c.l.b16 %v2569
    %v2578 = vunpack.c.h.b16 %v2569
    %v2579 = vunpack.c.l.b16 %v2570
    %v2580 = vunpack.c.h.b16 %v2570
    %v2581 = vunpack.c.l.b16 %v2571
    %v2582 = vunpack.c.h.b16 %v2571
    %v2583 = vunpack.c.l.b16 %v2572
    %v2584 = vunpack.c.h.b16 %v2572
    %v2585 = vpack.c.b16 %v2581, %v2577
    %v2586 = vpack.c.b16 %v2582, %v2578
    %v2587 = vpack.c.b16 %v2583, %v2579
    %v2588 = vpack.c.b16 %v2584, %v2580
    %s2593 = scalar_lea.vmem %s4, 96
    %v2594 = vld [vmem:[%s2593] sm:$0xf]
    %v2595 = vld [vmem:[%s2593 + $0x4] sm:$0xf]
    %v2596 = vld [vmem:[%s2593 + $0x8] sm:$0xf]
    %v2597 = vld [vmem:[%s2593 + $0xc] sm:$0xf]
    %v2602 = vunpack.c.l.b16 %v2594
    %v2603 = vunpack.c.l.b16 %v2595
    %v2604 = vunpack.c.l.b16 %v2596
    %v2605 = vunpack.c.l.b16 %v2597
    %v2606 = vpack.c.b16 %v2603, %v2602
    %v2607 = vpack.c.b16 %v2605, %v2604
    %v2609 = vsel %vm195, %v2606, 0
    %v2612 = vsel %vm195, %v2607, 0
    %2614 = vmatpush.bf16.msra.mxu0 0
    %2615 = vmatpush.bf16.msra.mxu0 0
    %2616 = vmatpush.bf16.msra.mxu0 0
    %2617 = vmatpush.bf16.msra.mxu0 0
    %2618 = vmatpush.bf16.msra.mxu0 0
    %2619 = vmatpush.bf16.msra.mxu0 0
    %2620 = vmatpush.bf16.msra.mxu0 %v206
    %2621 = vmatpush.bf16.msra.mxu0 %v2585
    %2622 = vmatmul.bf16.gmra.mxu0 %v2609
    %v2623 = vpop.f32.mrf.mxu0
    %v2624 = vadd.f32 0.0, %v2623
    %v2625 = vpop.f32.mrf.mxu0
    %v2626 = vadd.f32 0.0, %v2625
    %2627 = vmatmul.bf16.gmra.mxu0 %v2612
    %v2628 = vpop.f32.mrf.mxu0
    %v2629 = vadd.f32 0.0, %v2628
    %v2630 = vpop.f32.mrf.mxu0
    %v2631 = vadd.f32 0.0, %v2630
    %2632 = vdwg.mxu0
    %2633 = vmatpush.bf16.msra.mxu0 0
    %2634 = vmatpush.bf16.msra.mxu0 0
    %2635 = vmatpush.bf16.msra.mxu0 0
    %2636 = vmatpush.bf16.msra.mxu0 0
    %2637 = vmatpush.bf16.msra.mxu0 0
    %2638 = vmatpush.bf16.msra.mxu0 0
    %2639 = vmatpush.bf16.msra.mxu0 %v206
    %2640 = vmatpush.bf16.msra.mxu0 %v2586
    %2641 = vmatmul.bf16.gmra.mxu0 %v2609
    %v2642 = vpop.f32.mrf.mxu0
    %v2643 = vadd.f32 0.0, %v2642
    %v2644 = vpop.f32.mrf.mxu0
    %v2645 = vadd.f32 0.0, %v2644
    %2646 = vmatmul.bf16.gmra.mxu0 %v2612
    %v2647 = vpop.f32.mrf.mxu0
    %v2648 = vadd.f32 0.0, %v2647
    %v2649 = vpop.f32.mrf.mxu0
    %v2650 = vadd.f32 0.0, %v2649
    %2651 = vdwg.mxu0
    %2652 = vmatpush.bf16.msra.mxu0 0
    %2653 = vmatpush.bf16.msra.mxu0 0
    %2654 = vmatpush.bf16.msra.mxu0 0
    %2655 = vmatpush.bf16.msra.mxu0 0
    %2656 = vmatpush.bf16.msra.mxu0 0
    %2657 = vmatpush.bf16.msra.mxu0 0
    %2658 = vmatpush.bf16.msra.mxu0 %v206
    %2659 = vmatpush.bf16.msra.mxu0 %v2587
    %2660 = vmatmul.bf16.gmra.mxu0 %v2609
    %v2661 = vpop.f32.mrf.mxu0
    %v2662 = vadd.f32 0.0, %v2661
    %v2663 = vpop.f32.mrf.mxu0
    %v2664 = vadd.f32 0.0, %v2663
    %2665 = vmatmul.bf16.gmra.mxu0 %v2612
    %v2666 = vpop.f32.mrf.mxu0
    %v2667 = vadd.f32 0.0, %v2666
    %v2668 = vpop.f32.mrf.mxu0
    %v2669 = vadd.f32 0.0, %v2668
    %2670 = vdwg.mxu0
    %2671 = vmatpush.bf16.msra.mxu0 0
    %2672 = vmatpush.bf16.msra.mxu0 0
    %2673 = vmatpush.bf16.msra.mxu0 0
    %2674 = vmatpush.bf16.msra.mxu0 0
    %2675 = vmatpush.bf16.msra.mxu0 0
    %2676 = vmatpush.bf16.msra.mxu0 0
    %2677 = vmatpush.bf16.msra.mxu0 %v206
    %2678 = vmatpush.bf16.msra.mxu0 %v2588
    %2679 = vmatmul.bf16.gmra.mxu0 %v2609
    %v2680 = vpop.f32.mrf.mxu0
    %v2681 = vadd.f32 0.0, %v2680
    %v2682 = vpop.f32.mrf.mxu0
    %v2683 = vadd.f32 0.0, %v2682
    %2684 = vmatmul.bf16.gmra.mxu0 %v2612
    %v2685 = vpop.f32.mrf.mxu0
    %v2686 = vadd.f32 0.0, %v2685
    %v2687 = vpop.f32.mrf.mxu0
    %v2688 = vadd.f32 0.0, %v2687
    %2689 = vdwg.mxu0
    %v2690 = vmax.f32 %v2624, 0.0
    %v2691 = vmax.f32 %v2643, 0.0
    %v2692 = vmax.f32 %v2662, 0.0
    %v2693 = vmax.f32 %v2681, 0.0
    %v2694 = vmax.f32 %v2626, 0.0
    %v2695 = vmax.f32 %v2645, 0.0
    %v2696 = vmax.f32 %v2664, 0.0
    %v2697 = vmax.f32 %v2683, 0.0
    %v2698 = vmax.f32 %v2629, 0.0
    %v2699 = vmax.f32 %v2648, 0.0
    %v2700 = vmax.f32 %v2667, 0.0
    %v2701 = vmax.f32 %v2686, 0.0
    %v2702 = vmax.f32 %v2631, 0.0
    %v2703 = vmax.f32 %v2650, 0.0
    %v2704 = vmax.f32 %v2669, 0.0
    %v2705 = vmax.f32 %v2688, 0.0
    %v2706 = vpack.c.bf16 %v2691, %v2690
    %v2707 = vpack.c.bf16 %v2693, %v2692
    %v2708 = vpack.c.bf16 %v2695, %v2694
    %v2709 = vpack.c.bf16 %v2697, %v2696
    %v2710 = vpack.c.bf16 %v2699, %v2698
    %v2711 = vpack.c.bf16 %v2701, %v2700
    %v2712 = vpack.c.bf16 %v2703, %v2702
    %v2713 = vpack.c.bf16 %v2705, %v2704
    %v2722 = vunpack.c.l.b16 %v2706
    %v2723 = vunpack.c.h.b16 %v2706
    %v2724 = vunpack.c.l.b16 %v2707
    %v2725 = vunpack.c.h.b16 %v2707
    %v2726 = vunpack.c.l.b16 %v2708
    %v2727 = vunpack.c.h.b16 %v2708
    %v2728 = vunpack.c.l.b16 %v2709
    %v2729 = vunpack.c.h.b16 %v2709
    %v2730 = vunpack.c.l.b16 %v2710
    %v2731 = vunpack.c.h.b16 %v2710
    %v2732 = vunpack.c.l.b16 %v2711
    %v2733 = vunpack.c.h.b16 %v2711
    %v2734 = vunpack.c.l.b16 %v2712
    %v2735 = vunpack.c.h.b16 %v2712
    %v2736 = vunpack.c.l.b16 %v2713
    %v2737 = vunpack.c.h.b16 %v2713
    %v2738 = vpack.c.b16 %v2726, %v2722
    %v2739 = vpack.c.b16 %v2727, %v2723
    %v2740 = vpack.c.b16 %v2728, %v2724
    %v2741 = vpack.c.b16 %v2729, %v2725
    %v2742 = vpack.c.b16 %v2734, %v2730
    %v2743 = vpack.c.b16 %v2735, %v2731
    %v2744 = vpack.c.b16 %v2736, %v2732
    %v2745 = vpack.c.b16 %v2737, %v2733
    %s2754 = scalar_lea.vmem %s5, 48
    %v2755 = vld [vmem:[%s2754] sm:$0xf]
    %v2756 = vld [vmem:[%s2754 + $0x4] sm:$0xf]
    %v2759 = vunpack.c.l.b16 %v2755
    %v2760 = vunpack.c.l.b16 %v2756
    %v2761 = vpack.c.b16 %v2760, %v2759
    %v2763 = vsel %vm355, %v2761, 0
    %2765 = vmatpush.bf16.msra.mxu0 0
    %2766 = vmatpush.bf16.msra.mxu0 0
    %2767 = vmatpush.bf16.msra.mxu0 0
    %2768 = vmatpush.bf16.msra.mxu0 0
    %2769 = vmatpush.bf16.msra.mxu0 0
    %2770 = vmatpush.bf16.msra.mxu0 %v206
    %2771 = vmatpush.bf16.msra.mxu0 %v2742
    %2772 = vmatpush.bf16.msra.mxu0 %v2738
    %2773 = vmatmul.bf16.gmra.mxu0 %v2763
    %v2774 = vpop.f32.mrf.mxu0
    %v2775 = vadd.f32 0.0, %v2774
    %v2776 = vpop.f32.mrf.mxu0
    %v2777 = vadd.f32 0.0, %v2776
    %2778 = vdwg.mxu0
    %2779 = vmatpush.bf16.msra.mxu0 0
    %2780 = vmatpush.bf16.msra.mxu0 0
    %2781 = vmatpush.bf16.msra.mxu0 0
    %2782 = vmatpush.bf16.msra.mxu0 0
    %2783 = vmatpush.bf16.msra.mxu0 0
    %2784 = vmatpush.bf16.msra.mxu0 %v206
    %2785 = vmatpush.bf16.msra.mxu0 %v2743
    %2786 = vmatpush.bf16.msra.mxu0 %v2739
    %2787 = vmatmul.bf16.gmra.mxu0 %v2763
    %v2788 = vpop.f32.mrf.mxu0
    %v2789 = vadd.f32 0.0, %v2788
    %v2790 = vpop.f32.mrf.mxu0
    %v2791 = vadd.f32 0.0, %v2790
    %2792 = vdwg.mxu0
    %2793 = vmatpush.bf16.msra.mxu0 0
    %2794 = vmatpush.bf16.msra.mxu0 0
    %2795 = vmatpush.bf16.msra.mxu0 0
    %2796 = vmatpush.bf16.msra.mxu0 0
    %2797 = vmatpush.bf16.msra.mxu0 0
    %2798 = vmatpush.bf16.msra.mxu0 %v206
    %2799 = vmatpush.bf16.msra.mxu0 %v2744
    %2800 = vmatpush.bf16.msra.mxu0 %v2740
    %2801 = vmatmul.bf16.gmra.mxu0 %v2763
    %v2802 = vpop.f32.mrf.mxu0
    %v2803 = vadd.f32 0.0, %v2802
    %v2804 = vpop.f32.mrf.mxu0
    %v2805 = vadd.f32 0.0, %v2804
    %2806 = vdwg.mxu0
    %2807 = vmatpush.bf16.msra.mxu0 0
    %2808 = vmatpush.bf16.msra.mxu0 0
    %2809 = vmatpush.bf16.msra.mxu0 0
    %2810 = vmatpush.bf16.msra.mxu0 0
    %2811 = vmatpush.bf16.msra.mxu0 0
    %2812 = vmatpush.bf16.msra.mxu0 %v206
    %2813 = vmatpush.bf16.msra.mxu0 %v2745
    %2814 = vmatpush.bf16.msra.mxu0 %v2741
    %2815 = vmatmul.bf16.gmra.mxu0 %v2763
    %v2816 = vpop.f32.mrf.mxu0
    %v2817 = vadd.f32 0.0, %v2816
    %v2818 = vpop.f32.mrf.mxu0
    %v2819 = vadd.f32 0.0, %v2818
    %2820 = vdwg.mxu0
    %s2821 = scalar_lea.vmem [#allocation3], 448
    %v2822 = vld [vmem:[%s2821] sm:$0xff]
    %v2823 = vld [vmem:[%s2821 + $0x8] sm:$0xff]
    %v2824 = vld [vmem:[%s2821 + $0x10] sm:$0xff]
    %v2825 = vld [vmem:[%s2821 + $0x18] sm:$0xff]
    %v2826 = vld [vmem:[%s2821 + $0x20] sm:$0xff]
    %v2827 = vld [vmem:[%s2821 + $0x28] sm:$0xff]
    %v2828 = vld [vmem:[%s2821 + $0x30] sm:$0xff]
    %v2829 = vld [vmem:[%s2821 + $0x38] sm:$0xff]
    %v2830 = vmul.f32 %v2775, %v2822
    %v2831 = vmul.f32 %v2789, %v2823
    %v2832 = vmul.f32 %v2803, %v2824
    %v2833 = vmul.f32 %v2817, %v2825
    %v2834 = vmul.f32 %v2777, %v2826
    %v2835 = vmul.f32 %v2791, %v2827
    %v2836 = vmul.f32 %v2805, %v2828
    %v2837 = vmul.f32 %v2819, %v2829
    %v2838 = vadd.f32 %v2830, %v2834
    %v2839 = vrot.slane %v2838, 4
    %v2840 = vadd.f32 %v2838, %v2839
    %v2841 = vrot.slane %v2840, 2
    %v2842 = vadd.f32 %v2840, %v2841
    %v2843 = vrot.slane %v2842, 1
    %v2844 = vadd.f32 %v2842, %v2843
    %v2845 = vadd.f32 %v2831, %v2835
    %v2846 = vrot.slane %v2845, 4
    %v2847 = vadd.f32 %v2845, %v2846
    %v2848 = vrot.slane %v2847, 2
    %v2849 = vadd.f32 %v2847, %v2848
    %v2850 = vrot.slane %v2849, 1
    %v2851 = vadd.f32 %v2849, %v2850
    %v2852 = vadd.f32 %v2832, %v2836
    %v2853 = vrot.slane %v2852, 4
    %v2854 = vadd.f32 %v2852, %v2853
    %v2855 = vrot.slane %v2854, 2
    %v2856 = vadd.f32 %v2854, %v2855
    %v2857 = vrot.slane %v2856, 1
    %v2858 = vadd.f32 %v2856, %v2857
    %v2859 = vadd.f32 %v2833, %v2837
    %v2860 = vrot.slane %v2859, 4
    %v2861 = vadd.f32 %v2859, %v2860
    %v2862 = vrot.slane %v2861, 2
    %v2863 = vadd.f32 %v2861, %v2862
    %v2864 = vrot.slane %v2863, 1
    %v2865 = vadd.f32 %v2863, %v2864
    %vm2866 = vcmp.lt.f32.partialorder %v2517, 50.0
    %vm2867 = vcmp.lt.f32.partialorder %v2518, 50.0
    %vm2868 = vcmp.lt.f32.partialorder %v2519, 50.0
    %vm2869 = vcmp.lt.f32.partialorder %v2520, 50.0
    %vm2870 = vcmp.ge.f32.partialorder %v2517, 70.0
    %vm2871 = vcmp.ge.f32.partialorder %v2518, 70.0
    %vm2872 = vcmp.ge.f32.partialorder %v2519, 70.0
    %vm2873 = vcmp.ge.f32.partialorder %v2520, 70.0
    %v2874 = vsub.f32 %v2517, 50.0
    %v2875 = vsub.f32 %v2518, 50.0
    %v2876 = vsub.f32 %v2519, 50.0
    %v2877 = vsub.f32 %v2520, 50.0
    %v2878 = vmul.f32 %v2874, -0.009
    %v2879 = vmul.f32 %v2875, -0.009
    %v2880 = vmul.f32 %v2876, -0.009
    %v2881 = vmul.f32 %v2877, -0.009
    %v2882 = vadd.f32 %v2878, 0.2
    %v2883 = vadd.f32 %v2879, 0.2
    %v2884 = vadd.f32 %v2880, 0.2
    %v2885 = vadd.f32 %v2881, 0.2
    %v2886 = vsel %vm2870, 0.02, %v2882
    %v2887 = vsel %vm2871, 0.02, %v2883
    %v2888 = vsel %vm2872, 0.02, %v2884
    %v2889 = vsel %vm2873, 0.02, %v2885
    %v2890 = vsel %vm2866, 0.2, %v2886
    %v2891 = vsel %vm2867, 0.2, %v2887
    %v2892 = vsel %vm2868, 0.2, %v2888
    %v2893 = vsel %vm2869, 0.2, %v2889
    %v2894 = vmul.f32 %v2890, 0.33333334
    %v2895 = vmul.f32 %v2891, 0.33333334
    %v2896 = vmul.f32 %v2892, 0.33333334
    %v2897 = vmul.f32 %v2893, 0.33333334
    %v2898 = vmul.f32 %v2894, %v2517
    %v2899 = vmul.f32 %v2895, %v2518
    %v2900 = vmul.f32 %v2896, %v2519
    %v2901 = vmul.f32 %v2897, %v2520
    %v2902 = vmul.f32 %v2517, 0.02
    %v2903 = vmul.f32 %v2518, 0.02
    %v2904 = vmul.f32 %v2519, 0.02
    %v2905 = vmul.f32 %v2520, 0.02
    %v2906 = vadd.f32 %v2898, %v2902
    %v2907 = vadd.f32 %v2899, %v2903
    %v2908 = vadd.f32 %v2900, %v2904
    %v2909 = vadd.f32 %v2901, %v2905
    %v2910 = vmul.f32 %v2906, 0.125
    %v2911 = vmul.f32 %v2907, 0.125
    %v2912 = vmul.f32 %v2908, 0.125
    %v2913 = vmul.f32 %v2909, 0.125
    %v2914 = vadd.f32 %v2517, %v2910
    %v2915 = vadd.f32 %v2518, %v2911
    %v2916 = vadd.f32 %v2519, %v2912
    %v2917 = vadd.f32 %v2520, %v2913
    %v2918 = vadd.f32 %v2914, %v2844
    %v2919 = vadd.f32 %v2915, %v2851
    %v2920 = vadd.f32 %v2916, %v2858
    %v2921 = vadd.f32 %v2917, %v2865
    %v2922 = vmul.f32 %v2561, 0.02
    %v2923 = vmul.f32 %v2562, 0.02
    %v2924 = vmul.f32 %v2563, 0.02
    %v2925 = vmul.f32 %v2564, 0.02
    %v2926 = vmul.f32 %v2565, 0.02
    %v2927 = vmul.f32 %v2566, 0.02
    %v2928 = vmul.f32 %v2567, 0.02
    %v2929 = vmul.f32 %v2568, 0.02
    %v2930 = vmul.f32 %v2922, 0.125
    %v2931 = vmul.f32 %v2923, 0.125
    %v2932 = vmul.f32 %v2924, 0.125
    %v2933 = vmul.f32 %v2925, 0.125
    %v2934 = vmul.f32 %v2926, 0.125
    %v2935 = vmul.f32 %v2927, 0.125
    %v2936 = vmul.f32 %v2928, 0.125
    %v2937 = vmul.f32 %v2929, 0.125
    %v2938 = vadd.f32 %v2561, %v2930
    %v2939 = vadd.f32 %v2562, %v2931
    %v2940 = vadd.f32 %v2563, %v2932
    %v2941 = vadd.f32 %v2564, %v2933
    %v2942 = vadd.f32 %v2565, %v2934
    %v2943 = vadd.f32 %v2566, %v2935
    %v2944 = vadd.f32 %v2567, %v2936
    %v2945 = vadd.f32 %v2568, %v2937
    %v2946 = vmul.f32 %v2561, 0.2
    %v2947 = vmul.f32 %v2562, 0.2
    %v2948 = vmul.f32 %v2563, 0.2
    %v2949 = vmul.f32 %v2564, 0.2
    %v2950 = vmul.f32 %v2565, 0.2
    %v2951 = vmul.f32 %v2566, 0.2
    %v2952 = vmul.f32 %v2567, 0.2
    %v2953 = vmul.f32 %v2568, 0.2
    %v2954 = vmul.f32 %v2946, %v2822
    %v2955 = vmul.f32 %v2947, %v2823
    %v2956 = vmul.f32 %v2948, %v2824
    %v2957 = vmul.f32 %v2949, %v2825
    %v2958 = vmul.f32 %v2950, %v2826
    %v2959 = vmul.f32 %v2951, %v2827
    %v2960 = vmul.f32 %v2952, %v2828
    %v2961 = vmul.f32 %v2953, %v2829
    %v2962 = vadd.f32 %v2938, %v2954
    %v2963 = vadd.f32 %v2939, %v2955
    %v2964 = vadd.f32 %v2940, %v2956
    %v2965 = vadd.f32 %v2941, %v2957
    %v2966 = vadd.f32 %v2942, %v2958
    %v2967 = vadd.f32 %v2943, %v2959
    %v2968 = vadd.f32 %v2944, %v2960
    %v2969 = vadd.f32 %v2945, %v2961
    %v2970 = vmin.f32 %v2962, %v2966
    %v2971 = vrot.slane %v2970, 4
    %v2972 = vmin.f32 %v2970, %v2971
    %v2973 = vrot.slane %v2972, 2
    %v2974 = vmin.f32 %v2972, %v2973
    %v2975 = vrot.slane %v2974, 1
    %v2976 = vmin.f32 %v2974, %v2975
    %v2977 = vmin.f32 %v2963, %v2967
    %v2978 = vrot.slane %v2977, 4
    %v2979 = vmin.f32 %v2977, %v2978
    %v2980 = vrot.slane %v2979, 2
    %v2981 = vmin.f32 %v2979, %v2980
    %v2982 = vrot.slane %v2981, 1
    %v2983 = vmin.f32 %v2981, %v2982
    %v2984 = vmin.f32 %v2964, %v2968
    %v2985 = vrot.slane %v2984, 4
    %v2986 = vmin.f32 %v2984, %v2985
    %v2987 = vrot.slane %v2986, 2
    %v2988 = vmin.f32 %v2986, %v2987
    %v2989 = vrot.slane %v2988, 1
    %v2990 = vmin.f32 %v2988, %v2989
    %v2991 = vmin.f32 %v2965, %v2969
    %v2992 = vrot.slane %v2991, 4
    %v2993 = vmin.f32 %v2991, %v2992
    %v2994 = vrot.slane %v2993, 2
    %v2995 = vmin.f32 %v2993, %v2994
    %v2996 = vrot.slane %v2995, 1
    %v2997 = vmin.f32 %v2995, %v2996
    %v3002 = vrot.slane %v2983, 7
    %v3003 = vrot.slane %v2990, 6
    %v3004 = vrot.slane %v2997, 5
    %v3005 = vsel %vm202, %v2976, %v3002
    %vm3006 = vcmask 1042434
    %v3007 = vsel %vm3006, %v3003, %v3004
    %vm3008 = vcmask 1041408
    %v3009 = vsel %vm3008, %v3005, %v3007
    %v3011 = vlaneseq
    %vm3012 = vcmp.ge.s32.totalorder %v3011, 0
    %vm3013 = vcmp.lt.s32.totalorder %v3011, 512
    %vm3014 = vmand %vm3012, %vm3013
    %3015 = vst.msk [vmem:[#allocation6] sm:$0xf] %vm3014, %v3009
    %v3020 = vrot.slane %v2919, 7
    %v3021 = vrot.slane %v2920, 6
    %v3022 = vrot.slane %v2921, 5
    %v3023 = vsel %vm202, %v2918, %v3020
    %v3024 = vsel %vm3006, %v3021, %v3022
    %v3025 = vsel %vm3008, %v3023, %v3024
    %3027 = vst.msk [vmem:[#allocation7] sm:$0xf] %vm3014, %v3025
    // Predicated region
    $region30: #{tpu_custom_call.1} parent=1 // pred_check
      _
    $region31: #{tpu_custom_call.1} parent=1 // pred_check_branch
      %3029 = sbr.rel (0) target = $region33
    $region32: #{tpu_custom_call.1} parent=1 // pred_region
      %3031 = vsyncadd [#allocation5], 0
      %s3033 = sshll.u32 [#allocation6], 4
      %s3034 = int_to_ptr.vmem [resolvable:$true] %s3033
      %s3035 = sshll.u32 %s6, 4
      %s3036 = int_to_ptr.hbm [resolvable:$true] %s3035
      %3038 = dma.vmem_to_hbm [thread:$0]  %s3034, 64, %s3036, [#allocation5]
    $region33: #{tpu_custom_call.1} parent=1 // pred_fallthru
      _
    // Predicated region
    $region34: #{tpu_custom_call.1} parent=1 // pred_check
      _
    $region35: #{tpu_custom_call.1} parent=1 // pred_check_branch
      %3040 = sbr.rel (0) target = $region37
    $region36: #{tpu_custom_call.1} parent=1 // pred_region
      %3042 = vsyncadd [#allocation8], 0
      %s3044 = sshll.u32 [#allocation7], 4
      %s3045 = int_to_ptr.vmem [resolvable:$true] %s3044
      %s3046 = sshll.u32 %s7, 4
      %s3047 = int_to_ptr.hbm [resolvable:$true] %s3046
      %3049 = dma.vmem_to_hbm [thread:$0]  %s3045, 64, %s3047, [#allocation8]
    $region37: #{tpu_custom_call.1} parent=1 // pred_fallthru
      _
    // Predicated region
    $region38: #{tpu_custom_call.1} parent=1 // pred_check
      _
    $region39: #{tpu_custom_call.1} parent=1 // pred_check_branch
      %3051 = sbr.rel (0) target = $region41
    $region40: #{tpu_custom_call.1} parent=1 // pred_region
      %3053 = dma.done [#allocation5], 64
    $region41: #{tpu_custom_call.1} parent=1 // pred_fallthru
      _
    // Predicated region
    $region42: #{tpu_custom_call.1} parent=1 // pred_check
      _
    $region43: #{tpu_custom_call.1} parent=1 // pred_check_branch
      %3055 = sbr.rel (0) target = $region45
    $region44: #{tpu_custom_call.1} parent=1 // pred_region
      %3057 = dma.done [#allocation8], 64
    $region45: #{tpu_custom_call.1} parent=1 // pred_fallthru
      _
    %3058 = vsyncpa [#allocation4], 1
    %3059 = vsyncpa [#allocation5], 1
    %3060 = vsyncpa [#allocation8], 1

</llo_original>
